<compile_context>
chip_gen: v5e
topology: v5e:2x2
jax: 0.10.0
libtpu: 0.0.40
codegen_flags: <defaults>
</compile_context>

<pallas_src>
import functools

import numpy as np

import jax
import jax.numpy as jnp
from jax.experimental import pallas as pl
from jax.experimental.pallas import tpu as pltpu

ACT_DTYPE = jnp.bfloat16   # activation / weight storage + MXU input dtype
LANE = 128                 # TPU lane width: conv channels padded to this


# ----------------------------------------------------------------------------
# Pallas kernels
# ----------------------------------------------------------------------------

def conv_bn_relu_kernel(x_ref, top_ref, bot_ref, w_ref, scale_ref, bias_ref,
                        o_ref, xp_ref, acc_ref, *, pool):
    """Fused 3x3 conv (+folded BN +ReLU, + optional 2x2 max-pool).

    x_ref:     (1, Hb, W, Cin)    main row block (bf16)
    top_ref:   (1, 1, W, Cin)     halo row above the block (clamped)
    bot_ref:   (1, 1, W, Cin)     halo row below the block (clamped)
    w_ref:     (3, 3, Cin, Cout)  conv weights (bf16)
    scale_ref: (1, Cout)          folded BN scale (f32)
    bias_ref:  (1, Cout)          folded BN bias  (f32, includes conv bias)
    o_ref:     (1, Hb, W, Cout)   or (1, Hb/2, W/2, Cout) if pool
    xp_ref:    (Hb+2, W+2, Cin)   VMEM scratch: zero-padded input tile (f32)
    acc_ref:   (Hb*W, Cout)       VMEM scratch: f32 accumulator
    """
    hb, wl, cin = x_ref.shape[1], x_ref.shape[2], x_ref.shape[3]
    cout = o_ref.shape[3]
    h_id = pl.program_id(1)
    n_hb = pl.num_programs(1)

    # --- assemble the zero-padded (hb+2, wl+2, cin) tile in VMEM -------------
    xp_ref[...] = jnp.zeros_like(xp_ref)
    xp_ref[1:hb + 1, 1:wl + 1, :] = x_ref[0].astype(jnp.float32)

    @pl.when(h_id > 0)
    def _():                                   # top halo (else stays zero pad)
        xp_ref[0:1, 1:wl + 1, :] = top_ref[0].astype(jnp.float32)

    @pl.when(h_id < n_hb - 1)
    def _():                                   # bottom halo
        xp_ref[hb + 1:hb + 2, 1:wl + 1, :] = bot_ref[0].astype(jnp.float32)

    # --- 3x3 conv as 9 shifted (hb*wl, cin) x (cin, cout) MXU matmuls --------
    for ky in range(3):
        for kx in range(3):
            slab = xp_ref[ky:ky + hb, kx:kx + wl, :]          # (hb, wl, cin)
            lhs = slab.reshape(hb * wl, cin).astype(w_ref.dtype)
            d = jnp.dot(lhs, w_ref[ky, kx],
                        preferred_element_type=jnp.float32)
            if ky == 0 and kx == 0:
                acc_ref[...] = d
            else:
                acc_ref[...] += d

    # --- folded BN + ReLU epilogue (f32), single lane-dense store ------------
    y = jnp.maximum(acc_ref[...] * scale_ref[...] + bias_ref[...], 0.0)
    if pool:
        # fuse MaxPool2d(2, 2): pairs along W, then pairs along H
        y = jnp.max(y.reshape(hb * wl // 2, 2, cout), axis=1)
        y = jnp.max(y.reshape(hb // 2, 2, wl // 2, cout), axis=1)
    else:
        y = y.reshape(hb, wl, cout)
    o_ref[0] = y.astype(o_ref.dtype)


def avgpool_kernel(p_ref, x_ref, o_ref):
    """Adaptive avg pool to 7x7 as a matmul with the exact pooling matrix.

    p_ref: (49, H*W)    kron(Ph, Pw) exact PyTorch adaptive-averaging matrix
    x_ref: (1, H*W, C)
    o_ref: (1, 49, C)
    """
    o_ref[0] = jnp.dot(p_ref[...], x_ref[0].astype(jnp.float32),
                       preferred_element_type=jnp.float32).astype(o_ref.dtype)


def linear_kernel(x_ref, w_ref, b_ref, o_ref, acc_ref, *, apply_relu):
    """Tiled y = x @ W + b with K-axis accumulation in an f32 VMEM scratch."""
    k = pl.program_id(1)

    @pl.when(k == 0)
    def _():
        acc_ref[...] = jnp.zeros_like(acc_ref)

    acc_ref[...] += jnp.dot(x_ref[...], w_ref[...],
                            preferred_element_type=jnp.float32)

    @pl.when(k == pl.num_programs(1) - 1)
    def _():
        y = acc_ref[...] + b_ref[...]
        if apply_relu:
            y = jnp.maximum(y, 0.0)
        o_ref[...] = y.astype(o_ref.dtype)


# ----------------------------------------------------------------------------
# Wrappers (tiling decisions + pallas_call plumbing only)
# ----------------------------------------------------------------------------

def _pick_row_block(H, W, pool, target_rows=1024):
    """Largest row block Hb dividing H (even if pooling) with Hb*W <= target."""
    step = 2 if pool else 1
    best = step
    for hb in range(step, H + 1, step):
        if H % hb == 0 and hb * W <= target_rows:
            best = hb
    return best


def _pick_tile(dim, target, align=128):
    """Largest lane-aligned tile <= target that divides dim, else full dim."""
    if dim <= target:
        return dim
    t = (target // align) * align
    while t >= align:
        if dim % t == 0:
            return t
        t -= align
    return dim


def conv_bn_relu(x, w, scale, bias, pool):
    N, H, W, Cin = x.shape
    Cout = w.shape[-1]
    if pool:
        assert H % 2 == 0 and W % 2 == 0
    HB = _pick_row_block(H, W, pool)
    n_hb = H // HB
    HBo = HB // 2 if pool else HB
    Ho = H // 2 if pool else H
    Wo = W // 2 if pool else W

    kern = functools.partial(conv_bn_relu_kernel, pool=pool)
    return pl.pallas_call(
        kern,
        grid=(N, n_hb),
        in_specs=[
            # main row block
            pl.BlockSpec((1, HB, W, Cin), lambda n, h: (n, h, 0, 0)),
            # halo rows: block size 1 along H => block index == row index
            pl.BlockSpec((1, 1, W, Cin),
                         lambda n, h: (n, jnp.maximum(h * HB - 1, 0), 0, 0)),
            pl.BlockSpec((1, 1, W, Cin),
                         lambda n, h: (n, jnp.minimum(h * HB + HB, H - 1), 0, 0)),
            pl.BlockSpec((3, 3, Cin, Cout), lambda n, h: (0, 0, 0, 0)),
            pl.BlockSpec((1, Cout), lambda n, h: (0, 0)),
            pl.BlockSpec((1, Cout), lambda n, h: (0, 0)),
        ],
        out_specs=pl.BlockSpec((1, HBo, Wo, Cout), lambda n, h: (n, h, 0, 0)),
        out_shape=jax.ShapeDtypeStruct((N, Ho, Wo, Cout), ACT_DTYPE),
        scratch_shapes=[
            pltpu.VMEM((HB + 2, W + 2, Cin), jnp.float32),   # padded input tile
            pltpu.VMEM((HB * W, Cout), jnp.float32),          # f32 accumulator
        ],
        compiler_params=pltpu.CompilerParams(
            dimension_semantics=("parallel", "parallel")),
    )(x, x, x, w, scale, bias)


def _adaptive_pool_matrix(in_size, out_size):
    """Exact PyTorch AdaptiveAvgPool averaging matrix (out_size, in_size)."""
    m = np.zeros((out_size, in_size), np.float32)
    for i in range(out_size):
        s = (i * in_size) // out_size
        e = -((-(i + 1) * in_size) // out_size)   # ceil
        m[i, s:e] = 1.0 / (e - s)
    return m


def adaptive_avgpool_7x7(x):
    N, H, W, C = x.shape
    p2 = jnp.asarray(np.kron(_adaptive_pool_matrix(H, 7),
                             _adaptive_pool_matrix(W, 7)), jnp.float32)
    xf = x.reshape(N, H * W, C)   # contiguous metadata reshape (no data move)
    return pl.pallas_call(
        avgpool_kernel,
        grid=(N,),
        in_specs=[pl.BlockSpec((49, H * W), lambda n: (0, 0)),
                  pl.BlockSpec((1, H * W, C), lambda n: (n, 0, 0))],
        out_specs=pl.BlockSpec((1, 49, C), lambda n: (n, 0, 0)),
        out_shape=jax.ShapeDtypeStruct((N, 49, C), x.dtype),
        compiler_params=pltpu.CompilerParams(
            dimension_semantics=("parallel",)),
    )(p2, xf)


def linear(x, w, b, relu, out_dtype):
    M, K = x.shape
    Kw, Nd = w.shape
    assert Kw == K
    tk = _pick_tile(K, 512)
    tn = _pick_tile(Nd, 256)
    nk, nn = K // tk, Nd // tn
    kern = functools.partial(linear_kernel, apply_relu=relu)
    return pl.pallas_call(
        kern,
        grid=(nn, nk),
        in_specs=[
            pl.BlockSpec((M, tk), lambda j, k: (0, k)),
            pl.BlockSpec((tk, tn), lambda j, k: (k, j)),
            pl.BlockSpec((1, tn), lambda j, k: (0, j)),
        ],
        out_specs=pl.BlockSpec((M, tn), lambda j, k: (0, j)),
        out_shape=jax.ShapeDtypeStruct((M, Nd), out_dtype),
        scratch_shapes=[pltpu.VMEM((M, tn), jnp.float32)],
        compiler_params=pltpu.CompilerParams(
            dimension_semantics=("parallel", "arbitrary")),
    )(x, w, b)


# ----------------------------------------------------------------------------
# VGG forward
# ----------------------------------------------------------------------------

def vgg_forward(params, x_nchw):
    N = x_nchw.shape[0]
    x = jnp.transpose(x_nchw, (0, 2, 3, 1)).astype(ACT_DTYPE)   # NCHW -> NHWC

    for layer in params["features"]:
        x = conv_bn_relu(x, layer["w"], layer["scale"], layer["bias"],
                         pool=layer["pool"])

    pooled = adaptive_avgpool_7x7(x)                     # (N, 49, C_padded)
    c_real = params["c_last"]
    # Drop the zero lane-padding channels and match the PyTorch
    # (N, C, 7, 7).view(N, -1) channel-major flatten order.
    flat = jnp.transpose(pooled[:, :, :c_real], (0, 2, 1)).reshape(N, c_real * 49)

    h = linear(flat, params["fc1_w"], params["fc1_b"], relu=True,
               out_dtype=ACT_DTYPE)
    # TODO(synk): Dropout is identity (eval mode); RNG dropout not implemented.
    h = linear(h, params["fc2_w"], params["fc2_b"], relu=True,
               out_dtype=ACT_DTYPE)
    # TODO(synk): Dropout is identity (eval mode); RNG dropout not implemented.
    out = linear(h, params["fc3_w"], params["fc3_b"], relu=False,
                 out_dtype=jnp.float32)
    return out


# ----------------------------------------------------------------------------
# Deterministic synthetic parameters
# ----------------------------------------------------------------------------

def _round_up(x, m):
    return ((x + m - 1) // m) * m


def init_params(key, cfg, num_classes=10, hidden=32):
    # Parse cfg: every 'M' is fused into the preceding conv layer.
    conv_cfg = []
    for v in cfg:
        if v == "M":
            assert conv_cfg and not conv_cfg[-1]["pool"], \
                "each 'M' must directly follow a conv layer"
            conv_cfg[-1]["pool"] = True
        else:
            conv_cfg.append({"c": int(v), "pool": False})

    params = {"features": []}
    in_real, in_pad = 3, 3          # raw RGB input stays unpadded
    for entry in conv_cfg:
        v = entry["c"]
        cp = _round_up(v, LANE)     # lane-dense output channels
        key, k1, k2, k3, k4, k5, k6 = jax.random.split(key, 7)
        # Conv weight stored as (3, 3, Cin, Cout) (PyTorch: (Cout, Cin, 3, 3)).
        w = 0.1 * jax.random.normal(k1, (3, 3, in_real, v), jnp.float32)
        conv_b = 0.1 * jax.random.normal(k2, (v,), jnp.float32)
        gamma = 1.0 + 0.1 * jax.random.normal(k3, (v,), jnp.float32)
        beta = 0.1 * jax.random.normal(k4, (v,), jnp.float32)
        run_mean = 0.1 * jax.random.normal(k5, (v,), jnp.float32)
        run_var = jax.random.uniform(k6, (v,), jnp.float32, 0.5, 1.5)
        s = gamma / jnp.sqrt(run_var + 1e-5)
        b = (conv_b - run_mean) * s + beta
        # Zero-pad channels to lane multiples; padded channels stay exactly 0.
        w_p = jnp.zeros((3, 3, in_pad, cp), jnp.float32)
        w_p = w_p.at[:, :, :in_real, :v].set(w)
        s_p = jnp.zeros((1, cp), jnp.float32).at[0, :v].set(s)
        b_p = jnp.zeros((1, cp), jnp.float32).at[0, :v].set(b)
        params["features"].append({
            "w": w_p.astype(ACT_DTYPE),
            "scale": s_p,
            "bias": b_p,
            "pool": entry["pool"],
        })
        in_real, in_pad = v, cp

    params["c_last"] = in_real
    feat_dim = in_real * 7 * 7   # same formula as 512*7*7 in the reference
    dims = [(feat_dim, hidden), (hidden, hidden), (hidden, num_classes)]
    for i, (din, dout) in enumerate(dims, start=1):
        key, kw, kb = jax.random.split(key, 3)
        params[f"fc{i}_w"] = (jax.random.normal(kw, (din, dout), jnp.float32)
                              / np.sqrt(din)).astype(ACT_DTYPE)
        params[f"fc{i}_b"] = 0.1 * jax.random.normal(kb, (1, dout), jnp.float32)
    return params


# ----------------------------------------------------------------------------
# Main
# ----------------------------------------------------------------------------

if __name__ == "__main__":
    # Small synthetic VGG config (real VGG cfgs end at 512 channels; here the
    # structure is kept but channels / classifier width are scaled down).
    cfg = [8, "M", 16, "M"]
    num_classes = 10
    hidden = 32

    key = jax.random.PRNGKey(0)
    key, kx, kp = jax.random.split(key, 3)
    params = init_params(kp, cfg, num_classes=num_classes, hidden=hidden)

    x = jax.random.normal(kx, (2, 3, 16, 16), jnp.float32)   # NCHW, like PyTorch

    out = vgg_forward(params, x)
    out = jax.block_until_ready(out)

    assert out.shape == (2, num_classes), out.shape
    assert bool(jnp.all(jnp.isfinite(out)))
    print("KERNEL_OK")
</pallas_src>

<mosaic_0001>
module attributes {stable_mosaic.version = 11 : i64} {
  func.func @conv_bn_relu_kernel(%arg0: i32, %arg1: i32, %arg2: memref<1x16x16x3xbf16, #tpu.memory_space<vmem>>, %arg3: memref<1x1x16x3xbf16, #tpu.memory_space<vmem>>, %arg4: memref<1x1x16x3xbf16, #tpu.memory_space<vmem>>, %arg5: memref<3x3x3x128xbf16, #tpu.memory_space<vmem>>, %arg6: memref<1x128xf32, #tpu.memory_space<vmem>>, %arg7: memref<1x128xf32, #tpu.memory_space<vmem>>, %arg8: memref<1x8x8x128xbf16, #tpu.memory_space<vmem>>, %arg9: memref<18x18x3xf32, #tpu.memory_space<vmem>>, %arg10: memref<256x128xf32, #tpu.memory_space<vmem>>) attributes {dimension_semantics = [#tpu.dimension_semantics<parallel>, #tpu.dimension_semantics<parallel>], iteration_bounds = array<i64: 2, 1>, scalar_prefetch = 0 : i64, scratch_operands = 2 : i64, tpu.core_type = #tpu.core_type<tc>, window_params = [{transform_indices = @transform_0, window_bounds = array<i64: 1, 16, 16, 3>}, {transform_indices = @transform_1, window_bounds = array<i64: 1, 1, 16, 3>}, {transform_indices = @transform_2, window_bounds = array<i64: 1, 1, 16, 3>}, {pipeline_mode = #tpu.pipeline_mode<synchronous>, transform_indices = @transform_3, window_bounds = array<i64: 3, 3, 3, 128>}, {pipeline_mode = #tpu.pipeline_mode<synchronous>, transform_indices = @transform_4, window_bounds = array<i64: 1, 128>}, {pipeline_mode = #tpu.pipeline_mode<synchronous>, transform_indices = @transform_5, window_bounds = array<i64: 1, 128>}, {transform_indices = @transform_6, window_bounds = array<i64: 1, 8, 8, 128>}]} {
    %cst = arith.constant 0.000000e+00 : f32
    %0 = vector.broadcast %cst : f32 to vector<18x18x3xf32>
    %c0 = arith.constant 0 : index
    %c0_0 = arith.constant 0 : index
    %c0_1 = arith.constant 0 : index
    %1 = vector.load %arg9[%c0, %c0_0, %c0_1] : memref<18x18x3xf32, #tpu.memory_space<vmem>>, vector<18x18x3xf32>
    tpu.vector_store %arg9[%c0, %c0_0, %c0_1], %0 {strides = array<i32>} : memref<18x18x3xf32, #tpu.memory_space<vmem>>, vector<18x18x3xf32>,
    %c0_2 = arith.constant 0 : index
    %c0_3 = arith.constant 0 : index
    %c0_4 = arith.constant 0 : index
    %c0_5 = arith.constant 0 : index
    %2 = vector.load %arg2[%c0_2, %c0_3, %c0_4, %c0_5] : memref<1x16x16x3xbf16, #tpu.memory_space<vmem>>, vector<1x16x16x3xbf16>
    %3 = vector.shape_cast %2 : vector<1x16x16x3xbf16> to vector<16x16x3xbf16>
    %4 = arith.extf %3 : vector<16x16x3xbf16> to vector<16x16x3xf32>
    %c1 = arith.constant 1 : index
    %c1_6 = arith.constant 1 : index
    %c0_7 = arith.constant 0 : index
    %5 = vector.load %arg9[%c1, %c1_6, %c0_7] : memref<18x18x3xf32, #tpu.memory_space<vmem>>, vector<16x16x3xf32>
    tpu.vector_store %arg9[%c1, %c1_6, %c0_7], %4 {strides = array<i32>} : memref<18x18x3xf32, #tpu.memory_space<vmem>>, vector<16x16x3xf32>,
    %c0_i32 = arith.constant 0 : i32
    %6 = arith.cmpi sgt, %arg1, %c0_i32 : i32
    %7 = arith.extui %6 : i1 to i32
    %c0_i32_8 = arith.constant 0 : i32
    %8 = arith.cmpi ne, %7, %c0_i32_8 : i32
    scf.if %8 {
      %c0_129 = arith.constant 0 : index
      %c0_130 = arith.constant 0 : index
      %c0_131 = arith.constant 0 : index
      %c0_132 = arith.constant 0 : index
      %108 = vector.load %arg3[%c0_129, %c0_130, %c0_131, %c0_132] : memref<1x1x16x3xbf16, #tpu.memory_space<vmem>>, vector<1x1x16x3xbf16>
      %109 = vector.shape_cast %108 : vector<1x1x16x3xbf16> to vector<1x16x3xbf16>
      %110 = arith.extf %109 : vector<1x16x3xbf16> to vector<1x16x3xf32>
      %c0_133 = arith.constant 0 : index
      %c1_134 = arith.constant 1 : index
      %c0_135 = arith.constant 0 : index
      %111 = vector.load %arg9[%c0_133, %c1_134, %c0_135] : memref<18x18x3xf32, #tpu.memory_space<vmem>>, vector<1x16x3xf32>
      tpu.vector_store %arg9[%c0_133, %c1_134, %c0_135], %110 {strides = array<i32>} : memref<18x18x3xf32, #tpu.memory_space<vmem>>, vector<1x16x3xf32>,
    } else {
    }
    %c0_i32_9 = arith.constant 0 : i32
    %9 = arith.cmpi slt, %arg1, %c0_i32_9 : i32
    %10 = arith.extui %9 : i1 to i32
    %c0_i32_10 = arith.constant 0 : i32
    %11 = arith.cmpi ne, %10, %c0_i32_10 : i32
    scf.if %11 {
      %c0_129 = arith.constant 0 : index
      %c0_130 = arith.constant 0 : index
      %c0_131 = arith.constant 0 : index
      %c0_132 = arith.constant 0 : index
      %108 = vector.load %arg4[%c0_129, %c0_130, %c0_131, %c0_132] : memref<1x1x16x3xbf16, #tpu.memory_space<vmem>>, vector<1x1x16x3xbf16>
      %109 = vector.shape_cast %108 : vector<1x1x16x3xbf16> to vector<1x16x3xbf16>
      %110 = arith.extf %109 : vector<1x16x3xbf16> to vector<1x16x3xf32>
      %c17 = arith.constant 17 : index
      %c1_133 = arith.constant 1 : index
      %c0_134 = arith.constant 0 : index
      %111 = vector.load %arg9[%c17, %c1_133, %c0_134] : memref<18x18x3xf32, #tpu.memory_space<vmem>>, vector<1x16x3xf32>
      tpu.vector_store %arg9[%c17, %c1_133, %c0_134], %110 {strides = array<i32>} : memref<18x18x3xf32, #tpu.memory_space<vmem>>, vector<1x16x3xf32>,
    } else {
    }
    %c0_11 = arith.constant 0 : index
    %c0_12 = arith.constant 0 : index
    %c0_13 = arith.constant 0 : index
    %12 = vector.load %arg9[%c0_11, %c0_12, %c0_13] : memref<18x18x3xf32, #tpu.memory_space<vmem>>, vector<16x16x3xf32>
    %13 = vector.shape_cast %12 : vector<16x16x3xf32> to vector<256x3xf32>
    %14 = arith.truncf %13 : vector<256x3xf32> to vector<256x3xbf16>
    %c0_14 = arith.constant 0 : index
    %c0_15 = arith.constant 0 : index
    %c0_16 = arith.constant 0 : index
    %c0_17 = arith.constant 0 : index
    %15 = vector.load %arg5[%c0_14, %c0_15, %c0_16, %c0_17] : memref<3x3x3x128xbf16, #tpu.memory_space<vmem>>, vector<1x1x3x128xbf16>
    %16 = vector.shape_cast %15 : vector<1x1x3x128xbf16> to vector<3x128xbf16>
    %cst_18 = arith.constant dense<0.000000e+00> : vector<256x128xf32>
    %17 = tpu.matmul %14, %16, %cst_18 {dimension_numbers = #tpu.dot_dimension_numbers<[1], [0], [0], [1], [0, 0, 1, 1], [], []>} : vector<256x3xbf16>, vector<3x128xbf16>, vector<256x128xf32> -> vector<256x128xf32>
    %c0_19 = arith.constant 0 : index
    %c0_20 = arith.constant 0 : index
    %18 = vector.load %arg10[%c0_19, %c0_20] : memref<256x128xf32, #tpu.memory_space<vmem>>, vector<256x128xf32>
    tpu.vector_store %arg10[%c0_19, %c0_20], %17 {strides = array<i32>} : memref<256x128xf32, #tpu.memory_space<vmem>>, vector<256x128xf32>,
    %c0_21 = arith.constant 0 : index
    %c1_22 = arith.constant 1 : index
    %c0_23 = arith.constant 0 : index
    %19 = vector.load %arg9[%c0_21, %c1_22, %c0_23] : memref<18x18x3xf32, #tpu.memory_space<vmem>>, vector<16x16x3xf32>
    %20 = vector.shape_cast %19 : vector<16x16x3xf32> to vector<256x3xf32>
    %21 = arith.truncf %20 : vector<256x3xf32> to vector<256x3xbf16>
    %c0_24 = arith.constant 0 : index
    %c1_25 = arith.constant 1 : index
    %c0_26 = arith.constant 0 : index
    %c0_27 = arith.constant 0 : index
    %22 = vector.load %arg5[%c0_24, %c1_25, %c0_26, %c0_27] : memref<3x3x3x128xbf16, #tpu.memory_space<vmem>>, vector<1x1x3x128xbf16>
    %23 = vector.shape_cast %22 : vector<1x1x3x128xbf16> to vector<3x128xbf16>
    %cst_28 = arith.constant dense<0.000000e+00> : vector<256x128xf32>
    %24 = tpu.matmul %21, %23, %cst_28 {dimension_numbers = #tpu.dot_dimension_numbers<[1], [0], [0], [1], [0, 0, 1, 1], [], []>} : vector<256x3xbf16>, vector<3x128xbf16>, vector<256x128xf32> -> vector<256x128xf32>
    %c0_29 = arith.constant 0 : index
    %c0_30 = arith.constant 0 : index
    %25 = vector.load %arg10[%c0_29, %c0_30] : memref<256x128xf32, #tpu.memory_space<vmem>>, vector<256x128xf32>
    %26 = arith.addf %25, %24 : vector<256x128xf32>
    %c0_31 = arith.constant 0 : index
    %c0_32 = arith.constant 0 : index
    %27 = vector.load %arg10[%c0_31, %c0_32] : memref<256x128xf32, #tpu.memory_space<vmem>>, vector<256x128xf32>
    tpu.vector_store %arg10[%c0_31, %c0_32], %26 {strides = array<i32>} : memref<256x128xf32, #tpu.memory_space<vmem>>, vector<256x128xf32>,
    %c0_33 = arith.constant 0 : index
    %c2 = arith.constant 2 : index
    %c0_34 = arith.constant 0 : index
    %28 = vector.load %arg9[%c0_33, %c2, %c0_34] : memref<18x18x3xf32, #tpu.memory_space<vmem>>, vector<16x16x3xf32>
    %29 = vector.shape_cast %28 : vector<16x16x3xf32> to vector<256x3xf32>
    %30 = arith.truncf %29 : vector<256x3xf32> to vector<256x3xbf16>
    %c0_35 = arith.constant 0 : index
    %c2_36 = arith.constant 2 : index
    %c0_37 = arith.constant 0 : index
    %c0_38 = arith.constant 0 : index
    %31 = vector.load %arg5[%c0_35, %c2_36, %c0_37, %c0_38] : memref<3x3x3x128xbf16, #tpu.memory_space<vmem>>, vector<1x1x3x128xbf16>
    %32 = vector.shape_cast %31 : vector<1x1x3x128xbf16> to vector<3x128xbf16>
    %cst_39 = arith.constant dense<0.000000e+00> : vector<256x128xf32>
    %33 = tpu.matmul %30, %32, %cst_39 {dimension_numbers = #tpu.dot_dimension_numbers<[1], [0], [0], [1], [0, 0, 1, 1], [], []>} : vector<256x3xbf16>, vector<3x128xbf16>, vector<256x128xf32> -> vector<256x128xf32>
    %c0_40 = arith.constant 0 : index
    %c0_41 = arith.constant 0 : index
    %34 = vector.load %arg10[%c0_40, %c0_41] : memref<256x128xf32, #tpu.memory_space<vmem>>, vector<256x128xf32>
    %35 = arith.addf %34, %33 : vector<256x128xf32>
    %c0_42 = arith.constant 0 : index
    %c0_43 = arith.constant 0 : index
    %36 = vector.load %arg10[%c0_42, %c0_43] : memref<256x128xf32, #tpu.memory_space<vmem>>, vector<256x128xf32>
    tpu.vector_store %arg10[%c0_42, %c0_43], %35 {strides = array<i32>} : memref<256x128xf32, #tpu.memory_space<vmem>>, vector<256x128xf32>,
    %c1_44 = arith.constant 1 : index
    %c0_45 = arith.constant 0 : index
    %c0_46 = arith.constant 0 : index
    %37 = vector.load %arg9[%c1_44, %c0_45, %c0_46] : memref<18x18x3xf32, #tpu.memory_space<vmem>>, vector<16x16x3xf32>
    %38 = vector.shape_cast %37 : vector<16x16x3xf32> to vector<256x3xf32>
    %39 = arith.truncf %38 : vector<256x3xf32> to vector<256x3xbf16>
    %c1_47 = arith.constant 1 : index
    %c0_48 = arith.constant 0 : index
    %c0_49 = arith.constant 0 : index
    %c0_50 = arith.constant 0 : index
    %40 = vector.load %arg5[%c1_47, %c0_48, %c0_49, %c0_50] : memref<3x3x3x128xbf16, #tpu.memory_space<vmem>>, vector<1x1x3x128xbf16>
    %41 = vector.shape_cast %40 : vector<1x1x3x128xbf16> to vector<3x128xbf16>
    %cst_51 = arith.constant dense<0.000000e+00> : vector<256x128xf32>
    %42 = tpu.matmul %39, %41, %cst_51 {dimension_numbers = #tpu.dot_dimension_numbers<[1], [0], [0], [1], [0, 0, 1, 1], [], []>} : vector<256x3xbf16>, vector<3x128xbf16>, vector<256x128xf32> -> vector<256x128xf32>
    %c0_52 = arith.constant 0 : index
    %c0_53 = arith.constant 0 : index
    %43 = vector.load %arg10[%c0_52, %c0_53] : memref<256x128xf32, #tpu.memory_space<vmem>>, vector<256x128xf32>
    %44 = arith.addf %43, %42 : vector<256x128xf32>
    %c0_54 = arith.constant 0 : index
    %c0_55 = arith.constant 0 : index
    %45 = vector.load %arg10[%c0_54, %c0_55] : memref<256x128xf32, #tpu.memory_space<vmem>>, vector<256x128xf32>
    tpu.vector_store %arg10[%c0_54, %c0_55], %44 {strides = array<i32>} : memref<256x128xf32, #tpu.memory_space<vmem>>, vector<256x128xf32>,
    %c1_56 = arith.constant 1 : index
    %c1_57 = arith.constant 1 : index
    %c0_58 = arith.constant 0 : index
    %46 = vector.load %arg9[%c1_56, %c1_57, %c0_58] : memref<18x18x3xf32, #tpu.memory_space<vmem>>, vector<16x16x3xf32>
    %47 = vector.shape_cast %46 : vector<16x16x3xf32> to vector<256x3xf32>
    %48 = arith.truncf %47 : vector<256x3xf32> to vector<256x3xbf16>
    %c1_59 = arith.constant 1 : index
    %c1_60 = arith.constant 1 : index
    %c0_61 = arith.constant 0 : index
    %c0_62 = arith.constant 0 : index
    %49 = vector.load %arg5[%c1_59, %c1_60, %c0_61, %c0_62] : memref<3x3x3x128xbf16, #tpu.memory_space<vmem>>, vector<1x1x3x128xbf16>
    %50 = vector.shape_cast %49 : vector<1x1x3x128xbf16> to vector<3x128xbf16>
    %cst_63 = arith.constant dense<0.000000e+00> : vector<256x128xf32>
    %51 = tpu.matmul %48, %50, %cst_63 {dimension_numbers = #tpu.dot_dimension_numbers<[1], [0], [0], [1], [0, 0, 1, 1], [], []>} : vector<256x3xbf16>, vector<3x128xbf16>, vector<256x128xf32> -> vector<256x128xf32>
    %c0_64 = arith.constant 0 : index
    %c0_65 = arith.constant 0 : index
    %52 = vector.load %arg10[%c0_64, %c0_65] : memref<256x128xf32, #tpu.memory_space<vmem>>, vector<256x128xf32>
    %53 = arith.addf %52, %51 : vector<256x128xf32>
    %c0_66 = arith.constant 0 : index
    %c0_67 = arith.constant 0 : index
    %54 = vector.load %arg10[%c0_66, %c0_67] : memref<256x128xf32, #tpu.memory_space<vmem>>, vector<256x128xf32>
    tpu.vector_store %arg10[%c0_66, %c0_67], %53 {strides = array<i32>} : memref<256x128xf32, #tpu.memory_space<vmem>>, vector<256x128xf32>,
    %c1_68 = arith.constant 1 : index
    %c2_69 = arith.constant 2 : index
    %c0_70 = arith.constant 0 : index
    %55 = vector.load %arg9[%c1_68, %c2_69, %c0_70] : memref<18x18x3xf32, #tpu.memory_space<vmem>>, vector<16x16x3xf32>
    %56 = vector.shape_cast %55 : vector<16x16x3xf32> to vector<256x3xf32>
    %57 = arith.truncf %56 : vector<256x3xf32> to vector<256x3xbf16>
    %c1_71 = arith.constant 1 : index
    %c2_72 = arith.constant 2 : index
    %c0_73 = arith.constant 0 : index
    %c0_74 = arith.constant 0 : index
    %58 = vector.load %arg5[%c1_71, %c2_72, %c0_73, %c0_74] : memref<3x3x3x128xbf16, #tpu.memory_space<vmem>>, vector<1x1x3x128xbf16>
    %59 = vector.shape_cast %58 : vector<1x1x3x128xbf16> to vector<3x128xbf16>
    %cst_75 = arith.constant dense<0.000000e+00> : vector<256x128xf32>
    %60 = tpu.matmul %57, %59, %cst_75 {dimension_numbers = #tpu.dot_dimension_numbers<[1], [0], [0], [1], [0, 0, 1, 1], [], []>} : vector<256x3xbf16>, vector<3x128xbf16>, vector<256x128xf32> -> vector<256x128xf32>
    %c0_76 = arith.constant 0 : index
    %c0_77 = arith.constant 0 : index
    %61 = vector.load %arg10[%c0_76, %c0_77] : memref<256x128xf32, #tpu.memory_space<vmem>>, vector<256x128xf32>
    %62 = arith.addf %61, %60 : vector<256x128xf32>
    %c0_78 = arith.constant 0 : index
    %c0_79 = arith.constant 0 : index
    %63 = vector.load %arg10[%c0_78, %c0_79] : memref<256x128xf32, #tpu.memory_space<vmem>>, vector<256x128xf32>
    tpu.vector_store %arg10[%c0_78, %c0_79], %62 {strides = array<i32>} : memref<256x128xf32, #tpu.memory_space<vmem>>, vector<256x128xf32>,
    %c2_80 = arith.constant 2 : index
    %c0_81 = arith.constant 0 : index
    %c0_82 = arith.constant 0 : index
    %64 = vector.load %arg9[%c2_80, %c0_81, %c0_82] : memref<18x18x3xf32, #tpu.memory_space<vmem>>, vector<16x16x3xf32>
    %65 = vector.shape_cast %64 : vector<16x16x3xf32> to vector<256x3xf32>
    %66 = arith.truncf %65 : vector<256x3xf32> to vector<256x3xbf16>
    %c2_83 = arith.constant 2 : index
    %c0_84 = arith.constant 0 : index
    %c0_85 = arith.constant 0 : index
    %c0_86 = arith.constant 0 : index
    %67 = vector.load %arg5[%c2_83, %c0_84, %c0_85, %c0_86] : memref<3x3x3x128xbf16, #tpu.memory_space<vmem>>, vector<1x1x3x128xbf16>
    %68 = vector.shape_cast %67 : vector<1x1x3x128xbf16> to vector<3x128xbf16>
    %cst_87 = arith.constant dense<0.000000e+00> : vector<256x128xf32>
    %69 = tpu.matmul %66, %68, %cst_87 {dimension_numbers = #tpu.dot_dimension_numbers<[1], [0], [0], [1], [0, 0, 1, 1], [], []>} : vector<256x3xbf16>, vector<3x128xbf16>, vector<256x128xf32> -> vector<256x128xf32>
    %c0_88 = arith.constant 0 : index
    %c0_89 = arith.constant 0 : index
    %70 = vector.load %arg10[%c0_88, %c0_89] : memref<256x128xf32, #tpu.memory_space<vmem>>, vector<256x128xf32>
    %71 = arith.addf %70, %69 : vector<256x128xf32>
    %c0_90 = arith.constant 0 : index
    %c0_91 = arith.constant 0 : index
    %72 = vector.load %arg10[%c0_90, %c0_91] : memref<256x128xf32, #tpu.memory_space<vmem>>, vector<256x128xf32>
    tpu.vector_store %arg10[%c0_90, %c0_91], %71 {strides = array<i32>} : memref<256x128xf32, #tpu.memory_space<vmem>>, vector<256x128xf32>,
    %c2_92 = arith.constant 2 : index
    %c1_93 = arith.constant 1 : index
    %c0_94 = arith.constant 0 : index
    %73 = vector.load %arg9[%c2_92, %c1_93, %c0_94] : memref<18x18x3xf32, #tpu.memory_space<vmem>>, vector<16x16x3xf32>
    %74 = vector.shape_cast %73 : vector<16x16x3xf32> to vector<256x3xf32>
    %75 = arith.truncf %74 : vector<256x3xf32> to vector<256x3xbf16>
    %c2_95 = arith.constant 2 : index
    %c1_96 = arith.constant 1 : index
    %c0_97 = arith.constant 0 : index
    %c0_98 = arith.constant 0 : index
    %76 = vector.load %arg5[%c2_95, %c1_96, %c0_97, %c0_98] : memref<3x3x3x128xbf16, #tpu.memory_space<vmem>>, vector<1x1x3x128xbf16>
    %77 = vector.shape_cast %76 : vector<1x1x3x128xbf16> to vector<3x128xbf16>
    %cst_99 = arith.constant dense<0.000000e+00> : vector<256x128xf32>
    %78 = tpu.matmul %75, %77, %cst_99 {dimension_numbers = #tpu.dot_dimension_numbers<[1], [0], [0], [1], [0, 0, 1, 1], [], []>} : vector<256x3xbf16>, vector<3x128xbf16>, vector<256x128xf32> -> vector<256x128xf32>
    %c0_100 = arith.constant 0 : index
    %c0_101 = arith.constant 0 : index
    %79 = vector.load %arg10[%c0_100, %c0_101] : memref<256x128xf32, #tpu.memory_space<vmem>>, vector<256x128xf32>
    %80 = arith.addf %79, %78 : vector<256x128xf32>
    %c0_102 = arith.constant 0 : index
    %c0_103 = arith.constant 0 : index
    %81 = vector.load %arg10[%c0_102, %c0_103] : memref<256x128xf32, #tpu.memory_space<vmem>>, vector<256x128xf32>
    tpu.vector_store %arg10[%c0_102, %c0_103], %80 {strides = array<i32>} : memref<256x128xf32, #tpu.memory_space<vmem>>, vector<256x128xf32>,
    %c2_104 = arith.constant 2 : index
    %c2_105 = arith.constant 2 : index
    %c0_106 = arith.constant 0 : index
    %82 = vector.load %arg9[%c2_104, %c2_105, %c0_106] : memref<18x18x3xf32, #tpu.memory_space<vmem>>, vector<16x16x3xf32>
    %83 = vector.shape_cast %82 : vector<16x16x3xf32> to vector<256x3xf32>
    %84 = arith.truncf %83 : vector<256x3xf32> to vector<256x3xbf16>
    %c2_107 = arith.constant 2 : index
    %c2_108 = arith.constant 2 : index
    %c0_109 = arith.constant 0 : index
    %c0_110 = arith.constant 0 : index
    %85 = vector.load %arg5[%c2_107, %c2_108, %c0_109, %c0_110] : memref<3x3x3x128xbf16, #tpu.memory_space<vmem>>, vector<1x1x3x128xbf16>
    %86 = vector.shape_cast %85 : vector<1x1x3x128xbf16> to vector<3x128xbf16>
    %cst_111 = arith.constant dense<0.000000e+00> : vector<256x128xf32>
    %87 = tpu.matmul %84, %86, %cst_111 {dimension_numbers = #tpu.dot_dimension_numbers<[1], [0], [0], [1], [0, 0, 1, 1], [], []>} : vector<256x3xbf16>, vector<3x128xbf16>, vector<256x128xf32> -> vector<256x128xf32>
    %c0_112 = arith.constant 0 : index
    %c0_113 = arith.constant 0 : index
    %88 = vector.load %arg10[%c0_112, %c0_113] : memref<256x128xf32, #tpu.memory_space<vmem>>, vector<256x128xf32>
    %89 = arith.addf %88, %87 : vector<256x128xf32>
    %c0_114 = arith.constant 0 : index
    %c0_115 = arith.constant 0 : index
    %90 = vector.load %arg10[%c0_114, %c0_115] : memref<256x128xf32, #tpu.memory_space<vmem>>, vector<256x128xf32>
    tpu.vector_store %arg10[%c0_114, %c0_115], %89 {strides = array<i32>} : memref<256x128xf32, #tpu.memory_space<vmem>>, vector<256x128xf32>,
    %c0_116 = arith.constant 0 : index
    %c0_117 = arith.constant 0 : index
    %91 = vector.load %arg10[%c0_116, %c0_117] : memref<256x128xf32, #tpu.memory_space<vmem>>, vector<256x128xf32>
    %c0_118 = arith.constant 0 : index
    %c0_119 = arith.constant 0 : index
    %92 = vector.load %arg6[%c0_118, %c0_119] : memref<1x128xf32, #tpu.memory_space<vmem>>, vector<1x128xf32>
    %93 = vector.broadcast %92 : vector<1x128xf32> to vector<256x128xf32>
    %94 = arith.mulf %91, %93 : vector<256x128xf32>
    %c0_120 = arith.constant 0 : index
    %c0_121 = arith.constant 0 : index
    %95 = vector.load %arg7[%c0_120, %c0_121] : memref<1x128xf32, #tpu.memory_space<vmem>>, vector<1x128xf32>
    %96 = vector.broadcast %95 : vector<1x128xf32> to vector<256x128xf32>
    %97 = arith.addf %94, %96 : vector<256x128xf32>
    %cst_122 = arith.constant 0.000000e+00 : f32
    %98 = vector.broadcast %cst_122 : f32 to vector<256x128xf32>
    %99 = arith.maximumf %97, %98 : vector<256x128xf32>
    %100 = vector.shape_cast %99 : vector<256x128xf32> to vector<128x2x128xf32>
    %cst_123 = arith.constant dense<0xFF800000> : vector<128x128xf32>
    %101 = vector.multi_reduction <maximumf>, %100, %cst_123 [1] : vector<128x2x128xf32> to vector<128x128xf32>
    %102 = vector.shape_cast %101 : vector<128x128xf32> to vector<8x2x8x128xf32>
    %cst_124 = arith.constant dense<0xFF800000> : vector<8x8x128xf32>
    %103 = vector.multi_reduction <maximumf>, %102, %cst_124 [1] : vector<8x2x8x128xf32> to vector<8x8x128xf32>
    %104 = arith.truncf %103 : vector<8x8x128xf32> to vector<8x8x128xbf16>
    %c0_125 = arith.constant 0 : index
    %c0_126 = arith.constant 0 : index
    %c0_127 = arith.constant 0 : index
    %c0_128 = arith.constant 0 : index
    %105 = vector.load %arg8[%c0_125, %c0_126, %c0_127, %c0_128] : memref<1x8x8x128xbf16, #tpu.memory_space<vmem>>, vector<1x8x8x128xbf16>
    %106 = vector.shape_cast %105 : vector<1x8x8x128xbf16> to vector<8x8x128xbf16>
    %107 = vector.shape_cast %104 : vector<8x8x128xbf16> to vector<1x8x8x128xbf16>
    tpu.vector_store %arg8[%c0_125, %c0_126, %c0_127, %c0_128], %107 {strides = array<i32>} : memref<1x8x8x128xbf16, #tpu.memory_space<vmem>>, vector<1x8x8x128xbf16>,
    return
  }
  func.func @transform_0(%arg0: i32, %arg1: i32) -> (i32, i32, i32, i32) {
    %c0_i32 = arith.constant 0 : i32
    %c0_i32_0 = arith.constant 0 : i32
    %c0_i32_1 = arith.constant 0 : i32
    return %arg0, %arg1, %c0_i32, %c0_i32_0 : i32, i32, i32, i32
  }
  func.func @transform_1(%arg0: i32, %arg1: i32) -> (i32, i32, i32, i32) {
    %c16_i32 = arith.constant 16 : i32
    %0 = arith.muli %arg1, %c16_i32 : i32
    %c1_i32 = arith.constant 1 : i32
    %1 = arith.subi %0, %c1_i32 : i32
    %c0_i32 = arith.constant 0 : i32
    %2 = arith.maxsi %1, %c0_i32 : i32
    %c0_i32_0 = arith.constant 0 : i32
    %c0_i32_1 = arith.constant 0 : i32
    %c0_i32_2 = arith.constant 0 : i32
    return %arg0, %2, %c0_i32_0, %c0_i32_1 : i32, i32, i32, i32
  }
  func.func @transform_2(%arg0: i32, %arg1: i32) -> (i32, i32, i32, i32) {
    %c16_i32 = arith.constant 16 : i32
    %0 = arith.muli %arg1, %c16_i32 : i32
    %c16_i32_0 = arith.constant 16 : i32
    %1 = arith.addi %0, %c16_i32_0 : i32
    %c15_i32 = arith.constant 15 : i32
    %2 = arith.minsi %1, %c15_i32 : i32
    %c0_i32 = arith.constant 0 : i32
    %c0_i32_1 = arith.constant 0 : i32
    %c0_i32_2 = arith.constant 0 : i32
    return %arg0, %2, %c0_i32, %c0_i32_1 : i32, i32, i32, i32
  }
  func.func @transform_3(%arg0: i32, %arg1: i32) -> (i32, i32, i32, i32) {
    %c0_i32 = arith.constant 0 : i32
    %c0_i32_0 = arith.constant 0 : i32
    %c0_i32_1 = arith.constant 0 : i32
    %c0_i32_2 = arith.constant 0 : i32
    %c0_i32_3 = arith.constant 0 : i32
    return %c0_i32, %c0_i32_0, %c0_i32_1, %c0_i32_2 : i32, i32, i32, i32
  }
  func.func @transform_4(%arg0: i32, %arg1: i32) -> (i32, i32) {
    %c0_i32 = arith.constant 0 : i32
    %c0_i32_0 = arith.constant 0 : i32
    %c0_i32_1 = arith.constant 0 : i32
    return %c0_i32, %c0_i32_0 : i32, i32
  }
  func.func @transform_5(%arg0: i32, %arg1: i32) -> (i32, i32) {
    %c0_i32 = arith.constant 0 : i32
    %c0_i32_0 = arith.constant 0 : i32
    %c0_i32_1 = arith.constant 0 : i32
    return %c0_i32, %c0_i32_0 : i32, i32
  }
  func.func @transform_6(%arg0: i32, %arg1: i32) -> (i32, i32, i32, i32) {
    %c0_i32 = arith.constant 0 : i32
    %c0_i32_0 = arith.constant 0 : i32
    %c0_i32_1 = arith.constant 0 : i32
    return %arg0, %arg1, %c0_i32, %c0_i32_0 : i32, i32, i32, i32
  }
}

</mosaic_0001>

<llo_original>
// kernel: tpu_custom_call.1
$region0: #{tpu_custom_call.1}
  #allocation0 [shape = 'u32[]', space=smem, size = 0x4, offset = 0x4, fixed_abs, tag = 'smem constant byte address 0x4 - core index']
  #allocation1 [shape = 'u32[72,128]{1,0:T(1,128)}', space=vmem, size = 0x9000, scoped, tag = 'internal scratch']
  #allocation2 [shape = 'f32[18,18,3]{2,1,0:T(8,128)}', space=vmem, size = 0x36000, scoped, tag = 'scratch operand']
  #allocation3 [shape = 'f32[256,128]{1,0:T(8,128)}', space=vmem, size = 0x20000, scoped, tag = 'scratch operand']
  %s0 = inlined_call_operand.vmem [shape: bf16[2,16,16,3], index: 0, kind: input, shape index: {}]
  %s1 = inlined_call_operand.vmem [shape: bf16[2,16,16,3], index: 1, kind: input, shape index: {}]
  %s2 = inlined_call_operand.vmem [shape: bf16[2,16,16,3], index: 2, kind: input, shape index: {}]
  %s3 = inlined_call_operand.vmem [shape: bf16[3,3,3,128], index: 3, kind: input, shape index: {}]
  %s4 = inlined_call_operand.vmem [shape: f32[1,128], index: 4, kind: input, shape index: {}]
  %s5 = inlined_call_operand.vmem [shape: f32[1,128], index: 5, kind: input, shape index: {}]
  %s6 = inlined_call_operand.hbm [shape: bf16[2,8,8,128], index: 6, kind: output, shape index: {}]
  %s7 = sld [smem:[#allocation0]]
  $region65: #{tpu_custom_call.1} parent=0
    _
  %s9 = ssub.s32 1, %s7
  %s10 = scalar_select 0, %s9, %s7
  $region1: #{tpu_custom_call.1} parent=0
    #allocation4 [shape = 'u8[32768]{0}', space=vmem, size = 0x8000, scoped, tag = 'output window, operand 0']
    #allocation5 [shape = 's32[2]{0}', space=sflag, size = 0x8, scoped, tag = 'scoped memory for tpu_custom_call.1']
    %11 = vsyncpa [#allocation5], 0
    %s12 = scalar_lea.sflag [#allocation5], 1
    %13 = vsyncpa %s12, 0
    loop: start=0, step=1, limit=4
    $region2: #{tpu_custom_call.1} parent=1 // loop_pre_header
      _
    $region3: #{tpu_custom_call.1} parent=1 // loop_header
      %s15 = sphi 0, %s19
      %p16 = scmp.ge.s32.totalorder %s15, 4
      %s22 = sphi 0, %s34
      %s23 = sphi 0, %s30
      %s24 = sphi 0, %s22
      %s25 = sphi 0, %s23
      %s26 = sphi 0, %s24
      %s27 = sphi 0, %s25
      %s39 = sphi 0, %s41
      %s42 = sphi 0, %s39
      %s43 = sphi 0, %s42
      %s59 = sphi 0, %s43
      %s75 = sphi 0, %s77
      %s78 = sphi 0, %s75
      %s79 = sphi 0, %s78
      %s95 = sphi 0, %s79
      %s111 = sphi 0, %s113
      %s114 = sphi 0, %s111
      %s115 = sphi 0, %s114
      %s131 = sphi 0, %s115
      %s135 = sphi 0, %s135
      %s137 = sphi 0, %s135
      %s138 = sphi 0, %s137
      %s152 = sphi 0, %s138
      %s156 = sphi 0, %s156
      %s158 = sphi 0, %s156
      %s159 = sphi 0, %s158
      %s173 = sphi 0, %s159
      %s177 = sphi 0, %s177
      %s179 = sphi 0, %s177
      %s180 = sphi 0, %s179
      %s194 = sphi 0, %s180
      %s202 = sphi 0, %s204
      %s205 = sphi 0, %s202
      %s206 = sphi 0, %s205
      %s222 = sphi 0, %s206
    $region4: #{tpu_custom_call.1} parent=1 // loop_header_branch
      %18 = sbr.rel (%p16) target = $region8
    $region5: #{tpu_custom_call.1} parent=1 // loop_body
      %s20 = ssub.s32 %s15, 1
      %s21 = ssub.s32 %s15, 2
      %s28 = sadd.s32 1, %s23
      %p29 = scmp.ge.s32.totalorder %s28, 1
      %s30 = scalar_select %p29, 0, %s28
      %s31 = sadd.s32 1, %s22
      %s32 = scalar_select %p29, %s31, %s22
      %p33 = scmp.ge.s32.totalorder %s32, 2
      %s34 = scalar_select %p33, 0, %s32
      %s35 = ssub.s32 %s22, %s34
      %s36 = ssub.s32 %s23, %s30
      %s37 = sor.u32 %s35, %s36
      %p38 = scmp.eq.s32.totalorder %s37, 0
      %s40 = sadd.s32 %s39, 1
      %s41 = scalar_select %p38, %s39, %s40
      %p44 = pneg %p38
      %p45 = scmp.eq.s32.totalorder %s15, 1
      %p46 = por %p44, %p45
      %p47 = scmp.ne.s32.totalorder %s39, %s42
      %p48 = scmp.eq.s32.totalorder %s15, 0
      %p49 = por %p47, %p48
      %p50 = scmp.ne.s32.totalorder %s39, %s42
      %p51 = scmp.eq.s32.totalorder %s20, 1
      %p52 = por %p50, %p51
      %p53 = scmp.ne.s32.totalorder %s42, %s43
      %p54 = scmp.eq.s32.totalorder %s20, 0
      %p55 = por %p53, %p54
      %p56 = scmp.ne.s32.totalorder %s42, %s43
      %p57 = scmp.eq.s32.totalorder %s21, 1
      %p58 = por %p56, %p57
      %p60 = scmp.ne.s32.totalorder %s43, %s59
      %p61 = scmp.eq.s32.totalorder %s21, 0
      %p62 = por %p60, %p61
      %s63 = smul.u32 %s23, 16
      %s64 = ssub.s32 %s63, 1
      %p65 = scmp.gt.s32.totalorder %s64, 0
      %s66 = scalar_select %p65, %s64, 0
      %s67 = smul.u32 %s30, 16
      %s68 = ssub.s32 %s67, 1
      %p69 = scmp.gt.s32.totalorder %s68, 0
      %s70 = scalar_select %p69, %s68, 0
      %s71 = ssub.s32 %s22, %s34
      %s72 = ssub.s32 %s66, %s70
      %s73 = sor.u32 %s71, %s72
      %p74 = scmp.eq.s32.totalorder %s73, 0
      %s76 = sadd.s32 %s75, 1
      %s77 = scalar_select %p74, %s75, %s76
      %p80 = pneg %p74
      %p81 = scmp.eq.s32.totalorder %s15, 1
      %p82 = por %p80, %p81
      %p83 = scmp.ne.s32.totalorder %s75, %s78
      %p84 = scmp.eq.s32.totalorder %s15, 0
      %p85 = por %p83, %p84
      %p86 = scmp.ne.s32.totalorder %s75, %s78
      %p87 = scmp.eq.s32.totalorder %s20, 1
      %p88 = por %p86, %p87
      %p89 = scmp.ne.s32.totalorder %s78, %s79
      %p90 = scmp.eq.s32.totalorder %s20, 0
      %p91 = por %p89, %p90
      %p92 = scmp.ne.s32.totalorder %s78, %s79
      %p93 = scmp.eq.s32.totalorder %s21, 1
      %p94 = por %p92, %p93
      %p96 = scmp.ne.s32.totalorder %s79, %s95
      %p97 = scmp.eq.s32.totalorder %s21, 0
      %p98 = por %p96, %p97
      %s99 = smul.u32 %s23, 16
      %s100 = sadd.s32 %s99, 16
      %p101 = scmp.lt.s32.totalorder %s100, 15
      %s102 = scalar_select %p101, %s100, 15
      %s103 = smul.u32 %s30, 16
      %s104 = sadd.s32 %s103, 16
      %p105 = scmp.lt.s32.totalorder %s104, 15
      %s106 = scalar_select %p105, %s104, 15
      %s107 = ssub.s32 %s22, %s34
      %s108 = ssub.s32 %s102, %s106
      %s109 = sor.u32 %s107, %s108
      %p110 = scmp.eq.s32.totalorder %s109, 0
      %s112 = sadd.s32 %s111, 1
      %s113 = scalar_select %p110, %s111, %s112
      %p116 = pneg %p110
      %p117 = scmp.eq.s32.totalorder %s15, 1
      %p118 = por %p116, %p117
      %p119 = scmp.ne.s32.totalorder %s111, %s114
      %p120 = scmp.eq.s32.totalorder %s15, 0
      %p121 = por %p119, %p120
      %p122 = scmp.ne.s32.totalorder %s111, %s114
      %p123 = scmp.eq.s32.totalorder %s20, 1
      %p124 = por %p122, %p123
      %p125 = scmp.ne.s32.totalorder %s114, %s115
      %p126 = scmp.eq.s32.totalorder %s20, 0
      %p127 = por %p125, %p126
      %p128 = scmp.ne.s32.totalorder %s114, %s115
      %p129 = scmp.eq.s32.totalorder %s21, 1
      %p130 = por %p128, %p129
      %p132 = scmp.ne.s32.totalorder %s115, %s131
      %p133 = scmp.eq.s32.totalorder %s21, 0
      %p134 = por %p132, %p133
      %s136 = sadd.s32 %s135, 1
      %p139 = scmp.eq.s32.totalorder %s15, 1
      %p140 = scmp.ne.s32.totalorder %s135, %s137
      %p141 = scmp.eq.s32.totalorder %s15, 0
      %p142 = por %p140, %p141
      %p143 = scmp.ne.s32.totalorder %s135, %s137
      %p144 = scmp.eq.s32.totalorder %s20, 1
      %p145 = por %p143, %p144
      %p146 = scmp.ne.s32.totalorder %s137, %s138
      %p147 = scmp.eq.s32.totalorder %s20, 0
      %p148 = por %p146, %p147
      %p149 = scmp.ne.s32.totalorder %s137, %s138
      %p150 = scmp.eq.s32.totalorder %s21, 1
      %p151 = por %p149, %p150
      %p153 = scmp.ne.s32.totalorder %s138, %s152
      %p154 = scmp.eq.s32.totalorder %s21, 0
      %p155 = por %p153, %p154
      %s157 = sadd.s32 %s156, 1
      %p160 = scmp.eq.s32.totalorder %s15, 1
      %p161 = scmp.ne.s32.totalorder %s156, %s158
      %p162 = scmp.eq.s32.totalorder %s15, 0
      %p163 = por %p161, %p162
      %p164 = scmp.ne.s32.totalorder %s156, %s158
      %p165 = scmp.eq.s32.totalorder %s20, 1
      %p166 = por %p164, %p165
      %p167 = scmp.ne.s32.totalorder %s158, %s159
      %p168 = scmp.eq.s32.totalorder %s20, 0
      %p169 = por %p167, %p168
      %p170 = scmp.ne.s32.totalorder %s158, %s159
      %p171 = scmp.eq.s32.totalorder %s21, 1
      %p172 = por %p170, %p171
      %p174 = scmp.ne.s32.totalorder %s159, %s173
      %p175 = scmp.eq.s32.totalorder %s21, 0
      %p176 = por %p174, %p175
      %s178 = sadd.s32 %s177, 1
      %p181 = scmp.eq.s32.totalorder %s15, 1
      %p182 = scmp.ne.s32.totalorder %s177, %s179
      %p183 = scmp.eq.s32.totalorder %s15, 0
      %p184 = por %p182, %p183
      %p185 = scmp.ne.s32.totalorder %s177, %s179
      %p186 = scmp.eq.s32.totalorder %s20, 1
      %p187 = por %p185, %p186
      %p188 = scmp.ne.s32.totalorder %s179, %s180
      %p189 = scmp.eq.s32.totalorder %s20, 0
      %p190 = por %p188, %p189
      %p191 = scmp.ne.s32.totalorder %s179, %s180
      %p192 = scmp.eq.s32.totalorder %s21, 1
      %p193 = por %p191, %p192
      %p195 = scmp.ne.s32.totalorder %s180, %s194
      %p196 = scmp.eq.s32.totalorder %s21, 0
      %p197 = por %p195, %p196
      %s198 = ssub.s32 %s22, %s34
      %s199 = ssub.s32 %s23, %s30
      %s200 = sor.u32 %s198, %s199
      %p201 = scmp.eq.s32.totalorder %s200, 0
      %s203 = sadd.s32 %s202, 1
      %s204 = scalar_select %p201, %s202, %s203
      %p207 = pneg %p201
      %p208 = scmp.eq.s32.totalorder %s15, 1
      %p209 = por %p207, %p208
      %p210 = scmp.ne.s32.totalorder %s202, %s205
      %p211 = scmp.eq.s32.totalorder %s15, 0
      %p212 = por %p210, %p211
      %p213 = scmp.ne.s32.totalorder %s202, %s205
      %p214 = scmp.eq.s32.totalorder %s20, 1
      %p215 = por %p213, %p214
      %p216 = scmp.ne.s32.totalorder %s205, %s206
      %p217 = scmp.eq.s32.totalorder %s20, 0
      %p218 = por %p216, %p217
      %p219 = scmp.ne.s32.totalorder %s205, %s206
      %p220 = scmp.eq.s32.totalorder %s21, 1
      %p221 = por %p219, %p220
      %p223 = scmp.ne.s32.totalorder %s206, %s222
      %p224 = scmp.eq.s32.totalorder %s21, 0
      %p225 = por %p223, %p224
      %p226 = scmp.le.s32.totalorder 1, %s15
      %p227 = scmp.lt.s32.totalorder %s15, 3
      %p228 = pnand %p226, %p227
      %p229 = pneg %p228
      // Predicated region
      $region9: #{tpu_custom_call.1} parent=5 // pred_check
        _
      $region10: #{tpu_custom_call.1} parent=5 // pred_check_branch
        %231 = sbr.rel (%p228) target = $region12
      $region11: #{tpu_custom_call.1} parent=5 // pred_region
        %s232 = ssub.s32 %s15, 1
        // Predicated region
        $region13: #{tpu_custom_call.1} parent=11 // pred_check
          %p233 = pneg %p148
        $region14: #{tpu_custom_call.1} parent=11 // pred_check_branch
          %235 = sbr.rel (%p233) target = $region16
        $region15: #{tpu_custom_call.1} parent=11 // pred_region
          _
        $region16: #{tpu_custom_call.1} parent=11 // pred_fallthru
          _
        // Predicated region
        $region17: #{tpu_custom_call.1} parent=11 // pred_check
          %p236 = pneg %p169
        $region18: #{tpu_custom_call.1} parent=11 // pred_check_branch
          %238 = sbr.rel (%p236) target = $region20
        $region19: #{tpu_custom_call.1} parent=11 // pred_region
          _
        $region20: #{tpu_custom_call.1} parent=11 // pred_fallthru
          _
        // Predicated region
        $region21: #{tpu_custom_call.1} parent=11 // pred_check
          %p239 = pneg %p190
        $region22: #{tpu_custom_call.1} parent=11 // pred_check_branch
          %241 = sbr.rel (%p239) target = $region24
        $region23: #{tpu_custom_call.1} parent=11 // pred_region
          _
        $region24: #{tpu_custom_call.1} parent=11 // pred_fallthru
          _
      $region12: #{tpu_custom_call.1} parent=5 // pred_fallthru
        _
      %p242 = scmp.lt.s32.totalorder %s15, 2
      // Predicated region
      $region25: #{tpu_custom_call.1} parent=5 // pred_check
        %p243 = pneg %p242
      $region26: #{tpu_custom_call.1} parent=5 // pred_check_branch
        %245 = sbr.rel (%p243) target = $region28
      $region27: #{tpu_custom_call.1} parent=5 // pred_region
        // Predicated region
        $region29: #{tpu_custom_call.1} parent=27 // pred_check
          %p246 = pneg %p49
        $region30: #{tpu_custom_call.1} parent=27 // pred_check_branch
          %248 = sbr.rel (%p246) target = $region32
        $region31: #{tpu_custom_call.1} parent=27 // pred_region
          %s249 = smul.u32 16, %s23
          %p250 = scmp.lt.s32.totalorder %s22, 1
          %s251 = scalar_select %p250, %s22, 1
          %p252 = scmp.lt.s32.totalorder %s249, 15
          %s253 = scalar_select %p252, %s249, 15
          %s254 = smul.addr %s253, 2
          %s255 = smul.addr %s251, 32
          %s256 = sadd.s32 %s254, %s255
          %s257 = smul.addr %s256, 4
          %s258 = scalar_lea.vmem %s0, %s257
          %s259 = smul.u32 16, %s23
        $region32: #{tpu_custom_call.1} parent=27 // pred_fallthru
          _
        // Predicated region
        $region33: #{tpu_custom_call.1} parent=27 // pred_check
          %p260 = pneg %p85
        $region34: #{tpu_custom_call.1} parent=27 // pred_check_branch
          %262 = sbr.rel (%p260) target = $region36
        $region35: #{tpu_custom_call.1} parent=27 // pred_region
          %s263 = smul.u32 %s23, 16
          %s264 = ssub.s32 %s263, 1
          %p265 = scmp.gt.s32.totalorder %s264, 0
          %s266 = scalar_select %p265, %s264, 0
          %p267 = scmp.lt.s32.totalorder %s22, 1
          %s268 = scalar_select %p267, %s22, 1
          %p269 = scmp.lt.s32.totalorder %s266, 15
          %s270 = scalar_select %p269, %s266, 15
          %s271 = smul.addr %s270, 2
          %s272 = smul.addr %s268, 32
          %s273 = sadd.s32 %s271, %s272
          %s274 = smul.addr %s273, 4
          %s275 = scalar_lea.vmem %s1, %s274
          %s276 = smul.u32 %s23, 16
          %s277 = ssub.s32 %s276, 1
          %p278 = scmp.gt.s32.totalorder %s277, 0
          %s279 = scalar_select %p278, %s277, 0
        $region36: #{tpu_custom_call.1} parent=27 // pred_fallthru
          _
        // Predicated region
        $region37: #{tpu_custom_call.1} parent=27 // pred_check
          %p280 = pneg %p121
        $region38: #{tpu_custom_call.1} parent=27 // pred_check_branch
          %282 = sbr.rel (%p280) target = $region40
        $region39: #{tpu_custom_call.1} parent=27 // pred_region
          %s283 = smul.u32 %s23, 16
          %s284 = sadd.s32 %s283, 16
          %p285 = scmp.lt.s32.totalorder %s284, 15
          %s286 = scalar_select %p285, %s284, 15
          %p287 = scmp.lt.s32.totalorder %s22, 1
          %s288 = scalar_select %p287, %s22, 1
          %p289 = scmp.lt.s32.totalorder %s286, 15
          %s290 = scalar_select %p289, %s286, 15
          %s291 = smul.addr %s290, 2
          %s292 = smul.addr %s288, 32
          %s293 = sadd.s32 %s291, %s292
          %s294 = smul.addr %s293, 4
          %s295 = scalar_lea.vmem %s2, %s294
          %s296 = smul.u32 %s23, 16
          %s297 = sadd.s32 %s296, 16
          %p298 = scmp.lt.s32.totalorder %s297, 15
          %s299 = scalar_select %p298, %s297, 15
        $region40: #{tpu_custom_call.1} parent=27 // pred_fallthru
          _
      $region28: #{tpu_custom_call.1} parent=5 // pred_fallthru
        _
      %p300 = scmp.le.s32.totalorder 1, %s15
      %p301 = scmp.lt.s32.totalorder %s15, 3
      %p302 = pnand %p300, %p301
      %p303 = pneg %p302
      // Predicated region
      $region41: #{tpu_custom_call.1} parent=5 // pred_check
        _
      $region42: #{tpu_custom_call.1} parent=5 // pred_check_branch
        %305 = sbr.rel (%p302) target = $region44
      $region43: #{tpu_custom_call.1} parent=5 // pred_region
        %s306 = ssub.s32 %s15, 1
        %s307 = smul.u32 16, %s25
        %p308 = scmp.lt.s32.totalorder %s24, 1
        %s309 = scalar_select %p308, %s24, 1
        %p310 = scmp.lt.s32.totalorder %s307, 15
        %s311 = scalar_select %p310, %s307, 15
        %s312 = smul.addr %s311, 2
        %s313 = smul.addr %s309, 32
        %s314 = sadd.s32 %s312, %s313
        %s315 = smul.addr %s314, 4
        %s316 = scalar_lea.vmem %s0, %s315
        %p317 = pneg %p55
        %p318 = pneg %p52
        %s319 = smul.u32 %s25, 16
        %s320 = ssub.s32 %s319, 1
        %p321 = scmp.gt.s32.totalorder %s320, 0
        %s322 = scalar_select %p321, %s320, 0
        %p323 = scmp.lt.s32.totalorder %s24, 1
        %s324 = scalar_select %p323, %s24, 1
        %p325 = scmp.lt.s32.totalorder %s322, 15
        %s326 = scalar_select %p325, %s322, 15
        %s327 = smul.addr %s326, 2
        %s328 = smul.addr %s324, 32
        %s329 = sadd.s32 %s327, %s328
        %s330 = smul.addr %s329, 4
        %s331 = scalar_lea.vmem %s1, %s330
        %p332 = pneg %p91
        %p333 = pneg %p88
        %s334 = smul.u32 %s25, 16
        %s335 = sadd.s32 %s334, 16
        %p336 = scmp.lt.s32.totalorder %s335, 15
        %s337 = scalar_select %p336, %s335, 15
        %p338 = scmp.lt.s32.totalorder %s24, 1
        %s339 = scalar_select %p338, %s24, 1
        %p340 = scmp.lt.s32.totalorder %s337, 15
        %s341 = scalar_select %p340, %s337, 15
        %s342 = smul.addr %s341, 2
        %s343 = smul.addr %s339, 32
        %s344 = sadd.s32 %s342, %s343
        %s345 = smul.addr %s344, 4
        %s346 = scalar_lea.vmem %s2, %s345
        %p347 = pneg %p127
        %p348 = pneg %p124
        %p349 = pneg %p148
        %p350 = pneg %p145
        %p351 = pneg %p169
        %p352 = pneg %p166
        %p353 = pneg %p190
        %p354 = pneg %p187
        %p355 = pneg %p218
        %p356 = pneg %p215
        %s357 = sand.u32 %s205, 1
        %s358 = scalar_lea.sflag [#allocation5], %s357
        %s359 = sand.u32 %s205, 1
        %s360 = smul.addr %s359, 32
        %s361 = scalar_lea.vmem [#allocation4], %s360
        %s362 = smul.u32 16, %s25
        %p363 = scmp.lt.s32.totalorder %s24, 1
        %s364 = scalar_select %p363, %s24, 1
        %p365 = scmp.lt.s32.totalorder %s362, 15
        %s366 = scalar_select %p365, %s362, 15
        %s367 = smul.addr %s366, 2
        %s368 = smul.addr %s364, 32
        %s369 = sadd.s32 %s367, %s368
        %s370 = smul.addr %s369, 4
        %s371 = scalar_lea.vmem %s0, %s370
        %s372 = smul.u32 16, %s25
        %s373 = smul.u32 %s25, 16
        %s374 = ssub.s32 %s373, 1
        %p375 = scmp.gt.s32.totalorder %s374, 0
        %s376 = scalar_select %p375, %s374, 0
        %p377 = scmp.lt.s32.totalorder %s24, 1
        %s378 = scalar_select %p377, %s24, 1
        %p379 = scmp.lt.s32.totalorder %s376, 15
        %s380 = scalar_select %p379, %s376, 15
        %s381 = smul.addr %s380, 2
        %s382 = smul.addr %s378, 32
        %s383 = sadd.s32 %s381, %s382
        %s384 = smul.addr %s383, 4
        %s385 = scalar_lea.vmem %s1, %s384
        %s386 = smul.u32 %s25, 16
        %s387 = ssub.s32 %s386, 1
        %p388 = scmp.gt.s32.totalorder %s387, 0
        %s389 = scalar_select %p388, %s387, 0
        %s390 = smul.u32 %s25, 16
        %s391 = sadd.s32 %s390, 16
        %p392 = scmp.lt.s32.totalorder %s391, 15
        %s393 = scalar_select %p392, %s391, 15
        %p394 = scmp.lt.s32.totalorder %s24, 1
        %s395 = scalar_select %p394, %s24, 1
        %p396 = scmp.lt.s32.totalorder %s393, 15
        %s397 = scalar_select %p396, %s393, 15
        %s398 = smul.addr %s397, 2
        %s399 = smul.addr %s395, 32
        %s400 = sadd.s32 %s398, %s399
        %s401 = smul.addr %s400, 4
        %s402 = scalar_lea.vmem %s2, %s401
        %s403 = smul.u32 %s25, 16
        %s404 = sadd.s32 %s403, 16
        %p405 = scmp.lt.s32.totalorder %s404, 15
        %s406 = scalar_select %p405, %s404, 15
        %s407 = smul.u32 8, %s25
        %vm409 = vcmask 23552
        %410 = vst.msk [vmem:[#allocation2] sm:$0xff] %vm409, 0.0
        %411 = vst.msk [vmem:[#allocation2 + $0x8] sm:$0xff] %vm409, 0.0
        %vm412 = vcmask 17408
        %413 = vst.msk [vmem:[#allocation2 + $0x10] sm:$0x3] %vm412, 0.0
        %414 = vst.msk [vmem:[#allocation2 + $0x18] sm:$0xff] %vm409, 0.0
        %415 = vst.msk [vmem:[#allocation2 + $0x20] sm:$0xff] %vm409, 0.0
        %416 = vst.msk [vmem:[#allocation2 + $0x28] sm:$0x3] %vm412, 0.0
        %417 = vst.msk [vmem:[#allocation2 + $0x30] sm:$0xff] %vm409, 0.0
        %418 = vst.msk [vmem:[#allocation2 + $0x38] sm:$0xff] %vm409, 0.0
        %419 = vst.msk [vmem:[#allocation2 + $0x40] sm:$0x3] %vm412, 0.0
        %420 = vst.msk [vmem:[#allocation2 + $0x48] sm:$0xff] %vm409, 0.0
        %421 = vst.msk [vmem:[#allocation2 + $0x50] sm:$0xff] %vm409, 0.0
        %422 = vst.msk [vmem:[#allocation2 + $0x58] sm:$0x3] %vm412, 0.0
        %423 = vst.msk [vmem:[#allocation2 + $0x60] sm:$0xff] %vm409, 0.0
        %424 = vst.msk [vmem:[#allocation2 + $0x68] sm:$0xff] %vm409, 0.0
        %425 = vst.msk [vmem:[#allocation2 + $0x70] sm:$0x3] %vm412, 0.0
        %426 = vst.msk [vmem:[#allocation2 + $0x78] sm:$0xff] %vm409, 0.0
        %427 = vst.msk [vmem:[#allocation2 + $0x80] sm:$0xff] %vm409, 0.0
        %428 = vst.msk [vmem:[#allocation2 + $0x88] sm:$0x3] %vm412, 0.0
        %429 = vst.msk [vmem:[#allocation2 + $0x90] sm:$0xff] %vm409, 0.0
        %430 = vst.msk [vmem:[#allocation2 + $0x98] sm:$0xff] %vm409, 0.0
        %431 = vst.msk [vmem:[#allocation2 + $0xa0] sm:$0x3] %vm412, 0.0
        %432 = vst.msk [vmem:[#allocation2 + $0xa8] sm:$0xff] %vm409, 0.0
        %433 = vst.msk [vmem:[#allocation2 + $0xb0] sm:$0xff] %vm409, 0.0
        %434 = vst.msk [vmem:[#allocation2 + $0xb8] sm:$0x3] %vm412, 0.0
        %435 = vst.msk [vmem:[#allocation2 + $0xc0] sm:$0xff] %vm409, 0.0
        %436 = vst.msk [vmem:[#allocation2 + $0xc8] sm:$0xff] %vm409, 0.0
        %437 = vst.msk [vmem:[#allocation2 + $0xd0] sm:$0x3] %vm412, 0.0
        %438 = vst.msk [vmem:[#allocation2 + $0xd8] sm:$0xff] %vm409, 0.0
        %439 = vst.msk [vmem:[#allocation2 + $0xe0] sm:$0xff] %vm409, 0.0
        %440 = vst.msk [vmem:[#allocation2 + $0xe8] sm:$0x3] %vm412, 0.0
        %441 = vst.msk [vmem:[#allocation2 + $0xf0] sm:$0xff] %vm409, 0.0
        %442 = vst.msk [vmem:[#allocation2 + $0xf8] sm:$0xff] %vm409, 0.0
        %443 = vst.msk [vmem:[#allocation2 + $0x100] sm:$0x3] %vm412, 0.0
        %444 = vst.msk [vmem:[#allocation2 + $0x108] sm:$0xff] %vm409, 0.0
        %445 = vst.msk [vmem:[#allocation2 + $0x110] sm:$0xff] %vm409, 0.0
        %446 = vst.msk [vmem:[#allocation2 + $0x118] sm:$0x3] %vm412, 0.0
        %447 = vst.msk [vmem:[#allocation2 + $0x120] sm:$0xff] %vm409, 0.0
        %448 = vst.msk [vmem:[#allocation2 + $0x128] sm:$0xff] %vm409, 0.0
        %449 = vst.msk [vmem:[#allocation2 + $0x130] sm:$0x3] %vm412, 0.0
        %450 = vst.msk [vmem:[#allocation2 + $0x138] sm:$0xff] %vm409, 0.0
        %451 = vst.msk [vmem:[#allocation2 + $0x140] sm:$0xff] %vm409, 0.0
        %452 = vst.msk [vmem:[#allocation2 + $0x148] sm:$0x3] %vm412, 0.0
        %453 = vst.msk [vmem:[#allocation2 + $0x150] sm:$0xff] %vm409, 0.0
        %454 = vst.msk [vmem:[#allocation2 + $0x158] sm:$0xff] %vm409, 0.0
        %455 = vst.msk [vmem:[#allocation2 + $0x160] sm:$0x3] %vm412, 0.0
        %456 = vst.msk [vmem:[#allocation2 + $0x168] sm:$0xff] %vm409, 0.0
        %457 = vst.msk [vmem:[#allocation2 + $0x170] sm:$0xff] %vm409, 0.0
        %458 = vst.msk [vmem:[#allocation2 + $0x178] sm:$0x3] %vm412, 0.0
        %459 = vst.msk [vmem:[#allocation2 + $0x180] sm:$0xff] %vm409, 0.0
        %460 = vst.msk [vmem:[#allocation2 + $0x188] sm:$0xff] %vm409, 0.0
        %461 = vst.msk [vmem:[#allocation2 + $0x190] sm:$0x3] %vm412, 0.0
        %462 = vst.msk [vmem:[#allocation2 + $0x198] sm:$0xff] %vm409, 0.0
        %463 = vst.msk [vmem:[#allocation2 + $0x1a0] sm:$0xff] %vm409, 0.0
        %464 = vst.msk [vmem:[#allocation2 + $0x1a8] sm:$0x3] %vm412, 0.0
        %v465 = vld [vmem:[%s371] sm:$0xf]
        %v466 = vld [vmem:[%s371 + $0x4] sm:$0xf]
        %v467 = vld [vmem:[%s371 + $0x8] sm:$0xf]
        %v468 = vld [vmem:[%s371 + $0xc] sm:$0xf]
        %v469 = vld [vmem:[%s371 + $0x10] sm:$0xf]
        %v470 = vld [vmem:[%s371 + $0x14] sm:$0xf]
        %v471 = vld [vmem:[%s371 + $0x18] sm:$0xf]
        %v472 = vld [vmem:[%s371 + $0x1c] sm:$0xf]
        %v473 = vld [vmem:[%s371 + $0x20] sm:$0xf]
        %v474 = vld [vmem:[%s371 + $0x24] sm:$0xf]
        %v475 = vld [vmem:[%s371 + $0x28] sm:$0xf]
        %v476 = vld [vmem:[%s371 + $0x2c] sm:$0xf]
        %v477 = vld [vmem:[%s371 + $0x30] sm:$0xf]
        %v478 = vld [vmem:[%s371 + $0x34] sm:$0xf]
        %v479 = vld [vmem:[%s371 + $0x38] sm:$0xf]
        %v480 = vld [vmem:[%s371 + $0x3c] sm:$0xf]
        %v481 = vld [vmem:[%s371 + $0x40] sm:$0xf]
        %v482 = vld [vmem:[%s371 + $0x44] sm:$0xf]
        %v483 = vld [vmem:[%s371 + $0x48] sm:$0xf]
        %v484 = vld [vmem:[%s371 + $0x4c] sm:$0xf]
        %v485 = vld [vmem:[%s371 + $0x50] sm:$0xf]
        %v486 = vld [vmem:[%s371 + $0x54] sm:$0xf]
        %v487 = vld [vmem:[%s371 + $0x58] sm:$0xf]
        %v488 = vld [vmem:[%s371 + $0x5c] sm:$0xf]
        %v489 = vld [vmem:[%s371 + $0x60] sm:$0xf]
        %v490 = vld [vmem:[%s371 + $0x64] sm:$0xf]
        %v491 = vld [vmem:[%s371 + $0x68] sm:$0xf]
        %v492 = vld [vmem:[%s371 + $0x6c] sm:$0xf]
        %v493 = vld [vmem:[%s371 + $0x70] sm:$0xf]
        %v494 = vld [vmem:[%s371 + $0x74] sm:$0xf]
        %v495 = vld [vmem:[%s371 + $0x78] sm:$0xf]
        %v496 = vld [vmem:[%s371 + $0x7c] sm:$0xf]
        %v497 = vunpack.c.l.bf16 %v465
        %v498 = vunpack.c.l.bf16 %v466
        %v499 = vunpack.c.l.bf16 %v467
        %v500 = vunpack.c.l.bf16 %v468
        %v501 = vunpack.c.l.bf16 %v469
        %v502 = vunpack.c.l.bf16 %v470
        %v503 = vunpack.c.l.bf16 %v471
        %v504 = vunpack.c.l.bf16 %v472
        %v505 = vunpack.c.l.bf16 %v473
        %v506 = vunpack.c.l.bf16 %v474
        %v507 = vunpack.c.l.bf16 %v475
        %v508 = vunpack.c.l.bf16 %v476
        %v509 = vunpack.c.l.bf16 %v477
        %v510 = vunpack.c.l.bf16 %v478
        %v511 = vunpack.c.l.bf16 %v479
        %v512 = vunpack.c.l.bf16 %v480
        %v513 = vunpack.c.l.bf16 %v481
        %v514 = vunpack.c.l.bf16 %v482
        %v515 = vunpack.c.l.bf16 %v483
        %v516 = vunpack.c.l.bf16 %v484
        %v517 = vunpack.c.l.bf16 %v485
        %v518 = vunpack.c.l.bf16 %v486
        %v519 = vunpack.c.l.bf16 %v487
        %v520 = vunpack.c.l.bf16 %v488
        %v521 = vunpack.c.l.bf16 %v489
        %v522 = vunpack.c.l.bf16 %v490
        %v523 = vunpack.c.l.bf16 %v491
        %v524 = vunpack.c.l.bf16 %v492
        %v525 = vunpack.c.l.bf16 %v493
        %v526 = vunpack.c.l.bf16 %v494
        %v527 = vunpack.c.l.bf16 %v495
        %v528 = vunpack.c.l.bf16 %v496
        %s529 = scalar_lea.vmem [#allocation2], 24
        %530 = vst.msk [vmem:[%s529 + $0x1] sm:$0xff] %vm409, %v497
        %531 = vst.msk [vmem:[%s529 + $0x9] sm:$0xff] %vm409, %v498
        %532 = vst.msk [vmem:[%s529 + $0x19] sm:$0xff] %vm409, %v499
        %533 = vst.msk [vmem:[%s529 + $0x21] sm:$0xff] %vm409, %v500
        %534 = vst.msk [vmem:[%s529 + $0x31] sm:$0xff] %vm409, %v501
        %535 = vst.msk [vmem:[%s529 + $0x39] sm:$0xff] %vm409, %v502
        %536 = vst.msk [vmem:[%s529 + $0x49] sm:$0xff] %vm409, %v503
        %537 = vst.msk [vmem:[%s529 + $0x51] sm:$0xff] %vm409, %v504
        %538 = vst.msk [vmem:[%s529 + $0x61] sm:$0xff] %vm409, %v505
        %539 = vst.msk [vmem:[%s529 + $0x69] sm:$0xff] %vm409, %v506
        %540 = vst.msk [vmem:[%s529 + $0x79] sm:$0xff] %vm409, %v507
        %541 = vst.msk [vmem:[%s529 + $0x81] sm:$0xff] %vm409, %v508
        %542 = vst.msk [vmem:[%s529 + $0x91] sm:$0xff] %vm409, %v509
        %543 = vst.msk [vmem:[%s529 + $0x99] sm:$0xff] %vm409, %v510
        %544 = vst.msk [vmem:[%s529 + $0xa9] sm:$0xff] %vm409, %v511
        %545 = vst.msk [vmem:[%s529 + $0xb1] sm:$0xff] %vm409, %v512
        %546 = vst.msk [vmem:[%s529 + $0xc1] sm:$0xff] %vm409, %v513
        %547 = vst.msk [vmem:[%s529 + $0xc9] sm:$0xff] %vm409, %v514
        %548 = vst.msk [vmem:[%s529 + $0xd9] sm:$0xff] %vm409, %v515
        %549 = vst.msk [vmem:[%s529 + $0xe1] sm:$0xff] %vm409, %v516
        %550 = vst.msk [vmem:[%s529 + $0xf1] sm:$0xff] %vm409, %v517
        %551 = vst.msk [vmem:[%s529 + $0xf9] sm:$0xff] %vm409, %v518
        %552 = vst.msk [vmem:[%s529 + $0x109] sm:$0xff] %vm409, %v519
        %553 = vst.msk [vmem:[%s529 + $0x111] sm:$0xff] %vm409, %v520
        %554 = vst.msk [vmem:[%s529 + $0x121] sm:$0xff] %vm409, %v521
        %555 = vst.msk [vmem:[%s529 + $0x129] sm:$0xff] %vm409, %v522
        %556 = vst.msk [vmem:[%s529 + $0x139] sm:$0xff] %vm409, %v523
        %557 = vst.msk [vmem:[%s529 + $0x141] sm:$0xff] %vm409, %v524
        %558 = vst.msk [vmem:[%s529 + $0x151] sm:$0xff] %vm409, %v525
        %559 = vst.msk [vmem:[%s529 + $0x159] sm:$0xff] %vm409, %v526
        %560 = vst.msk [vmem:[%s529 + $0x169] sm:$0xff] %vm409, %v527
        %561 = vst.msk [vmem:[%s529 + $0x171] sm:$0xff] %vm409, %v528
        %p562 = scmp.gt.s32.totalorder %s25, 0
        // Predicated region
        $region45: #{tpu_custom_call.1} parent=43 // pred_check
          %p563 = pneg %p562
        $region46: #{tpu_custom_call.1} parent=43 // pred_check_branch
          %565 = sbr.rel (%p563) target = $region48
        $region47: #{tpu_custom_call.1} parent=43 // pred_region
          %v566 = vld [vmem:[%s385] sm:$0xf]
          %v567 = vld [vmem:[%s385 + $0x4] sm:$0xf]
          %v568 = vunpack.c.l.bf16 %v566
          %v569 = vunpack.c.l.bf16 %v567
          %570 = vst.msk [vmem:[#allocation2 + $0x1] sm:$0xff] %vm409, %v568
          %571 = vst.msk [vmem:[#allocation2 + $0x9] sm:$0xff] %vm409, %v569
        $region48: #{tpu_custom_call.1} parent=43 // pred_fallthru
          _
        %p572 = scmp.lt.s32.totalorder %s25, 0
        // Predicated region
        $region49: #{tpu_custom_call.1} parent=43 // pred_check
          %p573 = pneg %p572
        $region50: #{tpu_custom_call.1} parent=43 // pred_check_branch
          %575 = sbr.rel (%p573) target = $region52
        $region51: #{tpu_custom_call.1} parent=43 // pred_region
          %v576 = vld [vmem:[%s402] sm:$0xf]
          %v577 = vld [vmem:[%s402 + $0x4] sm:$0xf]
          %v578 = vunpack.c.l.bf16 %v576
          %v579 = vunpack.c.l.bf16 %v577
          %s580 = scalar_lea.vmem [#allocation2], 408
          %581 = vst.msk [vmem:[%s580 + $0x1] sm:$0xff] %vm409, %v578
          %582 = vst.msk [vmem:[%s580 + $0x9] sm:$0xff] %vm409, %v579
        $region52: #{tpu_custom_call.1} parent=43 // pred_fallthru
          _
        %v583 = vld [vmem:[#allocation2] sm:$0xff]
        %v584 = vld [vmem:[#allocation2 + $0x8] sm:$0xff]
        %v585 = vld [vmem:[#allocation2 + $0x18] sm:$0xff]
        %v586 = vld [vmem:[#allocation2 + $0x20] sm:$0xff]
        %v587 = vld [vmem:[#allocation2 + $0x30] sm:$0xff]
        %v588 = vld [vmem:[#allocation2 + $0x38] sm:$0xff]
        %v589 = vld [vmem:[#allocation2 + $0x48] sm:$0xff]
        %v590 = vld [vmem:[#allocation2 + $0x50] sm:$0xff]
        %v591 = vld [vmem:[#allocation2 + $0x60] sm:$0xff]
        %v592 = vld [vmem:[#allocation2 + $0x68] sm:$0xff]
        %v593 = vld [vmem:[#allocation2 + $0x78] sm:$0xff]
        %v594 = vld [vmem:[#allocation2 + $0x80] sm:$0xff]
        %v595 = vld [vmem:[#allocation2 + $0x90] sm:$0xff]
        %v596 = vld [vmem:[#allocation2 + $0x98] sm:$0xff]
        %v597 = vld [vmem:[#allocation2 + $0xa8] sm:$0xff]
        %v598 = vld [vmem:[#allocation2 + $0xb0] sm:$0xff]
        %v599 = vld [vmem:[#allocation2 + $0xc0] sm:$0xff]
        %v600 = vld [vmem:[#allocation2 + $0xc8] sm:$0xff]
        %v601 = vld [vmem:[#allocation2 + $0xd8] sm:$0xff]
        %v602 = vld [vmem:[#allocation2 + $0xe0] sm:$0xff]
        %v603 = vld [vmem:[#allocation2 + $0xf0] sm:$0xff]
        %v604 = vld [vmem:[#allocation2 + $0xf8] sm:$0xff]
        %v605 = vld [vmem:[#allocation2 + $0x108] sm:$0xff]
        %v606 = vld [vmem:[#allocation2 + $0x110] sm:$0xff]
        %v607 = vld [vmem:[#allocation2 + $0x120] sm:$0xff]
        %v608 = vld [vmem:[#allocation2 + $0x128] sm:$0xff]
        %v609 = vld [vmem:[#allocation2 + $0x138] sm:$0xff]
        %v610 = vld [vmem:[#allocation2 + $0x140] sm:$0xff]
        %v611 = vld [vmem:[#allocation2 + $0x150] sm:$0xff]
        %v612 = vld [vmem:[#allocation2 + $0x158] sm:$0xff]
        %v613 = vld [vmem:[#allocation2 + $0x168] sm:$0xff]
        %v614 = vld [vmem:[#allocation2 + $0x170] sm:$0xff]
        %v615 = vpack.c.bf16 %v584, %v583
        %v616 = vpack.c.bf16 %v586, %v585
        %v617 = vpack.c.bf16 %v588, %v587
        %v618 = vpack.c.bf16 %v590, %v589
        %v619 = vpack.c.bf16 %v592, %v591
        %v620 = vpack.c.bf16 %v594, %v593
        %v621 = vpack.c.bf16 %v596, %v595
        %v622 = vpack.c.bf16 %v598, %v597
        %v623 = vpack.c.bf16 %v600, %v599
        %v624 = vpack.c.bf16 %v602, %v601
        %v625 = vpack.c.bf16 %v604, %v603
        %v626 = vpack.c.bf16 %v606, %v605
        %v627 = vpack.c.bf16 %v608, %v607
        %v628 = vpack.c.bf16 %v610, %v609
        %v629 = vpack.c.bf16 %v612, %v611
        %v630 = vpack.c.bf16 %v614, %v613
        %v631 = vld [vmem:[%s3] sm:$0x3]
        %v633 = vsel %vm409, %v615, 0
        %v636 = vsel %vm409, %v616, 0
        %v639 = vsel %vm409, %v617, 0
        %v642 = vsel %vm409, %v618, 0
        %v645 = vsel %vm409, %v619, 0
        %v648 = vsel %vm409, %v620, 0
        %v651 = vsel %vm409, %v621, 0
        %v654 = vsel %vm409, %v622, 0
        %v657 = vsel %vm409, %v623, 0
        %v660 = vsel %vm409, %v624, 0
        %v663 = vsel %vm409, %v625, 0
        %v666 = vsel %vm409, %v626, 0
        %v669 = vsel %vm409, %v627, 0
        %v672 = vsel %vm409, %v628, 0
        %v675 = vsel %vm409, %v629, 0
        %v678 = vsel %vm409, %v630, 0
        %vm680 = vcmask 1040384
        %vm681 = vcmask 1041408
        %v682 = vsel %vm680, 4294967295, 65535
        %v683 = vsel %vm681, %v682, 0
        %v685 = vand.u32 %v631, %v683
        %687 = vmatpush.bf16.msra.mxu0 0
        %688 = vmatpush.bf16.msra.mxu0 0
        %689 = vmatpush.bf16.msra.mxu0 0
        %690 = vmatpush.bf16.msra.mxu0 0
        %691 = vmatpush.bf16.msra.mxu0 0
        %692 = vmatpush.bf16.msra.mxu0 0
        %693 = vmatpush.bf16.msra.mxu0 0
        %694 = vmatpush.bf16.msra.mxu0 %v685
        %695 = vmatmul.bf16.gmra.mxu0 %v633
        %v696 = vpop.f32.mrf.mxu0
        %v697 = vadd.f32 0.0, %v696
        %v698 = vpop.f32.mrf.mxu0
        %v699 = vadd.f32 0.0, %v698
        %700 = vmatmul.bf16.gmra.mxu0 %v636
        %v701 = vpop.f32.mrf.mxu0
        %v702 = vadd.f32 0.0, %v701
        %v703 = vpop.f32.mrf.mxu0
        %v704 = vadd.f32 0.0, %v703
        %705 = vmatmul.bf16.gmra.mxu0 %v639
        %v706 = vpop.f32.mrf.mxu0
        %v707 = vadd.f32 0.0, %v706
        %v708 = vpop.f32.mrf.mxu0
        %v709 = vadd.f32 0.0, %v708
        %710 = vmatmul.bf16.gmra.mxu0 %v642
        %v711 = vpop.f32.mrf.mxu0
        %v712 = vadd.f32 0.0, %v711
        %v713 = vpop.f32.mrf.mxu0
        %v714 = vadd.f32 0.0, %v713
        %715 = vmatmul.bf16.gmra.mxu0 %v645
        %v716 = vpop.f32.mrf.mxu0
        %v717 = vadd.f32 0.0, %v716
        %v718 = vpop.f32.mrf.mxu0
        %v719 = vadd.f32 0.0, %v718
        %720 = vmatmul.bf16.gmra.mxu0 %v648
        %v721 = vpop.f32.mrf.mxu0
        %v722 = vadd.f32 0.0, %v721
        %v723 = vpop.f32.mrf.mxu0
        %v724 = vadd.f32 0.0, %v723
        %725 = vmatmul.bf16.gmra.mxu0 %v651
        %v726 = vpop.f32.mrf.mxu0
        %v727 = vadd.f32 0.0, %v726
        %v728 = vpop.f32.mrf.mxu0
        %v729 = vadd.f32 0.0, %v728
        %730 = vmatmul.bf16.gmra.mxu0 %v654
        %v731 = vpop.f32.mrf.mxu0
        %v732 = vadd.f32 0.0, %v731
        %v733 = vpop.f32.mrf.mxu0
        %v734 = vadd.f32 0.0, %v733
        %735 = vmatmul.bf16.gmra.mxu0 %v657
        %v736 = vpop.f32.mrf.mxu0
        %v737 = vadd.f32 0.0, %v736
        %v738 = vpop.f32.mrf.mxu0
        %v739 = vadd.f32 0.0, %v738
        %740 = vmatmul.bf16.gmra.mxu0 %v660
        %v741 = vpop.f32.mrf.mxu0
        %v742 = vadd.f32 0.0, %v741
        %v743 = vpop.f32.mrf.mxu0
        %v744 = vadd.f32 0.0, %v743
        %745 = vmatmul.bf16.gmra.mxu0 %v663
        %v746 = vpop.f32.mrf.mxu0
        %v747 = vadd.f32 0.0, %v746
        %v748 = vpop.f32.mrf.mxu0
        %v749 = vadd.f32 0.0, %v748
        %750 = vmatmul.bf16.gmra.mxu0 %v666
        %v751 = vpop.f32.mrf.mxu0
        %v752 = vadd.f32 0.0, %v751
        %v753 = vpop.f32.mrf.mxu0
        %v754 = vadd.f32 0.0, %v753
        %755 = vmatmul.bf16.gmra.mxu0 %v669
        %v756 = vpop.f32.mrf.mxu0
        %v757 = vadd.f32 0.0, %v756
        %v758 = vpop.f32.mrf.mxu0
        %v759 = vadd.f32 0.0, %v758
        %760 = vmatmul.bf16.gmra.mxu0 %v672
        %v761 = vpop.f32.mrf.mxu0
        %v762 = vadd.f32 0.0, %v761
        %v763 = vpop.f32.mrf.mxu0
        %v764 = vadd.f32 0.0, %v763
        %765 = vmatmul.bf16.gmra.mxu0 %v675
        %v766 = vpop.f32.mrf.mxu0
        %v767 = vadd.f32 0.0, %v766
        %v768 = vpop.f32.mrf.mxu0
        %v769 = vadd.f32 0.0, %v768
        %770 = vmatmul.bf16.gmra.mxu0 %v678
        %v771 = vpop.f32.mrf.mxu0
        %v772 = vadd.f32 0.0, %v771
        %v773 = vpop.f32.mrf.mxu0
        %v774 = vadd.f32 0.0, %v773
        %775 = vdwg.mxu0
        %776 = vst [vmem:[#allocation3] sm:$0xff] %v697
        %777 = vst [vmem:[#allocation3 + $0x8] sm:$0xff] %v699
        %778 = vst [vmem:[#allocation3 + $0x10] sm:$0xff] %v702
        %779 = vst [vmem:[#allocation3 + $0x18] sm:$0xff] %v704
        %780 = vst [vmem:[#allocation3 + $0x20] sm:$0xff] %v707
        %781 = vst [vmem:[#allocation3 + $0x28] sm:$0xff] %v709
        %782 = vst [vmem:[#allocation3 + $0x30] sm:$0xff] %v712
        %783 = vst [vmem:[#allocation3 + $0x38] sm:$0xff] %v714
        %784 = vst [vmem:[#allocation3 + $0x40] sm:$0xff] %v717
        %785 = vst [vmem:[#allocation3 + $0x48] sm:$0xff] %v719
        %786 = vst [vmem:[#allocation3 + $0x50] sm:$0xff] %v722
        %787 = vst [vmem:[#allocation3 + $0x58] sm:$0xff] %v724
        %788 = vst [vmem:[#allocation3 + $0x60] sm:$0xff] %v727
        %789 = vst [vmem:[#allocation3 + $0x68] sm:$0xff] %v729
        %790 = vst [vmem:[#allocation3 + $0x70] sm:$0xff] %v732
        %791 = vst [vmem:[#allocation3 + $0x78] sm:$0xff] %v734
        %792 = vst [vmem:[#allocation3 + $0x80] sm:$0xff] %v737
        %793 = vst [vmem:[#allocation3 + $0x88] sm:$0xff] %v739
        %794 = vst [vmem:[#allocation3 + $0x90] sm:$0xff] %v742
        %795 = vst [vmem:[#allocation3 + $0x98] sm:$0xff] %v744
        %796 = vst [vmem:[#allocation3 + $0xa0] sm:$0xff] %v747
        %797 = vst [vmem:[#allocation3 + $0xa8] sm:$0xff] %v749
        %798 = vst [vmem:[#allocation3 + $0xb0] sm:$0xff] %v752
        %799 = vst [vmem:[#allocation3 + $0xb8] sm:$0xff] %v754
        %800 = vst [vmem:[#allocation3 + $0xc0] sm:$0xff] %v757
        %801 = vst [vmem:[#allocation3 + $0xc8] sm:$0xff] %v759
        %802 = vst [vmem:[#allocation3 + $0xd0] sm:$0xff] %v762
        %803 = vst [vmem:[#allocation3 + $0xd8] sm:$0xff] %v764
        %804 = vst [vmem:[#allocation3 + $0xe0] sm:$0xff] %v767
        %805 = vst [vmem:[#allocation3 + $0xe8] sm:$0xff] %v769
        %806 = vst [vmem:[#allocation3 + $0xf0] sm:$0xff] %v772
        %807 = vst [vmem:[#allocation3 + $0xf8] sm:$0xff] %v774
        %v808 = vld [vmem:[#allocation2 + $0x1] sm:$0xff]
        %v809 = vld [vmem:[#allocation2 + $0x9] sm:$0xff]
        %v810 = vld [vmem:[#allocation2 + $0x19] sm:$0xff]
        %v811 = vld [vmem:[#allocation2 + $0x21] sm:$0xff]
        %v812 = vld [vmem:[#allocation2 + $0x31] sm:$0xff]
        %v813 = vld [vmem:[#allocation2 + $0x39] sm:$0xff]
        %v814 = vld [vmem:[#allocation2 + $0x49] sm:$0xff]
        %v815 = vld [vmem:[#allocation2 + $0x51] sm:$0xff]
        %v816 = vld [vmem:[#allocation2 + $0x61] sm:$0xff]
        %v817 = vld [vmem:[#allocation2 + $0x69] sm:$0xff]
        %v818 = vld [vmem:[#allocation2 + $0x79] sm:$0xff]
        %v819 = vld [vmem:[#allocation2 + $0x81] sm:$0xff]
        %v820 = vld [vmem:[#allocation2 + $0x91] sm:$0xff]
        %v821 = vld [vmem:[#allocation2 + $0x99] sm:$0xff]
        %v822 = vld [vmem:[#allocation2 + $0xa9] sm:$0xff]
        %v823 = vld [vmem:[#allocation2 + $0xb1] sm:$0xff]
        %v824 = vld [vmem:[#allocation2 + $0xc1] sm:$0xff]
        %v825 = vld [vmem:[#allocation2 + $0xc9] sm:$0xff]
        %v826 = vld [vmem:[#allocation2 + $0xd9] sm:$0xff]
        %v827 = vld [vmem:[#allocation2 + $0xe1] sm:$0xff]
        %v828 = vld [vmem:[#allocation2 + $0xf1] sm:$0xff]
        %v829 = vld [vmem:[#allocation2 + $0xf9] sm:$0xff]
        %v830 = vld [vmem:[#allocation2 + $0x109] sm:$0xff]
        %v831 = vld [vmem:[#allocation2 + $0x111] sm:$0xff]
        %v832 = vld [vmem:[#allocation2 + $0x121] sm:$0xff]
        %v833 = vld [vmem:[#allocation2 + $0x129] sm:$0xff]
        %v834 = vld [vmem:[#allocation2 + $0x139] sm:$0xff]
        %v835 = vld [vmem:[#allocation2 + $0x141] sm:$0xff]
        %v836 = vld [vmem:[#allocation2 + $0x151] sm:$0xff]
        %v837 = vld [vmem:[#allocation2 + $0x159] sm:$0xff]
        %v838 = vld [vmem:[#allocation2 + $0x169] sm:$0xff]
        %v839 = vld [vmem:[#allocation2 + $0x171] sm:$0xff]
        %v840 = vpack.c.bf16 %v809, %v808
        %v841 = vpack.c.bf16 %v811, %v810
        %v842 = vpack.c.bf16 %v813, %v812
        %v843 = vpack.c.bf16 %v815, %v814
        %v844 = vpack.c.bf16 %v817, %v816
        %v845 = vpack.c.bf16 %v819, %v818
        %v846 = vpack.c.bf16 %v821, %v820
        %v847 = vpack.c.bf16 %v823, %v822
        %v848 = vpack.c.bf16 %v825, %v824
        %v849 = vpack.c.bf16 %v827, %v826
        %v850 = vpack.c.bf16 %v829, %v828
        %v851 = vpack.c.bf16 %v831, %v830
        %v852 = vpack.c.bf16 %v833, %v832
        %v853 = vpack.c.bf16 %v835, %v834
        %v854 = vpack.c.bf16 %v837, %v836
        %v855 = vpack.c.bf16 %v839, %v838
        %s856 = scalar_lea.vmem %s3, 2
        %v857 = vld [vmem:[%s856] sm:$0x3]
        %v859 = vsel %vm409, %v840, 0
        %v862 = vsel %vm409, %v841, 0
        %v865 = vsel %vm409, %v842, 0
        %v868 = vsel %vm409, %v843, 0
        %v871 = vsel %vm409, %v844, 0
        %v874 = vsel %vm409, %v845, 0
        %v877 = vsel %vm409, %v846, 0
        %v880 = vsel %vm409, %v847, 0
        %v883 = vsel %vm409, %v848, 0
        %v886 = vsel %vm409, %v849, 0
        %v889 = vsel %vm409, %v850, 0
        %v892 = vsel %vm409, %v851, 0
        %v895 = vsel %vm409, %v852, 0
        %v898 = vsel %vm409, %v853, 0
        %v901 = vsel %vm409, %v854, 0
        %v904 = vsel %vm409, %v855, 0
        %v907 = vand.u32 %v857, %v683
        %909 = vmatpush.bf16.msra.mxu0 0
        %910 = vmatpush.bf16.msra.mxu0 0
        %911 = vmatpush.bf16.msra.mxu0 0
        %912 = vmatpush.bf16.msra.mxu0 0
        %913 = vmatpush.bf16.msra.mxu0 0
        %914 = vmatpush.bf16.msra.mxu0 0
        %915 = vmatpush.bf16.msra.mxu0 0
        %916 = vmatpush.bf16.msra.mxu0 %v907
        %917 = vmatmul.bf16.gmra.mxu0 %v859
        %v918 = vpop.f32.mrf.mxu0
        %v919 = vadd.f32 0.0, %v918
        %v920 = vpop.f32.mrf.mxu0
        %v921 = vadd.f32 0.0, %v920
        %922 = vmatmul.bf16.gmra.mxu0 %v862
        %v923 = vpop.f32.mrf.mxu0
        %v924 = vadd.f32 0.0, %v923
        %v925 = vpop.f32.mrf.mxu0
        %v926 = vadd.f32 0.0, %v925
        %927 = vmatmul.bf16.gmra.mxu0 %v865
        %v928 = vpop.f32.mrf.mxu0
        %v929 = vadd.f32 0.0, %v928
        %v930 = vpop.f32.mrf.mxu0
        %v931 = vadd.f32 0.0, %v930
        %932 = vmatmul.bf16.gmra.mxu0 %v868
        %v933 = vpop.f32.mrf.mxu0
        %v934 = vadd.f32 0.0, %v933
        %v935 = vpop.f32.mrf.mxu0
        %v936 = vadd.f32 0.0, %v935
        %937 = vmatmul.bf16.gmra.mxu0 %v871
        %v938 = vpop.f32.mrf.mxu0
        %v939 = vadd.f32 0.0, %v938
        %v940 = vpop.f32.mrf.mxu0
        %v941 = vadd.f32 0.0, %v940
        %942 = vmatmul.bf16.gmra.mxu0 %v874
        %v943 = vpop.f32.mrf.mxu0
        %v944 = vadd.f32 0.0, %v943
        %v945 = vpop.f32.mrf.mxu0
        %v946 = vadd.f32 0.0, %v945
        %947 = vmatmul.bf16.gmra.mxu0 %v877
        %v948 = vpop.f32.mrf.mxu0
        %v949 = vadd.f32 0.0, %v948
        %v950 = vpop.f32.mrf.mxu0
        %v951 = vadd.f32 0.0, %v950
        %952 = vmatmul.bf16.gmra.mxu0 %v880
        %v953 = vpop.f32.mrf.mxu0
        %v954 = vadd.f32 0.0, %v953
        %v955 = vpop.f32.mrf.mxu0
        %v956 = vadd.f32 0.0, %v955
        %957 = vmatmul.bf16.gmra.mxu0 %v883
        %v958 = vpop.f32.mrf.mxu0
        %v959 = vadd.f32 0.0, %v958
        %v960 = vpop.f32.mrf.mxu0
        %v961 = vadd.f32 0.0, %v960
        %962 = vmatmul.bf16.gmra.mxu0 %v886
        %v963 = vpop.f32.mrf.mxu0
        %v964 = vadd.f32 0.0, %v963
        %v965 = vpop.f32.mrf.mxu0
        %v966 = vadd.f32 0.0, %v965
        %967 = vmatmul.bf16.gmra.mxu0 %v889
        %v968 = vpop.f32.mrf.mxu0
        %v969 = vadd.f32 0.0, %v968
        %v970 = vpop.f32.mrf.mxu0
        %v971 = vadd.f32 0.0, %v970
        %972 = vmatmul.bf16.gmra.mxu0 %v892
        %v973 = vpop.f32.mrf.mxu0
        %v974 = vadd.f32 0.0, %v973
        %v975 = vpop.f32.mrf.mxu0
        %v976 = vadd.f32 0.0, %v975
        %977 = vmatmul.bf16.gmra.mxu0 %v895
        %v978 = vpop.f32.mrf.mxu0
        %v979 = vadd.f32 0.0, %v978
        %v980 = vpop.f32.mrf.mxu0
        %v981 = vadd.f32 0.0, %v980
        %982 = vmatmul.bf16.gmra.mxu0 %v898
        %v983 = vpop.f32.mrf.mxu0
        %v984 = vadd.f32 0.0, %v983
        %v985 = vpop.f32.mrf.mxu0
        %v986 = vadd.f32 0.0, %v985
        %987 = vmatmul.bf16.gmra.mxu0 %v901
        %v988 = vpop.f32.mrf.mxu0
        %v989 = vadd.f32 0.0, %v988
        %v990 = vpop.f32.mrf.mxu0
        %v991 = vadd.f32 0.0, %v990
        %992 = vmatmul.bf16.gmra.mxu0 %v904
        %v993 = vpop.f32.mrf.mxu0
        %v994 = vadd.f32 0.0, %v993
        %v995 = vpop.f32.mrf.mxu0
        %v996 = vadd.f32 0.0, %v995
        %997 = vdwg.mxu0
        %v998 = vld [vmem:[#allocation3] sm:$0xff]
        %v999 = vld [vmem:[#allocation3 + $0x8] sm:$0xff]
        %v1000 = vld [vmem:[#allocation3 + $0x10] sm:$0xff]
        %v1001 = vld [vmem:[#allocation3 + $0x18] sm:$0xff]
        %v1002 = vld [vmem:[#allocation3 + $0x20] sm:$0xff]
        %v1003 = vld [vmem:[#allocation3 + $0x28] sm:$0xff]
        %v1004 = vld [vmem:[#allocation3 + $0x30] sm:$0xff]
        %v1005 = vld [vmem:[#allocation3 + $0x38] sm:$0xff]
        %v1006 = vld [vmem:[#allocation3 + $0x40] sm:$0xff]
        %v1007 = vld [vmem:[#allocation3 + $0x48] sm:$0xff]
        %v1008 = vld [vmem:[#allocation3 + $0x50] sm:$0xff]
        %v1009 = vld [vmem:[#allocation3 + $0x58] sm:$0xff]
        %v1010 = vld [vmem:[#allocation3 + $0x60] sm:$0xff]
        %v1011 = vld [vmem:[#allocation3 + $0x68] sm:$0xff]
        %v1012 = vld [vmem:[#allocation3 + $0x70] sm:$0xff]
        %v1013 = vld [vmem:[#allocation3 + $0x78] sm:$0xff]
        %v1014 = vld [vmem:[#allocation3 + $0x80] sm:$0xff]
        %v1015 = vld [vmem:[#allocation3 + $0x88] sm:$0xff]
        %v1016 = vld [vmem:[#allocation3 + $0x90] sm:$0xff]
        %v1017 = vld [vmem:[#allocation3 + $0x98] sm:$0xff]
        %v1018 = vld [vmem:[#allocation3 + $0xa0] sm:$0xff]
        %v1019 = vld [vmem:[#allocation3 + $0xa8] sm:$0xff]
        %v1020 = vld [vmem:[#allocation3 + $0xb0] sm:$0xff]
        %v1021 = vld [vmem:[#allocation3 + $0xb8] sm:$0xff]
        %v1022 = vld [vmem:[#allocation3 + $0xc0] sm:$0xff]
        %v1023 = vld [vmem:[#allocation3 + $0xc8] sm:$0xff]
        %v1024 = vld [vmem:[#allocation3 + $0xd0] sm:$0xff]
        %v1025 = vld [vmem:[#allocation3 + $0xd8] sm:$0xff]
        %v1026 = vld [vmem:[#allocation3 + $0xe0] sm:$0xff]
        %v1027 = vld [vmem:[#allocation3 + $0xe8] sm:$0xff]
        %v1028 = vld [vmem:[#allocation3 + $0xf0] sm:$0xff]
        %v1029 = vld [vmem:[#allocation3 + $0xf8] sm:$0xff]
        %v1030 = vadd.f32 %v998, %v919
        %v1031 = vadd.f32 %v999, %v921
        %v1032 = vadd.f32 %v1000, %v924
        %v1033 = vadd.f32 %v1001, %v926
        %v1034 = vadd.f32 %v1002, %v929
        %v1035 = vadd.f32 %v1003, %v931
        %v1036 = vadd.f32 %v1004, %v934
        %v1037 = vadd.f32 %v1005, %v936
        %v1038 = vadd.f32 %v1006, %v939
        %v1039 = vadd.f32 %v1007, %v941
        %v1040 = vadd.f32 %v1008, %v944
        %v1041 = vadd.f32 %v1009, %v946
        %v1042 = vadd.f32 %v1010, %v949
        %v1043 = vadd.f32 %v1011, %v951
        %v1044 = vadd.f32 %v1012, %v954
        %v1045 = vadd.f32 %v1013, %v956
        %v1046 = vadd.f32 %v1014, %v959
        %v1047 = vadd.f32 %v1015, %v961
        %v1048 = vadd.f32 %v1016, %v964
        %v1049 = vadd.f32 %v1017, %v966
        %v1050 = vadd.f32 %v1018, %v969
        %v1051 = vadd.f32 %v1019, %v971
        %v1052 = vadd.f32 %v1020, %v974
        %v1053 = vadd.f32 %v1021, %v976
        %v1054 = vadd.f32 %v1022, %v979
        %v1055 = vadd.f32 %v1023, %v981
        %v1056 = vadd.f32 %v1024, %v984
        %v1057 = vadd.f32 %v1025, %v986
        %v1058 = vadd.f32 %v1026, %v989
        %v1059 = vadd.f32 %v1027, %v991
        %v1060 = vadd.f32 %v1028, %v994
        %v1061 = vadd.f32 %v1029, %v996
        %1062 = vst [vmem:[#allocation3] sm:$0xff] %v1030
        %1063 = vst [vmem:[#allocation3 + $0x8] sm:$0xff] %v1031
        %1064 = vst [vmem:[#allocation3 + $0x10] sm:$0xff] %v1032
        %1065 = vst [vmem:[#allocation3 + $0x18] sm:$0xff] %v1033
        %1066 = vst [vmem:[#allocation3 + $0x20] sm:$0xff] %v1034
        %1067 = vst [vmem:[#allocation3 + $0x28] sm:$0xff] %v1035
        %1068 = vst [vmem:[#allocation3 + $0x30] sm:$0xff] %v1036
        %1069 = vst [vmem:[#allocation3 + $0x38] sm:$0xff] %v1037
        %1070 = vst [vmem:[#allocation3 + $0x40] sm:$0xff] %v1038
        %1071 = vst [vmem:[#allocation3 + $0x48] sm:$0xff] %v1039
        %1072 = vst [vmem:[#allocation3 + $0x50] sm:$0xff] %v1040
        %1073 = vst [vmem:[#allocation3 + $0x58] sm:$0xff] %v1041
        %1074 = vst [vmem:[#allocation3 + $0x60] sm:$0xff] %v1042
        %1075 = vst [vmem:[#allocation3 + $0x68] sm:$0xff] %v1043
        %1076 = vst [vmem:[#allocation3 + $0x70] sm:$0xff] %v1044
        %1077 = vst [vmem:[#allocation3 + $0x78] sm:$0xff] %v1045
        %1078 = vst [vmem:[#allocation3 + $0x80] sm:$0xff] %v1046
        %1079 = vst [vmem:[#allocation3 + $0x88] sm:$0xff] %v1047
        %1080 = vst [vmem:[#allocation3 + $0x90] sm:$0xff] %v1048
        %1081 = vst [vmem:[#allocation3 + $0x98] sm:$0xff] %v1049
        %1082 = vst [vmem:[#allocation3 + $0xa0] sm:$0xff] %v1050
        %1083 = vst [vmem:[#allocation3 + $0xa8] sm:$0xff] %v1051
        %1084 = vst [vmem:[#allocation3 + $0xb0] sm:$0xff] %v1052
        %1085 = vst [vmem:[#allocation3 + $0xb8] sm:$0xff] %v1053
        %1086 = vst [vmem:[#allocation3 + $0xc0] sm:$0xff] %v1054
        %1087 = vst [vmem:[#allocation3 + $0xc8] sm:$0xff] %v1055
        %1088 = vst [vmem:[#allocation3 + $0xd0] sm:$0xff] %v1056
        %1089 = vst [vmem:[#allocation3 + $0xd8] sm:$0xff] %v1057
        %1090 = vst [vmem:[#allocation3 + $0xe0] sm:$0xff] %v1058
        %1091 = vst [vmem:[#allocation3 + $0xe8] sm:$0xff] %v1059
        %1092 = vst [vmem:[#allocation3 + $0xf0] sm:$0xff] %v1060
        %1093 = vst [vmem:[#allocation3 + $0xf8] sm:$0xff] %v1061
        %v1094 = vld [vmem:[#allocation2 + $0x2] sm:$0xff]
        %v1095 = vld [vmem:[#allocation2 + $0xa] sm:$0xff]
        %v1096 = vld [vmem:[#allocation2 + $0x1a] sm:$0xff]
        %v1097 = vld [vmem:[#allocation2 + $0x22] sm:$0xff]
        %v1098 = vld [vmem:[#allocation2 + $0x32] sm:$0xff]
        %v1099 = vld [vmem:[#allocation2 + $0x3a] sm:$0xff]
        %v1100 = vld [vmem:[#allocation2 + $0x4a] sm:$0xff]
        %v1101 = vld [vmem:[#allocation2 + $0x52] sm:$0xff]
        %v1102 = vld [vmem:[#allocation2 + $0x62] sm:$0xff]
        %v1103 = vld [vmem:[#allocation2 + $0x6a] sm:$0xff]
        %v1104 = vld [vmem:[#allocation2 + $0x7a] sm:$0xff]
        %v1105 = vld [vmem:[#allocation2 + $0x82] sm:$0xff]
        %v1106 = vld [vmem:[#allocation2 + $0x92] sm:$0xff]
        %v1107 = vld [vmem:[#allocation2 + $0x9a] sm:$0xff]
        %v1108 = vld [vmem:[#allocation2 + $0xaa] sm:$0xff]
        %v1109 = vld [vmem:[#allocation2 + $0xb2] sm:$0xff]
        %v1110 = vld [vmem:[#allocation2 + $0xc2] sm:$0xff]
        %v1111 = vld [vmem:[#allocation2 + $0xca] sm:$0xff]
        %v1112 = vld [vmem:[#allocation2 + $0xda] sm:$0xff]
        %v1113 = vld [vmem:[#allocation2 + $0xe2] sm:$0xff]
        %v1114 = vld [vmem:[#allocation2 + $0xf2] sm:$0xff]
        %v1115 = vld [vmem:[#allocation2 + $0xfa] sm:$0xff]
        %v1116 = vld [vmem:[#allocation2 + $0x10a] sm:$0xff]
        %v1117 = vld [vmem:[#allocation2 + $0x112] sm:$0xff]
        %v1118 = vld [vmem:[#allocation2 + $0x122] sm:$0xff]
        %v1119 = vld [vmem:[#allocation2 + $0x12a] sm:$0xff]
        %v1120 = vld [vmem:[#allocation2 + $0x13a] sm:$0xff]
        %v1121 = vld [vmem:[#allocation2 + $0x142] sm:$0xff]
        %v1122 = vld [vmem:[#allocation2 + $0x152] sm:$0xff]
        %v1123 = vld [vmem:[#allocation2 + $0x15a] sm:$0xff]
        %v1124 = vld [vmem:[#allocation2 + $0x16a] sm:$0xff]
        %v1125 = vld [vmem:[#allocation2 + $0x172] sm:$0xff]
        %v1126 = vpack.c.bf16 %v1095, %v1094
        %v1127 = vpack.c.bf16 %v1097, %v1096
        %v1128 = vpack.c.bf16 %v1099, %v1098
        %v1129 = vpack.c.bf16 %v1101, %v1100
        %v1130 = vpack.c.bf16 %v1103, %v1102
        %v1131 = vpack.c.bf16 %v1105, %v1104
        %v1132 = vpack.c.bf16 %v1107, %v1106
        %v1133 = vpack.c.bf16 %v1109, %v1108
        %v1134 = vpack.c.bf16 %v1111, %v1110
        %v1135 = vpack.c.bf16 %v1113, %v1112
        %v1136 = vpack.c.bf16 %v1115, %v1114
        %v1137 = vpack.c.bf16 %v1117, %v1116
        %v1138 = vpack.c.bf16 %v1119, %v1118
        %v1139 = vpack.c.bf16 %v1121, %v1120
        %v1140 = vpack.c.bf16 %v1123, %v1122
        %v1141 = vpack.c.bf16 %v1125, %v1124
        %s1142 = scalar_lea.vmem %s3, 4
        %v1143 = vld [vmem:[%s1142] sm:$0x3]
        %v1145 = vsel %vm409, %v1126, 0
        %v1148 = vsel %vm409, %v1127, 0
        %v1151 = vsel %vm409, %v1128, 0
        %v1154 = vsel %vm409, %v1129, 0
        %v1157 = vsel %vm409, %v1130, 0
        %v1160 = vsel %vm409, %v1131, 0
        %v1163 = vsel %vm409, %v1132, 0
        %v1166 = vsel %vm409, %v1133, 0
        %v1169 = vsel %vm409, %v1134, 0
        %v1172 = vsel %vm409, %v1135, 0
        %v1175 = vsel %vm409, %v1136, 0
        %v1178 = vsel %vm409, %v1137, 0
        %v1181 = vsel %vm409, %v1138, 0
        %v1184 = vsel %vm409, %v1139, 0
        %v1187 = vsel %vm409, %v1140, 0
        %v1190 = vsel %vm409, %v1141, 0
        %v1193 = vand.u32 %v1143, %v683
        %1195 = vmatpush.bf16.msra.mxu0 0
        %1196 = vmatpush.bf16.msra.mxu0 0
        %1197 = vmatpush.bf16.msra.mxu0 0
        %1198 = vmatpush.bf16.msra.mxu0 0
        %1199 = vmatpush.bf16.msra.mxu0 0
        %1200 = vmatpush.bf16.msra.mxu0 0
        %1201 = vmatpush.bf16.msra.mxu0 0
        %1202 = vmatpush.bf16.msra.mxu0 %v1193
        %1203 = vmatmul.bf16.gmra.mxu0 %v1145
        %v1204 = vpop.f32.mrf.mxu0
        %v1205 = vadd.f32 0.0, %v1204
        %v1206 = vpop.f32.mrf.mxu0
        %v1207 = vadd.f32 0.0, %v1206
        %1208 = vmatmul.bf16.gmra.mxu0 %v1148
        %v1209 = vpop.f32.mrf.mxu0
        %v1210 = vadd.f32 0.0, %v1209
        %v1211 = vpop.f32.mrf.mxu0
        %v1212 = vadd.f32 0.0, %v1211
        %1213 = vmatmul.bf16.gmra.mxu0 %v1151
        %v1214 = vpop.f32.mrf.mxu0
        %v1215 = vadd.f32 0.0, %v1214
        %v1216 = vpop.f32.mrf.mxu0
        %v1217 = vadd.f32 0.0, %v1216
        %1218 = vmatmul.bf16.gmra.mxu0 %v1154
        %v1219 = vpop.f32.mrf.mxu0
        %v1220 = vadd.f32 0.0, %v1219
        %v1221 = vpop.f32.mrf.mxu0
        %v1222 = vadd.f32 0.0, %v1221
        %1223 = vmatmul.bf16.gmra.mxu0 %v1157
        %v1224 = vpop.f32.mrf.mxu0
        %v1225 = vadd.f32 0.0, %v1224
        %v1226 = vpop.f32.mrf.mxu0
        %v1227 = vadd.f32 0.0, %v1226
        %1228 = vmatmul.bf16.gmra.mxu0 %v1160
        %v1229 = vpop.f32.mrf.mxu0
        %v1230 = vadd.f32 0.0, %v1229
        %v1231 = vpop.f32.mrf.mxu0
        %v1232 = vadd.f32 0.0, %v1231
        %1233 = vmatmul.bf16.gmra.mxu0 %v1163
        %v1234 = vpop.f32.mrf.mxu0
        %v1235 = vadd.f32 0.0, %v1234
        %v1236 = vpop.f32.mrf.mxu0
        %v1237 = vadd.f32 0.0, %v1236
        %1238 = vmatmul.bf16.gmra.mxu0 %v1166
        %v1239 = vpop.f32.mrf.mxu0
        %v1240 = vadd.f32 0.0, %v1239
        %v1241 = vpop.f32.mrf.mxu0
        %v1242 = vadd.f32 0.0, %v1241
        %1243 = vmatmul.bf16.gmra.mxu0 %v1169
        %v1244 = vpop.f32.mrf.mxu0
        %v1245 = vadd.f32 0.0, %v1244
        %v1246 = vpop.f32.mrf.mxu0
        %v1247 = vadd.f32 0.0, %v1246
        %1248 = vmatmul.bf16.gmra.mxu0 %v1172
        %v1249 = vpop.f32.mrf.mxu0
        %v1250 = vadd.f32 0.0, %v1249
        %v1251 = vpop.f32.mrf.mxu0
        %v1252 = vadd.f32 0.0, %v1251
        %1253 = vmatmul.bf16.gmra.mxu0 %v1175
        %v1254 = vpop.f32.mrf.mxu0
        %v1255 = vadd.f32 0.0, %v1254
        %v1256 = vpop.f32.mrf.mxu0
        %v1257 = vadd.f32 0.0, %v1256
        %1258 = vmatmul.bf16.gmra.mxu0 %v1178
        %v1259 = vpop.f32.mrf.mxu0
        %v1260 = vadd.f32 0.0, %v1259
        %v1261 = vpop.f32.mrf.mxu0
        %v1262 = vadd.f32 0.0, %v1261
        %1263 = vmatmul.bf16.gmra.mxu0 %v1181
        %v1264 = vpop.f32.mrf.mxu0
        %v1265 = vadd.f32 0.0, %v1264
        %v1266 = vpop.f32.mrf.mxu0
        %v1267 = vadd.f32 0.0, %v1266
        %1268 = vmatmul.bf16.gmra.mxu0 %v1184
        %v1269 = vpop.f32.mrf.mxu0
        %v1270 = vadd.f32 0.0, %v1269
        %v1271 = vpop.f32.mrf.mxu0
        %v1272 = vadd.f32 0.0, %v1271
        %1273 = vmatmul.bf16.gmra.mxu0 %v1187
        %v1274 = vpop.f32.mrf.mxu0
        %v1275 = vadd.f32 0.0, %v1274
        %v1276 = vpop.f32.mrf.mxu0
        %v1277 = vadd.f32 0.0, %v1276
        %1278 = vmatmul.bf16.gmra.mxu0 %v1190
        %v1279 = vpop.f32.mrf.mxu0
        %v1280 = vadd.f32 0.0, %v1279
        %v1281 = vpop.f32.mrf.mxu0
        %v1282 = vadd.f32 0.0, %v1281
        %1283 = vdwg.mxu0
        %v1284 = vld [vmem:[#allocation3] sm:$0xff]
        %v1285 = vld [vmem:[#allocation3 + $0x8] sm:$0xff]
        %v1286 = vld [vmem:[#allocation3 + $0x10] sm:$0xff]
        %v1287 = vld [vmem:[#allocation3 + $0x18] sm:$0xff]
        %v1288 = vld [vmem:[#allocation3 + $0x20] sm:$0xff]
        %v1289 = vld [vmem:[#allocation3 + $0x28] sm:$0xff]
        %v1290 = vld [vmem:[#allocation3 + $0x30] sm:$0xff]
        %v1291 = vld [vmem:[#allocation3 + $0x38] sm:$0xff]
        %v1292 = vld [vmem:[#allocation3 + $0x40] sm:$0xff]
        %v1293 = vld [vmem:[#allocation3 + $0x48] sm:$0xff]
        %v1294 = vld [vmem:[#allocation3 + $0x50] sm:$0xff]
        %v1295 = vld [vmem:[#allocation3 + $0x58] sm:$0xff]
        %v1296 = vld [vmem:[#allocation3 + $0x60] sm:$0xff]
        %v1297 = vld [vmem:[#allocation3 + $0x68] sm:$0xff]
        %v1298 = vld [vmem:[#allocation3 + $0x70] sm:$0xff]
        %v1299 = vld [vmem:[#allocation3 + $0x78] sm:$0xff]
        %v1300 = vld [vmem:[#allocation3 + $0x80] sm:$0xff]
        %v1301 = vld [vmem:[#allocation3 + $0x88] sm:$0xff]
        %v1302 = vld [vmem:[#allocation3 + $0x90] sm:$0xff]
        %v1303 = vld [vmem:[#allocation3 + $0x98] sm:$0xff]
        %v1304 = vld [vmem:[#allocation3 + $0xa0] sm:$0xff]
        %v1305 = vld [vmem:[#allocation3 + $0xa8] sm:$0xff]
        %v1306 = vld [vmem:[#allocation3 + $0xb0] sm:$0xff]
        %v1307 = vld [vmem:[#allocation3 + $0xb8] sm:$0xff]
        %v1308 = vld [vmem:[#allocation3 + $0xc0] sm:$0xff]
        %v1309 = vld [vmem:[#allocation3 + $0xc8] sm:$0xff]
        %v1310 = vld [vmem:[#allocation3 + $0xd0] sm:$0xff]
        %v1311 = vld [vmem:[#allocation3 + $0xd8] sm:$0xff]
        %v1312 = vld [vmem:[#allocation3 + $0xe0] sm:$0xff]
        %v1313 = vld [vmem:[#allocation3 + $0xe8] sm:$0xff]
        %v1314 = vld [vmem:[#allocation3 + $0xf0] sm:$0xff]
        %v1315 = vld [vmem:[#allocation3 + $0xf8] sm:$0xff]
        %v1316 = vadd.f32 %v1284, %v1205
        %v1317 = vadd.f32 %v1285, %v1207
        %v1318 = vadd.f32 %v1286, %v1210
        %v1319 = vadd.f32 %v1287, %v1212
        %v1320 = vadd.f32 %v1288, %v1215
        %v1321 = vadd.f32 %v1289, %v1217
        %v1322 = vadd.f32 %v1290, %v1220
        %v1323 = vadd.f32 %v1291, %v1222
        %v1324 = vadd.f32 %v1292, %v1225
        %v1325 = vadd.f32 %v1293, %v1227
        %v1326 = vadd.f32 %v1294, %v1230
        %v1327 = vadd.f32 %v1295, %v1232
        %v1328 = vadd.f32 %v1296, %v1235
        %v1329 = vadd.f32 %v1297, %v1237
        %v1330 = vadd.f32 %v1298, %v1240
        %v1331 = vadd.f32 %v1299, %v1242
        %v1332 = vadd.f32 %v1300, %v1245
        %v1333 = vadd.f32 %v1301, %v1247
        %v1334 = vadd.f32 %v1302, %v1250
        %v1335 = vadd.f32 %v1303, %v1252
        %v1336 = vadd.f32 %v1304, %v1255
        %v1337 = vadd.f32 %v1305, %v1257
        %v1338 = vadd.f32 %v1306, %v1260
        %v1339 = vadd.f32 %v1307, %v1262
        %v1340 = vadd.f32 %v1308, %v1265
        %v1341 = vadd.f32 %v1309, %v1267
        %v1342 = vadd.f32 %v1310, %v1270
        %v1343 = vadd.f32 %v1311, %v1272
        %v1344 = vadd.f32 %v1312, %v1275
        %v1345 = vadd.f32 %v1313, %v1277
        %v1346 = vadd.f32 %v1314, %v1280
        %v1347 = vadd.f32 %v1315, %v1282
        %1348 = vst [vmem:[#allocation3] sm:$0xff] %v1316
        %1349 = vst [vmem:[#allocation3 + $0x8] sm:$0xff] %v1317
        %1350 = vst [vmem:[#allocation3 + $0x10] sm:$0xff] %v1318
        %1351 = vst [vmem:[#allocation3 + $0x18] sm:$0xff] %v1319
        %1352 = vst [vmem:[#allocation3 + $0x20] sm:$0xff] %v1320
        %1353 = vst [vmem:[#allocation3 + $0x28] sm:$0xff] %v1321
        %1354 = vst [vmem:[#allocation3 + $0x30] sm:$0xff] %v1322
        %1355 = vst [vmem:[#allocation3 + $0x38] sm:$0xff] %v1323
        %1356 = vst [vmem:[#allocation3 + $0x40] sm:$0xff] %v1324
        %1357 = vst [vmem:[#allocation3 + $0x48] sm:$0xff] %v1325
        %1358 = vst [vmem:[#allocation3 + $0x50] sm:$0xff] %v1326
        %1359 = vst [vmem:[#allocation3 + $0x58] sm:$0xff] %v1327
        %1360 = vst [vmem:[#allocation3 + $0x60] sm:$0xff] %v1328
        %1361 = vst [vmem:[#allocation3 + $0x68] sm:$0xff] %v1329
        %1362 = vst [vmem:[#allocation3 + $0x70] sm:$0xff] %v1330
        %1363 = vst [vmem:[#allocation3 + $0x78] sm:$0xff] %v1331
        %1364 = vst [vmem:[#allocation3 + $0x80] sm:$0xff] %v1332
        %1365 = vst [vmem:[#allocation3 + $0x88] sm:$0xff] %v1333
        %1366 = vst [vmem:[#allocation3 + $0x90] sm:$0xff] %v1334
        %1367 = vst [vmem:[#allocation3 + $0x98] sm:$0xff] %v1335
        %1368 = vst [vmem:[#allocation3 + $0xa0] sm:$0xff] %v1336
        %1369 = vst [vmem:[#allocation3 + $0xa8] sm:$0xff] %v1337
        %1370 = vst [vmem:[#allocation3 + $0xb0] sm:$0xff] %v1338
        %1371 = vst [vmem:[#allocation3 + $0xb8] sm:$0xff] %v1339
        %1372 = vst [vmem:[#allocation3 + $0xc0] sm:$0xff] %v1340
        %1373 = vst [vmem:[#allocation3 + $0xc8] sm:$0xff] %v1341
        %1374 = vst [vmem:[#allocation3 + $0xd0] sm:$0xff] %v1342
        %1375 = vst [vmem:[#allocation3 + $0xd8] sm:$0xff] %v1343
        %1376 = vst [vmem:[#allocation3 + $0xe0] sm:$0xff] %v1344
        %1377 = vst [vmem:[#allocation3 + $0xe8] sm:$0xff] %v1345
        %1378 = vst [vmem:[#allocation3 + $0xf0] sm:$0xff] %v1346
        %1379 = vst [vmem:[#allocation3 + $0xf8] sm:$0xff] %v1347
        %v1380 = vld [vmem:[%s529] sm:$0xff]
        %v1381 = vld [vmem:[%s529 + $0x8] sm:$0xff]
        %v1382 = vld [vmem:[%s529 + $0x18] sm:$0xff]
        %v1383 = vld [vmem:[%s529 + $0x20] sm:$0xff]
        %v1384 = vld [vmem:[%s529 + $0x30] sm:$0xff]
        %v1385 = vld [vmem:[%s529 + $0x38] sm:$0xff]
        %v1386 = vld [vmem:[%s529 + $0x48] sm:$0xff]
        %v1387 = vld [vmem:[%s529 + $0x50] sm:$0xff]
        %v1388 = vld [vmem:[%s529 + $0x60] sm:$0xff]
        %v1389 = vld [vmem:[%s529 + $0x68] sm:$0xff]
        %v1390 = vld [vmem:[%s529 + $0x78] sm:$0xff]
        %v1391 = vld [vmem:[%s529 + $0x80] sm:$0xff]
        %v1392 = vld [vmem:[%s529 + $0x90] sm:$0xff]
        %v1393 = vld [vmem:[%s529 + $0x98] sm:$0xff]
        %v1394 = vld [vmem:[%s529 + $0xa8] sm:$0xff]
        %v1395 = vld [vmem:[%s529 + $0xb0] sm:$0xff]
        %v1396 = vld [vmem:[%s529 + $0xc0] sm:$0xff]
        %v1397 = vld [vmem:[%s529 + $0xc8] sm:$0xff]
        %v1398 = vld [vmem:[%s529 + $0xd8] sm:$0xff]
        %v1399 = vld [vmem:[%s529 + $0xe0] sm:$0xff]
        %v1400 = vld [vmem:[%s529 + $0xf0] sm:$0xff]
        %v1401 = vld [vmem:[%s529 + $0xf8] sm:$0xff]
        %v1402 = vld [vmem:[%s529 + $0x108] sm:$0xff]
        %v1403 = vld [vmem:[%s529 + $0x110] sm:$0xff]
        %v1404 = vld [vmem:[%s529 + $0x120] sm:$0xff]
        %v1405 = vld [vmem:[%s529 + $0x128] sm:$0xff]
        %v1406 = vld [vmem:[%s529 + $0x138] sm:$0xff]
        %v1407 = vld [vmem:[%s529 + $0x140] sm:$0xff]
        %v1408 = vld [vmem:[%s529 + $0x150] sm:$0xff]
        %v1409 = vld [vmem:[%s529 + $0x158] sm:$0xff]
        %v1410 = vld [vmem:[%s529 + $0x168] sm:$0xff]
        %v1411 = vld [vmem:[%s529 + $0x170] sm:$0xff]
        %v1412 = vpack.c.bf16 %v1381, %v1380
        %v1413 = vpack.c.bf16 %v1383, %v1382
        %v1414 = vpack.c.bf16 %v1385, %v1384
        %v1415 = vpack.c.bf16 %v1387, %v1386
        %v1416 = vpack.c.bf16 %v1389, %v1388
        %v1417 = vpack.c.bf16 %v1391, %v1390
        %v1418 = vpack.c.bf16 %v1393, %v1392
        %v1419 = vpack.c.bf16 %v1395, %v1394
        %v1420 = vpack.c.bf16 %v1397, %v1396
        %v1421 = vpack.c.bf16 %v1399, %v1398
        %v1422 = vpack.c.bf16 %v1401, %v1400
        %v1423 = vpack.c.bf16 %v1403, %v1402
        %v1424 = vpack.c.bf16 %v1405, %v1404
        %v1425 = vpack.c.bf16 %v1407, %v1406
        %v1426 = vpack.c.bf16 %v1409, %v1408
        %v1427 = vpack.c.bf16 %v1411, %v1410
        %s1428 = scalar_lea.vmem %s3, 6
        %v1429 = vld [vmem:[%s1428] sm:$0x3]
        %v1431 = vsel %vm409, %v1412, 0
        %v1434 = vsel %vm409, %v1413, 0
        %v1437 = vsel %vm409, %v1414, 0
        %v1440 = vsel %vm409, %v1415, 0
        %v1443 = vsel %vm409, %v1416, 0
        %v1446 = vsel %vm409, %v1417, 0
        %v1449 = vsel %vm409, %v1418, 0
        %v1452 = vsel %vm409, %v1419, 0
        %v1455 = vsel %vm409, %v1420, 0
        %v1458 = vsel %vm409, %v1421, 0
        %v1461 = vsel %vm409, %v1422, 0
        %v1464 = vsel %vm409, %v1423, 0
        %v1467 = vsel %vm409, %v1424, 0
        %v1470 = vsel %vm409, %v1425, 0
        %v1473 = vsel %vm409, %v1426, 0
        %v1476 = vsel %vm409, %v1427, 0
        %v1479 = vand.u32 %v1429, %v683
        %1481 = vmatpush.bf16.msra.mxu0 0
        %1482 = vmatpush.bf16.msra.mxu0 0
        %1483 = vmatpush.bf16.msra.mxu0 0
        %1484 = vmatpush.bf16.msra.mxu0 0
        %1485 = vmatpush.bf16.msra.mxu0 0
        %1486 = vmatpush.bf16.msra.mxu0 0
        %1487 = vmatpush.bf16.msra.mxu0 0
        %1488 = vmatpush.bf16.msra.mxu0 %v1479
        %1489 = vmatmul.bf16.gmra.mxu0 %v1431
        %v1490 = vpop.f32.mrf.mxu0
        %v1491 = vadd.f32 0.0, %v1490
        %v1492 = vpop.f32.mrf.mxu0
        %v1493 = vadd.f32 0.0, %v1492
        %1494 = vmatmul.bf16.gmra.mxu0 %v1434
        %v1495 = vpop.f32.mrf.mxu0
        %v1496 = vadd.f32 0.0, %v1495
        %v1497 = vpop.f32.mrf.mxu0
        %v1498 = vadd.f32 0.0, %v1497
        %1499 = vmatmul.bf16.gmra.mxu0 %v1437
        %v1500 = vpop.f32.mrf.mxu0
        %v1501 = vadd.f32 0.0, %v1500
        %v1502 = vpop.f32.mrf.mxu0
        %v1503 = vadd.f32 0.0, %v1502
        %1504 = vmatmul.bf16.gmra.mxu0 %v1440
        %v1505 = vpop.f32.mrf.mxu0
        %v1506 = vadd.f32 0.0, %v1505
        %v1507 = vpop.f32.mrf.mxu0
        %v1508 = vadd.f32 0.0, %v1507
        %1509 = vmatmul.bf16.gmra.mxu0 %v1443
        %v1510 = vpop.f32.mrf.mxu0
        %v1511 = vadd.f32 0.0, %v1510
        %v1512 = vpop.f32.mrf.mxu0
        %v1513 = vadd.f32 0.0, %v1512
        %1514 = vmatmul.bf16.gmra.mxu0 %v1446
        %v1515 = vpop.f32.mrf.mxu0
        %v1516 = vadd.f32 0.0, %v1515
        %v1517 = vpop.f32.mrf.mxu0
        %v1518 = vadd.f32 0.0, %v1517
        %1519 = vmatmul.bf16.gmra.mxu0 %v1449
        %v1520 = vpop.f32.mrf.mxu0
        %v1521 = vadd.f32 0.0, %v1520
        %v1522 = vpop.f32.mrf.mxu0
        %v1523 = vadd.f32 0.0, %v1522
        %1524 = vmatmul.bf16.gmra.mxu0 %v1452
        %v1525 = vpop.f32.mrf.mxu0
        %v1526 = vadd.f32 0.0, %v1525
        %v1527 = vpop.f32.mrf.mxu0
        %v1528 = vadd.f32 0.0, %v1527
        %1529 = vmatmul.bf16.gmra.mxu0 %v1455
        %v1530 = vpop.f32.mrf.mxu0
        %v1531 = vadd.f32 0.0, %v1530
        %v1532 = vpop.f32.mrf.mxu0
        %v1533 = vadd.f32 0.0, %v1532
        %1534 = vmatmul.bf16.gmra.mxu0 %v1458
        %v1535 = vpop.f32.mrf.mxu0
        %v1536 = vadd.f32 0.0, %v1535
        %v1537 = vpop.f32.mrf.mxu0
        %v1538 = vadd.f32 0.0, %v1537
        %1539 = vmatmul.bf16.gmra.mxu0 %v1461
        %v1540 = vpop.f32.mrf.mxu0
        %v1541 = vadd.f32 0.0, %v1540
        %v1542 = vpop.f32.mrf.mxu0
        %v1543 = vadd.f32 0.0, %v1542
        %1544 = vmatmul.bf16.gmra.mxu0 %v1464
        %v1545 = vpop.f32.mrf.mxu0
        %v1546 = vadd.f32 0.0, %v1545
        %v1547 = vpop.f32.mrf.mxu0
        %v1548 = vadd.f32 0.0, %v1547
        %1549 = vmatmul.bf16.gmra.mxu0 %v1467
        %v1550 = vpop.f32.mrf.mxu0
        %v1551 = vadd.f32 0.0, %v1550
        %v1552 = vpop.f32.mrf.mxu0
        %v1553 = vadd.f32 0.0, %v1552
        %1554 = vmatmul.bf16.gmra.mxu0 %v1470
        %v1555 = vpop.f32.mrf.mxu0
        %v1556 = vadd.f32 0.0, %v1555
        %v1557 = vpop.f32.mrf.mxu0
        %v1558 = vadd.f32 0.0, %v1557
        %1559 = vmatmul.bf16.gmra.mxu0 %v1473
        %v1560 = vpop.f32.mrf.mxu0
        %v1561 = vadd.f32 0.0, %v1560
        %v1562 = vpop.f32.mrf.mxu0
        %v1563 = vadd.f32 0.0, %v1562
        %1564 = vmatmul.bf16.gmra.mxu0 %v1476
        %v1565 = vpop.f32.mrf.mxu0
        %v1566 = vadd.f32 0.0, %v1565
        %v1567 = vpop.f32.mrf.mxu0
        %v1568 = vadd.f32 0.0, %v1567
        %1569 = vdwg.mxu0
        %v1570 = vld [vmem:[#allocation3] sm:$0xff]
        %v1571 = vld [vmem:[#allocation3 + $0x8] sm:$0xff]
        %v1572 = vld [vmem:[#allocation3 + $0x10] sm:$0xff]
        %v1573 = vld [vmem:[#allocation3 + $0x18] sm:$0xff]
        %v1574 = vld [vmem:[#allocation3 + $0x20] sm:$0xff]
        %v1575 = vld [vmem:[#allocation3 + $0x28] sm:$0xff]
        %v1576 = vld [vmem:[#allocation3 + $0x30] sm:$0xff]
        %v1577 = vld [vmem:[#allocation3 + $0x38] sm:$0xff]
        %v1578 = vld [vmem:[#allocation3 + $0x40] sm:$0xff]
        %v1579 = vld [vmem:[#allocation3 + $0x48] sm:$0xff]
        %v1580 = vld [vmem:[#allocation3 + $0x50] sm:$0xff]
        %v1581 = vld [vmem:[#allocation3 + $0x58] sm:$0xff]
        %v1582 = vld [vmem:[#allocation3 + $0x60] sm:$0xff]
        %v1583 = vld [vmem:[#allocation3 + $0x68] sm:$0xff]
        %v1584 = vld [vmem:[#allocation3 + $0x70] sm:$0xff]
        %v1585 = vld [vmem:[#allocation3 + $0x78] sm:$0xff]
        %v1586 = vld [vmem:[#allocation3 + $0x80] sm:$0xff]
        %v1587 = vld [vmem:[#allocation3 + $0x88] sm:$0xff]
        %v1588 = vld [vmem:[#allocation3 + $0x90] sm:$0xff]
        %v1589 = vld [vmem:[#allocation3 + $0x98] sm:$0xff]
        %v1590 = vld [vmem:[#allocation3 + $0xa0] sm:$0xff]
        %v1591 = vld [vmem:[#allocation3 + $0xa8] sm:$0xff]
        %v1592 = vld [vmem:[#allocation3 + $0xb0] sm:$0xff]
        %v1593 = vld [vmem:[#allocation3 + $0xb8] sm:$0xff]
        %v1594 = vld [vmem:[#allocation3 + $0xc0] sm:$0xff]
        %v1595 = vld [vmem:[#allocation3 + $0xc8] sm:$0xff]
        %v1596 = vld [vmem:[#allocation3 + $0xd0] sm:$0xff]
        %v1597 = vld [vmem:[#allocation3 + $0xd8] sm:$0xff]
        %v1598 = vld [vmem:[#allocation3 + $0xe0] sm:$0xff]
        %v1599 = vld [vmem:[#allocation3 + $0xe8] sm:$0xff]
        %v1600 = vld [vmem:[#allocation3 + $0xf0] sm:$0xff]
        %v1601 = vld [vmem:[#allocation3 + $0xf8] sm:$0xff]
        %v1602 = vadd.f32 %v1570, %v1491
        %v1603 = vadd.f32 %v1571, %v1493
        %v1604 = vadd.f32 %v1572, %v1496
        %v1605 = vadd.f32 %v1573, %v1498
        %v1606 = vadd.f32 %v1574, %v1501
        %v1607 = vadd.f32 %v1575, %v1503
        %v1608 = vadd.f32 %v1576, %v1506
        %v1609 = vadd.f32 %v1577, %v1508
        %v1610 = vadd.f32 %v1578, %v1511
        %v1611 = vadd.f32 %v1579, %v1513
        %v1612 = vadd.f32 %v1580, %v1516
        %v1613 = vadd.f32 %v1581, %v1518
        %v1614 = vadd.f32 %v1582, %v1521
        %v1615 = vadd.f32 %v1583, %v1523
        %v1616 = vadd.f32 %v1584, %v1526
        %v1617 = vadd.f32 %v1585, %v1528
        %v1618 = vadd.f32 %v1586, %v1531
        %v1619 = vadd.f32 %v1587, %v1533
        %v1620 = vadd.f32 %v1588, %v1536
        %v1621 = vadd.f32 %v1589, %v1538
        %v1622 = vadd.f32 %v1590, %v1541
        %v1623 = vadd.f32 %v1591, %v1543
        %v1624 = vadd.f32 %v1592, %v1546
        %v1625 = vadd.f32 %v1593, %v1548
        %v1626 = vadd.f32 %v1594, %v1551
        %v1627 = vadd.f32 %v1595, %v1553
        %v1628 = vadd.f32 %v1596, %v1556
        %v1629 = vadd.f32 %v1597, %v1558
        %v1630 = vadd.f32 %v1598, %v1561
        %v1631 = vadd.f32 %v1599, %v1563
        %v1632 = vadd.f32 %v1600, %v1566
        %v1633 = vadd.f32 %v1601, %v1568
        %1634 = vst [vmem:[#allocation3] sm:$0xff] %v1602
        %1635 = vst [vmem:[#allocation3 + $0x8] sm:$0xff] %v1603
        %1636 = vst [vmem:[#allocation3 + $0x10] sm:$0xff] %v1604
        %1637 = vst [vmem:[#allocation3 + $0x18] sm:$0xff] %v1605
        %1638 = vst [vmem:[#allocation3 + $0x20] sm:$0xff] %v1606
        %1639 = vst [vmem:[#allocation3 + $0x28] sm:$0xff] %v1607
        %1640 = vst [vmem:[#allocation3 + $0x30] sm:$0xff] %v1608
        %1641 = vst [vmem:[#allocation3 + $0x38] sm:$0xff] %v1609
        %1642 = vst [vmem:[#allocation3 + $0x40] sm:$0xff] %v1610
        %1643 = vst [vmem:[#allocation3 + $0x48] sm:$0xff] %v1611
        %1644 = vst [vmem:[#allocation3 + $0x50] sm:$0xff] %v1612
        %1645 = vst [vmem:[#allocation3 + $0x58] sm:$0xff] %v1613
        %1646 = vst [vmem:[#allocation3 + $0x60] sm:$0xff] %v1614
        %1647 = vst [vmem:[#allocation3 + $0x68] sm:$0xff] %v1615
        %1648 = vst [vmem:[#allocation3 + $0x70] sm:$0xff] %v1616
        %1649 = vst [vmem:[#allocation3 + $0x78] sm:$0xff] %v1617
        %1650 = vst [vmem:[#allocation3 + $0x80] sm:$0xff] %v1618
        %1651 = vst [vmem:[#allocation3 + $0x88] sm:$0xff] %v1619
        %1652 = vst [vmem:[#allocation3 + $0x90] sm:$0xff] %v1620
        %1653 = vst [vmem:[#allocation3 + $0x98] sm:$0xff] %v1621
        %1654 = vst [vmem:[#allocation3 + $0xa0] sm:$0xff] %v1622
        %1655 = vst [vmem:[#allocation3 + $0xa8] sm:$0xff] %v1623
        %1656 = vst [vmem:[#allocation3 + $0xb0] sm:$0xff] %v1624
        %1657 = vst [vmem:[#allocation3 + $0xb8] sm:$0xff] %v1625
        %1658 = vst [vmem:[#allocation3 + $0xc0] sm:$0xff] %v1626
        %1659 = vst [vmem:[#allocation3 + $0xc8] sm:$0xff] %v1627
        %1660 = vst [vmem:[#allocation3 + $0xd0] sm:$0xff] %v1628
        %1661 = vst [vmem:[#allocation3 + $0xd8] sm:$0xff] %v1629
        %1662 = vst [vmem:[#allocation3 + $0xe0] sm:$0xff] %v1630
        %1663 = vst [vmem:[#allocation3 + $0xe8] sm:$0xff] %v1631
        %1664 = vst [vmem:[#allocation3 + $0xf0] sm:$0xff] %v1632
        %1665 = vst [vmem:[#allocation3 + $0xf8] sm:$0xff] %v1633
        %v1666 = vld [vmem:[%s529 + $0x1] sm:$0xff]
        %v1667 = vld [vmem:[%s529 + $0x9] sm:$0xff]
        %v1668 = vld [vmem:[%s529 + $0x19] sm:$0xff]
        %v1669 = vld [vmem:[%s529 + $0x21] sm:$0xff]
        %v1670 = vld [vmem:[%s529 + $0x31] sm:$0xff]
        %v1671 = vld [vmem:[%s529 + $0x39] sm:$0xff]
        %v1672 = vld [vmem:[%s529 + $0x49] sm:$0xff]
        %v1673 = vld [vmem:[%s529 + $0x51] sm:$0xff]
        %v1674 = vld [vmem:[%s529 + $0x61] sm:$0xff]
        %v1675 = vld [vmem:[%s529 + $0x69] sm:$0xff]
        %v1676 = vld [vmem:[%s529 + $0x79] sm:$0xff]
        %v1677 = vld [vmem:[%s529 + $0x81] sm:$0xff]
        %v1678 = vld [vmem:[%s529 + $0x91] sm:$0xff]
        %v1679 = vld [vmem:[%s529 + $0x99] sm:$0xff]
        %v1680 = vld [vmem:[%s529 + $0xa9] sm:$0xff]
        %v1681 = vld [vmem:[%s529 + $0xb1] sm:$0xff]
        %v1682 = vld [vmem:[%s529 + $0xc1] sm:$0xff]
        %v1683 = vld [vmem:[%s529 + $0xc9] sm:$0xff]
        %v1684 = vld [vmem:[%s529 + $0xd9] sm:$0xff]
        %v1685 = vld [vmem:[%s529 + $0xe1] sm:$0xff]
        %v1686 = vld [vmem:[%s529 + $0xf1] sm:$0xff]
        %v1687 = vld [vmem:[%s529 + $0xf9] sm:$0xff]
        %v1688 = vld [vmem:[%s529 + $0x109] sm:$0xff]
        %v1689 = vld [vmem:[%s529 + $0x111] sm:$0xff]
        %v1690 = vld [vmem:[%s529 + $0x121] sm:$0xff]
        %v1691 = vld [vmem:[%s529 + $0x129] sm:$0xff]
        %v1692 = vld [vmem:[%s529 + $0x139] sm:$0xff]
        %v1693 = vld [vmem:[%s529 + $0x141] sm:$0xff]
        %v1694 = vld [vmem:[%s529 + $0x151] sm:$0xff]
        %v1695 = vld [vmem:[%s529 + $0x159] sm:$0xff]
        %v1696 = vld [vmem:[%s529 + $0x169] sm:$0xff]
        %v1697 = vld [vmem:[%s529 + $0x171] sm:$0xff]
        %v1698 = vpack.c.bf16 %v1667, %v1666
        %v1699 = vpack.c.bf16 %v1669, %v1668
        %v1700 = vpack.c.bf16 %v1671, %v1670
        %v1701 = vpack.c.bf16 %v1673, %v1672
        %v1702 = vpack.c.bf16 %v1675, %v1674
        %v1703 = vpack.c.bf16 %v1677, %v1676
        %v1704 = vpack.c.bf16 %v1679, %v1678
        %v1705 = vpack.c.bf16 %v1681, %v1680
        %v1706 = vpack.c.bf16 %v1683, %v1682
        %v1707 = vpack.c.bf16 %v1685, %v1684
        %v1708 = vpack.c.bf16 %v1687, %v1686
        %v1709 = vpack.c.bf16 %v1689, %v1688
        %v1710 = vpack.c.bf16 %v1691, %v1690
        %v1711 = vpack.c.bf16 %v1693, %v1692
        %v1712 = vpack.c.bf16 %v1695, %v1694
        %v1713 = vpack.c.bf16 %v1697, %v1696
        %s1714 = scalar_lea.vmem %s3, 8
        %v1715 = vld [vmem:[%s1714] sm:$0x3]
        %v1717 = vsel %vm409, %v1698, 0
        %v1720 = vsel %vm409, %v1699, 0
        %v1723 = vsel %vm409, %v1700, 0
        %v1726 = vsel %vm409, %v1701, 0
        %v1729 = vsel %vm409, %v1702, 0
        %v1732 = vsel %vm409, %v1703, 0
        %v1735 = vsel %vm409, %v1704, 0
        %v1738 = vsel %vm409, %v1705, 0
        %v1741 = vsel %vm409, %v1706, 0
        %v1744 = vsel %vm409, %v1707, 0
        %v1747 = vsel %vm409, %v1708, 0
        %v1750 = vsel %vm409, %v1709, 0
        %v1753 = vsel %vm409, %v1710, 0
        %v1756 = vsel %vm409, %v1711, 0
        %v1759 = vsel %vm409, %v1712, 0
        %v1762 = vsel %vm409, %v1713, 0
        %v1765 = vand.u32 %v1715, %v683
        %1767 = vmatpush.bf16.msra.mxu0 0
        %1768 = vmatpush.bf16.msra.mxu0 0
        %1769 = vmatpush.bf16.msra.mxu0 0
        %1770 = vmatpush.bf16.msra.mxu0 0
        %1771 = vmatpush.bf16.msra.mxu0 0
        %1772 = vmatpush.bf16.msra.mxu0 0
        %1773 = vmatpush.bf16.msra.mxu0 0
        %1774 = vmatpush.bf16.msra.mxu0 %v1765
        %1775 = vmatmul.bf16.gmra.mxu0 %v1717
        %v1776 = vpop.f32.mrf.mxu0
        %v1777 = vadd.f32 0.0, %v1776
        %v1778 = vpop.f32.mrf.mxu0
        %v1779 = vadd.f32 0.0, %v1778
        %1780 = vmatmul.bf16.gmra.mxu0 %v1720
        %v1781 = vpop.f32.mrf.mxu0
        %v1782 = vadd.f32 0.0, %v1781
        %v1783 = vpop.f32.mrf.mxu0
        %v1784 = vadd.f32 0.0, %v1783
        %1785 = vmatmul.bf16.gmra.mxu0 %v1723
        %v1786 = vpop.f32.mrf.mxu0
        %v1787 = vadd.f32 0.0, %v1786
        %v1788 = vpop.f32.mrf.mxu0
        %v1789 = vadd.f32 0.0, %v1788
        %1790 = vmatmul.bf16.gmra.mxu0 %v1726
        %v1791 = vpop.f32.mrf.mxu0
        %v1792 = vadd.f32 0.0, %v1791
        %v1793 = vpop.f32.mrf.mxu0
        %v1794 = vadd.f32 0.0, %v1793
        %1795 = vmatmul.bf16.gmra.mxu0 %v1729
        %v1796 = vpop.f32.mrf.mxu0
        %v1797 = vadd.f32 0.0, %v1796
        %v1798 = vpop.f32.mrf.mxu0
        %v1799 = vadd.f32 0.0, %v1798
        %1800 = vmatmul.bf16.gmra.mxu0 %v1732
        %v1801 = vpop.f32.mrf.mxu0
        %v1802 = vadd.f32 0.0, %v1801
        %v1803 = vpop.f32.mrf.mxu0
        %v1804 = vadd.f32 0.0, %v1803
        %1805 = vmatmul.bf16.gmra.mxu0 %v1735
        %v1806 = vpop.f32.mrf.mxu0
        %v1807 = vadd.f32 0.0, %v1806
        %v1808 = vpop.f32.mrf.mxu0
        %v1809 = vadd.f32 0.0, %v1808
        %1810 = vmatmul.bf16.gmra.mxu0 %v1738
        %v1811 = vpop.f32.mrf.mxu0
        %v1812 = vadd.f32 0.0, %v1811
        %v1813 = vpop.f32.mrf.mxu0
        %v1814 = vadd.f32 0.0, %v1813
        %1815 = vmatmul.bf16.gmra.mxu0 %v1741
        %v1816 = vpop.f32.mrf.mxu0
        %v1817 = vadd.f32 0.0, %v1816
        %v1818 = vpop.f32.mrf.mxu0
        %v1819 = vadd.f32 0.0, %v1818
        %1820 = vmatmul.bf16.gmra.mxu0 %v1744
        %v1821 = vpop.f32.mrf.mxu0
        %v1822 = vadd.f32 0.0, %v1821
        %v1823 = vpop.f32.mrf.mxu0
        %v1824 = vadd.f32 0.0, %v1823
        %1825 = vmatmul.bf16.gmra.mxu0 %v1747
        %v1826 = vpop.f32.mrf.mxu0
        %v1827 = vadd.f32 0.0, %v1826
        %v1828 = vpop.f32.mrf.mxu0
        %v1829 = vadd.f32 0.0, %v1828
        %1830 = vmatmul.bf16.gmra.mxu0 %v1750
        %v1831 = vpop.f32.mrf.mxu0
        %v1832 = vadd.f32 0.0, %v1831
        %v1833 = vpop.f32.mrf.mxu0
        %v1834 = vadd.f32 0.0, %v1833
        %1835 = vmatmul.bf16.gmra.mxu0 %v1753
        %v1836 = vpop.f32.mrf.mxu0
        %v1837 = vadd.f32 0.0, %v1836
        %v1838 = vpop.f32.mrf.mxu0
        %v1839 = vadd.f32 0.0, %v1838
        %1840 = vmatmul.bf16.gmra.mxu0 %v1756
        %v1841 = vpop.f32.mrf.mxu0
        %v1842 = vadd.f32 0.0, %v1841
        %v1843 = vpop.f32.mrf.mxu0
        %v1844 = vadd.f32 0.0, %v1843
        %1845 = vmatmul.bf16.gmra.mxu0 %v1759
        %v1846 = vpop.f32.mrf.mxu0
        %v1847 = vadd.f32 0.0, %v1846
        %v1848 = vpop.f32.mrf.mxu0
        %v1849 = vadd.f32 0.0, %v1848
        %1850 = vmatmul.bf16.gmra.mxu0 %v1762
        %v1851 = vpop.f32.mrf.mxu0
        %v1852 = vadd.f32 0.0, %v1851
        %v1853 = vpop.f32.mrf.mxu0
        %v1854 = vadd.f32 0.0, %v1853
        %1855 = vdwg.mxu0
        %v1856 = vld [vmem:[#allocation3] sm:$0xff]
        %v1857 = vld [vmem:[#allocation3 + $0x8] sm:$0xff]
        %v1858 = vld [vmem:[#allocation3 + $0x10] sm:$0xff]
        %v1859 = vld [vmem:[#allocation3 + $0x18] sm:$0xff]
        %v1860 = vld [vmem:[#allocation3 + $0x20] sm:$0xff]
        %v1861 = vld [vmem:[#allocation3 + $0x28] sm:$0xff]
        %v1862 = vld [vmem:[#allocation3 + $0x30] sm:$0xff]
        %v1863 = vld [vmem:[#allocation3 + $0x38] sm:$0xff]
        %v1864 = vld [vmem:[#allocation3 + $0x40] sm:$0xff]
        %v1865 = vld [vmem:[#allocation3 + $0x48] sm:$0xff]
        %v1866 = vld [vmem:[#allocation3 + $0x50] sm:$0xff]
        %v1867 = vld [vmem:[#allocation3 + $0x58] sm:$0xff]
        %v1868 = vld [vmem:[#allocation3 + $0x60] sm:$0xff]
        %v1869 = vld [vmem:[#allocation3 + $0x68] sm:$0xff]
        %v1870 = vld [vmem:[#allocation3 + $0x70] sm:$0xff]
        %v1871 = vld [vmem:[#allocation3 + $0x78] sm:$0xff]
        %v1872 = vld [vmem:[#allocation3 + $0x80] sm:$0xff]
        %v1873 = vld [vmem:[#allocation3 + $0x88] sm:$0xff]
        %v1874 = vld [vmem:[#allocation3 + $0x90] sm:$0xff]
        %v1875 = vld [vmem:[#allocation3 + $0x98] sm:$0xff]
        %v1876 = vld [vmem:[#allocation3 + $0xa0] sm:$0xff]
        %v1877 = vld [vmem:[#allocation3 + $0xa8] sm:$0xff]
        %v1878 = vld [vmem:[#allocation3 + $0xb0] sm:$0xff]
        %v1879 = vld [vmem:[#allocation3 + $0xb8] sm:$0xff]
        %v1880 = vld [vmem:[#allocation3 + $0xc0] sm:$0xff]
        %v1881 = vld [vmem:[#allocation3 + $0xc8] sm:$0xff]
        %v1882 = vld [vmem:[#allocation3 + $0xd0] sm:$0xff]
        %v1883 = vld [vmem:[#allocation3 + $0xd8] sm:$0xff]
        %v1884 = vld [vmem:[#allocation3 + $0xe0] sm:$0xff]
        %v1885 = vld [vmem:[#allocation3 + $0xe8] sm:$0xff]
        %v1886 = vld [vmem:[#allocation3 + $0xf0] sm:$0xff]
        %v1887 = vld [vmem:[#allocation3 + $0xf8] sm:$0xff]
        %v1888 = vadd.f32 %v1856, %v1777
        %v1889 = vadd.f32 %v1857, %v1779
        %v1890 = vadd.f32 %v1858, %v1782
        %v1891 = vadd.f32 %v1859, %v1784
        %v1892 = vadd.f32 %v1860, %v1787
        %v1893 = vadd.f32 %v1861, %v1789
        %v1894 = vadd.f32 %v1862, %v1792
        %v1895 = vadd.f32 %v1863, %v1794
        %v1896 = vadd.f32 %v1864, %v1797
        %v1897 = vadd.f32 %v1865, %v1799
        %v1898 = vadd.f32 %v1866, %v1802
        %v1899 = vadd.f32 %v1867, %v1804
        %v1900 = vadd.f32 %v1868, %v1807
        %v1901 = vadd.f32 %v1869, %v1809
        %v1902 = vadd.f32 %v1870, %v1812
        %v1903 = vadd.f32 %v1871, %v1814
        %v1904 = vadd.f32 %v1872, %v1817
        %v1905 = vadd.f32 %v1873, %v1819
        %v1906 = vadd.f32 %v1874, %v1822
        %v1907 = vadd.f32 %v1875, %v1824
        %v1908 = vadd.f32 %v1876, %v1827
        %v1909 = vadd.f32 %v1877, %v1829
        %v1910 = vadd.f32 %v1878, %v1832
        %v1911 = vadd.f32 %v1879, %v1834
        %v1912 = vadd.f32 %v1880, %v1837
        %v1913 = vadd.f32 %v1881, %v1839
        %v1914 = vadd.f32 %v1882, %v1842
        %v1915 = vadd.f32 %v1883, %v1844
        %v1916 = vadd.f32 %v1884, %v1847
        %v1917 = vadd.f32 %v1885, %v1849
        %v1918 = vadd.f32 %v1886, %v1852
        %v1919 = vadd.f32 %v1887, %v1854
        %1920 = vst [vmem:[#allocation3] sm:$0xff] %v1888
        %1921 = vst [vmem:[#allocation3 + $0x8] sm:$0xff] %v1889
        %1922 = vst [vmem:[#allocation3 + $0x10] sm:$0xff] %v1890
        %1923 = vst [vmem:[#allocation3 + $0x18] sm:$0xff] %v1891
        %1924 = vst [vmem:[#allocation3 + $0x20] sm:$0xff] %v1892
        %1925 = vst [vmem:[#allocation3 + $0x28] sm:$0xff] %v1893
        %1926 = vst [vmem:[#allocation3 + $0x30] sm:$0xff] %v1894
        %1927 = vst [vmem:[#allocation3 + $0x38] sm:$0xff] %v1895
        %1928 = vst [vmem:[#allocation3 + $0x40] sm:$0xff] %v1896
        %1929 = vst [vmem:[#allocation3 + $0x48] sm:$0xff] %v1897
        %1930 = vst [vmem:[#allocation3 + $0x50] sm:$0xff] %v1898
        %1931 = vst [vmem:[#allocation3 + $0x58] sm:$0xff] %v1899
        %1932 = vst [vmem:[#allocation3 + $0x60] sm:$0xff] %v1900
        %1933 = vst [vmem:[#allocation3 + $0x68] sm:$0xff] %v1901
        %1934 = vst [vmem:[#allocation3 + $0x70] sm:$0xff] %v1902
        %1935 = vst [vmem:[#allocation3 + $0x78] sm:$0xff] %v1903
        %1936 = vst [vmem:[#allocation3 + $0x80] sm:$0xff] %v1904
        %1937 = vst [vmem:[#allocation3 + $0x88] sm:$0xff] %v1905
        %1938 = vst [vmem:[#allocation3 + $0x90] sm:$0xff] %v1906
        %1939 = vst [vmem:[#allocation3 + $0x98] sm:$0xff] %v1907
        %1940 = vst [vmem:[#allocation3 + $0xa0] sm:$0xff] %v1908
        %1941 = vst [vmem:[#allocation3 + $0xa8] sm:$0xff] %v1909
        %1942 = vst [vmem:[#allocation3 + $0xb0] sm:$0xff] %v1910
        %1943 = vst [vmem:[#allocation3 + $0xb8] sm:$0xff] %v1911
        %1944 = vst [vmem:[#allocation3 + $0xc0] sm:$0xff] %v1912
        %1945 = vst [vmem:[#allocation3 + $0xc8] sm:$0xff] %v1913
        %1946 = vst [vmem:[#allocation3 + $0xd0] sm:$0xff] %v1914
        %1947 = vst [vmem:[#allocation3 + $0xd8] sm:$0xff] %v1915
        %1948 = vst [vmem:[#allocation3 + $0xe0] sm:$0xff] %v1916
        %1949 = vst [vmem:[#allocation3 + $0xe8] sm:$0xff] %v1917
        %1950 = vst [vmem:[#allocation3 + $0xf0] sm:$0xff] %v1918
        %1951 = vst [vmem:[#allocation3 + $0xf8] sm:$0xff] %v1919
        %v1952 = vld [vmem:[%s529 + $0x2] sm:$0xff]
        %v1953 = vld [vmem:[%s529 + $0xa] sm:$0xff]
        %v1954 = vld [vmem:[%s529 + $0x1a] sm:$0xff]
        %v1955 = vld [vmem:[%s529 + $0x22] sm:$0xff]
        %v1956 = vld [vmem:[%s529 + $0x32] sm:$0xff]
        %v1957 = vld [vmem:[%s529 + $0x3a] sm:$0xff]
        %v1958 = vld [vmem:[%s529 + $0x4a] sm:$0xff]
        %v1959 = vld [vmem:[%s529 + $0x52] sm:$0xff]
        %v1960 = vld [vmem:[%s529 + $0x62] sm:$0xff]
        %v1961 = vld [vmem:[%s529 + $0x6a] sm:$0xff]
        %v1962 = vld [vmem:[%s529 + $0x7a] sm:$0xff]
        %v1963 = vld [vmem:[%s529 + $0x82] sm:$0xff]
        %v1964 = vld [vmem:[%s529 + $0x92] sm:$0xff]
        %v1965 = vld [vmem:[%s529 + $0x9a] sm:$0xff]
        %v1966 = vld [vmem:[%s529 + $0xaa] sm:$0xff]
        %v1967 = vld [vmem:[%s529 + $0xb2] sm:$0xff]
        %v1968 = vld [vmem:[%s529 + $0xc2] sm:$0xff]
        %v1969 = vld [vmem:[%s529 + $0xca] sm:$0xff]
        %v1970 = vld [vmem:[%s529 + $0xda] sm:$0xff]
        %v1971 = vld [vmem:[%s529 + $0xe2] sm:$0xff]
        %v1972 = vld [vmem:[%s529 + $0xf2] sm:$0xff]
        %v1973 = vld [vmem:[%s529 + $0xfa] sm:$0xff]
        %v1974 = vld [vmem:[%s529 + $0x10a] sm:$0xff]
        %v1975 = vld [vmem:[%s529 + $0x112] sm:$0xff]
        %v1976 = vld [vmem:[%s529 + $0x122] sm:$0xff]
        %v1977 = vld [vmem:[%s529 + $0x12a] sm:$0xff]
        %v1978 = vld [vmem:[%s529 + $0x13a] sm:$0xff]
        %v1979 = vld [vmem:[%s529 + $0x142] sm:$0xff]
        %v1980 = vld [vmem:[%s529 + $0x152] sm:$0xff]
        %v1981 = vld [vmem:[%s529 + $0x15a] sm:$0xff]
        %v1982 = vld [vmem:[%s529 + $0x16a] sm:$0xff]
        %v1983 = vld [vmem:[%s529 + $0x172] sm:$0xff]
        %v1984 = vpack.c.bf16 %v1953, %v1952
        %v1985 = vpack.c.bf16 %v1955, %v1954
        %v1986 = vpack.c.bf16 %v1957, %v1956
        %v1987 = vpack.c.bf16 %v1959, %v1958
        %v1988 = vpack.c.bf16 %v1961, %v1960
        %v1989 = vpack.c.bf16 %v1963, %v1962
        %v1990 = vpack.c.bf16 %v1965, %v1964
        %v1991 = vpack.c.bf16 %v1967, %v1966
        %v1992 = vpack.c.bf16 %v1969, %v1968
        %v1993 = vpack.c.bf16 %v1971, %v1970
        %v1994 = vpack.c.bf16 %v1973, %v1972
        %v1995 = vpack.c.bf16 %v1975, %v1974
        %v1996 = vpack.c.bf16 %v1977, %v1976
        %v1997 = vpack.c.bf16 %v1979, %v1978
        %v1998 = vpack.c.bf16 %v1981, %v1980
        %v1999 = vpack.c.bf16 %v1983, %v1982
        %s2000 = scalar_lea.vmem %s3, 10
        %v2001 = vld [vmem:[%s2000] sm:$0x3]
        %v2003 = vsel %vm409, %v1984, 0
        %v2006 = vsel %vm409, %v1985, 0
        %v2009 = vsel %vm409, %v1986, 0
        %v2012 = vsel %vm409, %v1987, 0
        %v2015 = vsel %vm409, %v1988, 0
        %v2018 = vsel %vm409, %v1989, 0
        %v2021 = vsel %vm409, %v1990, 0
        %v2024 = vsel %vm409, %v1991, 0
        %v2027 = vsel %vm409, %v1992, 0
        %v2030 = vsel %vm409, %v1993, 0
        %v2033 = vsel %vm409, %v1994, 0
        %v2036 = vsel %vm409, %v1995, 0
        %v2039 = vsel %vm409, %v1996, 0
        %v2042 = vsel %vm409, %v1997, 0
        %v2045 = vsel %vm409, %v1998, 0
        %v2048 = vsel %vm409, %v1999, 0
        %v2051 = vand.u32 %v2001, %v683
        %2053 = vmatpush.bf16.msra.mxu0 0
        %2054 = vmatpush.bf16.msra.mxu0 0
        %2055 = vmatpush.bf16.msra.mxu0 0
        %2056 = vmatpush.bf16.msra.mxu0 0
        %2057 = vmatpush.bf16.msra.mxu0 0
        %2058 = vmatpush.bf16.msra.mxu0 0
        %2059 = vmatpush.bf16.msra.mxu0 0
        %2060 = vmatpush.bf16.msra.mxu0 %v2051
        %2061 = vmatmul.bf16.gmra.mxu0 %v2003
        %v2062 = vpop.f32.mrf.mxu0
        %v2063 = vadd.f32 0.0, %v2062
        %v2064 = vpop.f32.mrf.mxu0
        %v2065 = vadd.f32 0.0, %v2064
        %2066 = vmatmul.bf16.gmra.mxu0 %v2006
        %v2067 = vpop.f32.mrf.mxu0
        %v2068 = vadd.f32 0.0, %v2067
        %v2069 = vpop.f32.mrf.mxu0
        %v2070 = vadd.f32 0.0, %v2069
        %2071 = vmatmul.bf16.gmra.mxu0 %v2009
        %v2072 = vpop.f32.mrf.mxu0
        %v2073 = vadd.f32 0.0, %v2072
        %v2074 = vpop.f32.mrf.mxu0
        %v2075 = vadd.f32 0.0, %v2074
        %2076 = vmatmul.bf16.gmra.mxu0 %v2012
        %v2077 = vpop.f32.mrf.mxu0
        %v2078 = vadd.f32 0.0, %v2077
        %v2079 = vpop.f32.mrf.mxu0
        %v2080 = vadd.f32 0.0, %v2079
        %2081 = vmatmul.bf16.gmra.mxu0 %v2015
        %v2082 = vpop.f32.mrf.mxu0
        %v2083 = vadd.f32 0.0, %v2082
        %v2084 = vpop.f32.mrf.mxu0
        %v2085 = vadd.f32 0.0, %v2084
        %2086 = vmatmul.bf16.gmra.mxu0 %v2018
        %v2087 = vpop.f32.mrf.mxu0
        %v2088 = vadd.f32 0.0, %v2087
        %v2089 = vpop.f32.mrf.mxu0
        %v2090 = vadd.f32 0.0, %v2089
        %2091 = vmatmul.bf16.gmra.mxu0 %v2021
        %v2092 = vpop.f32.mrf.mxu0
        %v2093 = vadd.f32 0.0, %v2092
        %v2094 = vpop.f32.mrf.mxu0
        %v2095 = vadd.f32 0.0, %v2094
        %2096 = vmatmul.bf16.gmra.mxu0 %v2024
        %v2097 = vpop.f32.mrf.mxu0
        %v2098 = vadd.f32 0.0, %v2097
        %v2099 = vpop.f32.mrf.mxu0
        %v2100 = vadd.f32 0.0, %v2099
        %2101 = vmatmul.bf16.gmra.mxu0 %v2027
        %v2102 = vpop.f32.mrf.mxu0
        %v2103 = vadd.f32 0.0, %v2102
        %v2104 = vpop.f32.mrf.mxu0
        %v2105 = vadd.f32 0.0, %v2104
        %2106 = vmatmul.bf16.gmra.mxu0 %v2030
        %v2107 = vpop.f32.mrf.mxu0
        %v2108 = vadd.f32 0.0, %v2107
        %v2109 = vpop.f32.mrf.mxu0
        %v2110 = vadd.f32 0.0, %v2109
        %2111 = vmatmul.bf16.gmra.mxu0 %v2033
        %v2112 = vpop.f32.mrf.mxu0
        %v2113 = vadd.f32 0.0, %v2112
        %v2114 = vpop.f32.mrf.mxu0
        %v2115 = vadd.f32 0.0, %v2114
        %2116 = vmatmul.bf16.gmra.mxu0 %v2036
        %v2117 = vpop.f32.mrf.mxu0
        %v2118 = vadd.f32 0.0, %v2117
        %v2119 = vpop.f32.mrf.mxu0
        %v2120 = vadd.f32 0.0, %v2119
        %2121 = vmatmul.bf16.gmra.mxu0 %v2039
        %v2122 = vpop.f32.mrf.mxu0
        %v2123 = vadd.f32 0.0, %v2122
        %v2124 = vpop.f32.mrf.mxu0
        %v2125 = vadd.f32 0.0, %v2124
        %2126 = vmatmul.bf16.gmra.mxu0 %v2042
        %v2127 = vpop.f32.mrf.mxu0
        %v2128 = vadd.f32 0.0, %v2127
        %v2129 = vpop.f32.mrf.mxu0
        %v2130 = vadd.f32 0.0, %v2129
        %2131 = vmatmul.bf16.gmra.mxu0 %v2045
        %v2132 = vpop.f32.mrf.mxu0
        %v2133 = vadd.f32 0.0, %v2132
        %v2134 = vpop.f32.mrf.mxu0
        %v2135 = vadd.f32 0.0, %v2134
        %2136 = vmatmul.bf16.gmra.mxu0 %v2048
        %v2137 = vpop.f32.mrf.mxu0
        %v2138 = vadd.f32 0.0, %v2137
        %v2139 = vpop.f32.mrf.mxu0
        %v2140 = vadd.f32 0.0, %v2139
        %2141 = vdwg.mxu0
        %v2142 = vld [vmem:[#allocation3] sm:$0xff]
        %v2143 = vld [vmem:[#allocation3 + $0x8] sm:$0xff]
        %v2144 = vld [vmem:[#allocation3 + $0x10] sm:$0xff]
        %v2145 = vld [vmem:[#allocation3 + $0x18] sm:$0xff]
        %v2146 = vld [vmem:[#allocation3 + $0x20] sm:$0xff]
        %v2147 = vld [vmem:[#allocation3 + $0x28] sm:$0xff]
        %v2148 = vld [vmem:[#allocation3 + $0x30] sm:$0xff]
        %v2149 = vld [vmem:[#allocation3 + $0x38] sm:$0xff]
        %v2150 = vld [vmem:[#allocation3 + $0x40] sm:$0xff]
        %v2151 = vld [vmem:[#allocation3 + $0x48] sm:$0xff]
        %v2152 = vld [vmem:[#allocation3 + $0x50] sm:$0xff]
        %v2153 = vld [vmem:[#allocation3 + $0x58] sm:$0xff]
        %v2154 = vld [vmem:[#allocation3 + $0x60] sm:$0xff]
        %v2155 = vld [vmem:[#allocation3 + $0x68] sm:$0xff]
        %v2156 = vld [vmem:[#allocation3 + $0x70] sm:$0xff]
        %v2157 = vld [vmem:[#allocation3 + $0x78] sm:$0xff]
        %v2158 = vld [vmem:[#allocation3 + $0x80] sm:$0xff]
        %v2159 = vld [vmem:[#allocation3 + $0x88] sm:$0xff]
        %v2160 = vld [vmem:[#allocation3 + $0x90] sm:$0xff]
        %v2161 = vld [vmem:[#allocation3 + $0x98] sm:$0xff]
        %v2162 = vld [vmem:[#allocation3 + $0xa0] sm:$0xff]
        %v2163 = vld [vmem:[#allocation3 + $0xa8] sm:$0xff]
        %v2164 = vld [vmem:[#allocation3 + $0xb0] sm:$0xff]
        %v2165 = vld [vmem:[#allocation3 + $0xb8] sm:$0xff]
        %v2166 = vld [vmem:[#allocation3 + $0xc0] sm:$0xff]
        %v2167 = vld [vmem:[#allocation3 + $0xc8] sm:$0xff]
        %v2168 = vld [vmem:[#allocation3 + $0xd0] sm:$0xff]
        %v2169 = vld [vmem:[#allocation3 + $0xd8] sm:$0xff]
        %v2170 = vld [vmem:[#allocation3 + $0xe0] sm:$0xff]
        %v2171 = vld [vmem:[#allocation3 + $0xe8] sm:$0xff]
        %v2172 = vld [vmem:[#allocation3 + $0xf0] sm:$0xff]
        %v2173 = vld [vmem:[#allocation3 + $0xf8] sm:$0xff]
        %v2174 = vadd.f32 %v2142, %v2063
        %v2175 = vadd.f32 %v2143, %v2065
        %v2176 = vadd.f32 %v2144, %v2068
        %v2177 = vadd.f32 %v2145, %v2070
        %v2178 = vadd.f32 %v2146, %v2073
        %v2179 = vadd.f32 %v2147, %v2075
        %v2180 = vadd.f32 %v2148, %v2078
        %v2181 = vadd.f32 %v2149, %v2080
        %v2182 = vadd.f32 %v2150, %v2083
        %v2183 = vadd.f32 %v2151, %v2085
        %v2184 = vadd.f32 %v2152, %v2088
        %v2185 = vadd.f32 %v2153, %v2090
        %v2186 = vadd.f32 %v2154, %v2093
        %v2187 = vadd.f32 %v2155, %v2095
        %v2188 = vadd.f32 %v2156, %v2098
        %v2189 = vadd.f32 %v2157, %v2100
        %v2190 = vadd.f32 %v2158, %v2103
        %v2191 = vadd.f32 %v2159, %v2105
        %v2192 = vadd.f32 %v2160, %v2108
        %v2193 = vadd.f32 %v2161, %v2110
        %v2194 = vadd.f32 %v2162, %v2113
        %v2195 = vadd.f32 %v2163, %v2115
        %v2196 = vadd.f32 %v2164, %v2118
        %v2197 = vadd.f32 %v2165, %v2120
        %v2198 = vadd.f32 %v2166, %v2123
        %v2199 = vadd.f32 %v2167, %v2125
        %v2200 = vadd.f32 %v2168, %v2128
        %v2201 = vadd.f32 %v2169, %v2130
        %v2202 = vadd.f32 %v2170, %v2133
        %v2203 = vadd.f32 %v2171, %v2135
        %v2204 = vadd.f32 %v2172, %v2138
        %v2205 = vadd.f32 %v2173, %v2140
        %2206 = vst [vmem:[#allocation3] sm:$0xff] %v2174
        %2207 = vst [vmem:[#allocation3 + $0x8] sm:$0xff] %v2175
        %2208 = vst [vmem:[#allocation3 + $0x10] sm:$0xff] %v2176
        %2209 = vst [vmem:[#allocation3 + $0x18] sm:$0xff] %v2177
        %2210 = vst [vmem:[#allocation3 + $0x20] sm:$0xff] %v2178
        %2211 = vst [vmem:[#allocation3 + $0x28] sm:$0xff] %v2179
        %2212 = vst [vmem:[#allocation3 + $0x30] sm:$0xff] %v2180
        %2213 = vst [vmem:[#allocation3 + $0x38] sm:$0xff] %v2181
        %2214 = vst [vmem:[#allocation3 + $0x40] sm:$0xff] %v2182
        %2215 = vst [vmem:[#allocation3 + $0x48] sm:$0xff] %v2183
        %2216 = vst [vmem:[#allocation3 + $0x50] sm:$0xff] %v2184
        %2217 = vst [vmem:[#allocation3 + $0x58] sm:$0xff] %v2185
        %2218 = vst [vmem:[#allocation3 + $0x60] sm:$0xff] %v2186
        %2219 = vst [vmem:[#allocation3 + $0x68] sm:$0xff] %v2187
        %2220 = vst [vmem:[#allocation3 + $0x70] sm:$0xff] %v2188
        %2221 = vst [vmem:[#allocation3 + $0x78] sm:$0xff] %v2189
        %2222 = vst [vmem:[#allocation3 + $0x80] sm:$0xff] %v2190
        %2223 = vst [vmem:[#allocation3 + $0x88] sm:$0xff] %v2191
        %2224 = vst [vmem:[#allocation3 + $0x90] sm:$0xff] %v2192
        %2225 = vst [vmem:[#allocation3 + $0x98] sm:$0xff] %v2193
        %2226 = vst [vmem:[#allocation3 + $0xa0] sm:$0xff] %v2194
        %2227 = vst [vmem:[#allocation3 + $0xa8] sm:$0xff] %v2195
        %2228 = vst [vmem:[#allocation3 + $0xb0] sm:$0xff] %v2196
        %2229 = vst [vmem:[#allocation3 + $0xb8] sm:$0xff] %v2197
        %2230 = vst [vmem:[#allocation3 + $0xc0] sm:$0xff] %v2198
        %2231 = vst [vmem:[#allocation3 + $0xc8] sm:$0xff] %v2199
        %2232 = vst [vmem:[#allocation3 + $0xd0] sm:$0xff] %v2200
        %2233 = vst [vmem:[#allocation3 + $0xd8] sm:$0xff] %v2201
        %2234 = vst [vmem:[#allocation3 + $0xe0] sm:$0xff] %v2202
        %2235 = vst [vmem:[#allocation3 + $0xe8] sm:$0xff] %v2203
        %2236 = vst [vmem:[#allocation3 + $0xf0] sm:$0xff] %v2204
        %2237 = vst [vmem:[#allocation3 + $0xf8] sm:$0xff] %v2205
        %s2238 = scalar_lea.vmem [#allocation2], 48
        %v2239 = vld [vmem:[%s2238] sm:$0xff]
        %v2240 = vld [vmem:[%s2238 + $0x8] sm:$0xff]
        %v2241 = vld [vmem:[%s2238 + $0x18] sm:$0xff]
        %v2242 = vld [vmem:[%s2238 + $0x20] sm:$0xff]
        %v2243 = vld [vmem:[%s2238 + $0x30] sm:$0xff]
        %v2244 = vld [vmem:[%s2238 + $0x38] sm:$0xff]
        %v2245 = vld [vmem:[%s2238 + $0x48] sm:$0xff]
        %v2246 = vld [vmem:[%s2238 + $0x50] sm:$0xff]
        %v2247 = vld [vmem:[%s2238 + $0x60] sm:$0xff]
        %v2248 = vld [vmem:[%s2238 + $0x68] sm:$0xff]
        %v2249 = vld [vmem:[%s2238 + $0x78] sm:$0xff]
        %v2250 = vld [vmem:[%s2238 + $0x80] sm:$0xff]
        %v2251 = vld [vmem:[%s2238 + $0x90] sm:$0xff]
        %v2252 = vld [vmem:[%s2238 + $0x98] sm:$0xff]
        %v2253 = vld [vmem:[%s2238 + $0xa8] sm:$0xff]
        %v2254 = vld [vmem:[%s2238 + $0xb0] sm:$0xff]
        %v2255 = vld [vmem:[%s2238 + $0xc0] sm:$0xff]
        %v2256 = vld [vmem:[%s2238 + $0xc8] sm:$0xff]
        %v2257 = vld [vmem:[%s2238 + $0xd8] sm:$0xff]
        %v2258 = vld [vmem:[%s2238 + $0xe0] sm:$0xff]
        %v2259 = vld [vmem:[%s2238 + $0xf0] sm:$0xff]
        %v2260 = vld [vmem:[%s2238 + $0xf8] sm:$0xff]
        %v2261 = vld [vmem:[%s2238 + $0x108] sm:$0xff]
        %v2262 = vld [vmem:[%s2238 + $0x110] sm:$0xff]
        %v2263 = vld [vmem:[%s2238 + $0x120] sm:$0xff]
        %v2264 = vld [vmem:[%s2238 + $0x128] sm:$0xff]
        %v2265 = vld [vmem:[%s2238 + $0x138] sm:$0xff]
        %v2266 = vld [vmem:[%s2238 + $0x140] sm:$0xff]
        %v2267 = vld [vmem:[%s2238 + $0x150] sm:$0xff]
        %v2268 = vld [vmem:[%s2238 + $0x158] sm:$0xff]
        %v2269 = vld [vmem:[%s2238 + $0x168] sm:$0xff]
        %v2270 = vld [vmem:[%s2238 + $0x170] sm:$0xff]
        %v2271 = vpack.c.bf16 %v2240, %v2239
        %v2272 = vpack.c.bf16 %v2242, %v2241
        %v2273 = vpack.c.bf16 %v2244, %v2243
        %v2274 = vpack.c.bf16 %v2246, %v2245
        %v2275 = vpack.c.bf16 %v2248, %v2247
        %v2276 = vpack.c.bf16 %v2250, %v2249
        %v2277 = vpack.c.bf16 %v2252, %v2251
        %v2278 = vpack.c.bf16 %v2254, %v2253
        %v2279 = vpack.c.bf16 %v2256, %v2255
        %v2280 = vpack.c.bf16 %v2258, %v2257
        %v2281 = vpack.c.bf16 %v2260, %v2259
        %v2282 = vpack.c.bf16 %v2262, %v2261
        %v2283 = vpack.c.bf16 %v2264, %v2263
        %v2284 = vpack.c.bf16 %v2266, %v2265
        %v2285 = vpack.c.bf16 %v2268, %v2267
        %v2286 = vpack.c.bf16 %v2270, %v2269
        %s2287 = scalar_lea.vmem %s3, 12
        %v2288 = vld [vmem:[%s2287] sm:$0x3]
        %v2290 = vsel %vm409, %v2271, 0
        %v2293 = vsel %vm409, %v2272, 0
        %v2296 = vsel %vm409, %v2273, 0
        %v2299 = vsel %vm409, %v2274, 0
        %v2302 = vsel %vm409, %v2275, 0
        %v2305 = vsel %vm409, %v2276, 0
        %v2308 = vsel %vm409, %v2277, 0
        %v2311 = vsel %vm409, %v2278, 0
        %v2314 = vsel %vm409, %v2279, 0
        %v2317 = vsel %vm409, %v2280, 0
        %v2320 = vsel %vm409, %v2281, 0
        %v2323 = vsel %vm409, %v2282, 0
        %v2326 = vsel %vm409, %v2283, 0
        %v2329 = vsel %vm409, %v2284, 0
        %v2332 = vsel %vm409, %v2285, 0
        %v2335 = vsel %vm409, %v2286, 0
        %v2338 = vand.u32 %v2288, %v683
        %2340 = vmatpush.bf16.msra.mxu0 0
        %2341 = vmatpush.bf16.msra.mxu0 0
        %2342 = vmatpush.bf16.msra.mxu0 0
        %2343 = vmatpush.bf16.msra.mxu0 0
        %2344 = vmatpush.bf16.msra.mxu0 0
        %2345 = vmatpush.bf16.msra.mxu0 0
        %2346 = vmatpush.bf16.msra.mxu0 0
        %2347 = vmatpush.bf16.msra.mxu0 %v2338
        %2348 = vmatmul.bf16.gmra.mxu0 %v2290
        %v2349 = vpop.f32.mrf.mxu0
        %v2350 = vadd.f32 0.0, %v2349
        %v2351 = vpop.f32.mrf.mxu0
        %v2352 = vadd.f32 0.0, %v2351
        %2353 = vmatmul.bf16.gmra.mxu0 %v2293
        %v2354 = vpop.f32.mrf.mxu0
        %v2355 = vadd.f32 0.0, %v2354
        %v2356 = vpop.f32.mrf.mxu0
        %v2357 = vadd.f32 0.0, %v2356
        %2358 = vmatmul.bf16.gmra.mxu0 %v2296
        %v2359 = vpop.f32.mrf.mxu0
        %v2360 = vadd.f32 0.0, %v2359
        %v2361 = vpop.f32.mrf.mxu0
        %v2362 = vadd.f32 0.0, %v2361
        %2363 = vmatmul.bf16.gmra.mxu0 %v2299
        %v2364 = vpop.f32.mrf.mxu0
        %v2365 = vadd.f32 0.0, %v2364
        %v2366 = vpop.f32.mrf.mxu0
        %v2367 = vadd.f32 0.0, %v2366
        %2368 = vmatmul.bf16.gmra.mxu0 %v2302
        %v2369 = vpop.f32.mrf.mxu0
        %v2370 = vadd.f32 0.0, %v2369
        %v2371 = vpop.f32.mrf.mxu0
        %v2372 = vadd.f32 0.0, %v2371
        %2373 = vmatmul.bf16.gmra.mxu0 %v2305
        %v2374 = vpop.f32.mrf.mxu0
        %v2375 = vadd.f32 0.0, %v2374
        %v2376 = vpop.f32.mrf.mxu0
        %v2377 = vadd.f32 0.0, %v2376
        %2378 = vmatmul.bf16.gmra.mxu0 %v2308
        %v2379 = vpop.f32.mrf.mxu0
        %v2380 = vadd.f32 0.0, %v2379
        %v2381 = vpop.f32.mrf.mxu0
        %v2382 = vadd.f32 0.0, %v2381
        %2383 = vmatmul.bf16.gmra.mxu0 %v2311
        %v2384 = vpop.f32.mrf.mxu0
        %v2385 = vadd.f32 0.0, %v2384
        %v2386 = vpop.f32.mrf.mxu0
        %v2387 = vadd.f32 0.0, %v2386
        %2388 = vmatmul.bf16.gmra.mxu0 %v2314
        %v2389 = vpop.f32.mrf.mxu0
        %v2390 = vadd.f32 0.0, %v2389
        %v2391 = vpop.f32.mrf.mxu0
        %v2392 = vadd.f32 0.0, %v2391
        %2393 = vmatmul.bf16.gmra.mxu0 %v2317
        %v2394 = vpop.f32.mrf.mxu0
        %v2395 = vadd.f32 0.0, %v2394
        %v2396 = vpop.f32.mrf.mxu0
        %v2397 = vadd.f32 0.0, %v2396
        %2398 = vmatmul.bf16.gmra.mxu0 %v2320
        %v2399 = vpop.f32.mrf.mxu0
        %v2400 = vadd.f32 0.0, %v2399
        %v2401 = vpop.f32.mrf.mxu0
        %v2402 = vadd.f32 0.0, %v2401
        %2403 = vmatmul.bf16.gmra.mxu0 %v2323
        %v2404 = vpop.f32.mrf.mxu0
        %v2405 = vadd.f32 0.0, %v2404
        %v2406 = vpop.f32.mrf.mxu0
        %v2407 = vadd.f32 0.0, %v2406
        %2408 = vmatmul.bf16.gmra.mxu0 %v2326
        %v2409 = vpop.f32.mrf.mxu0
        %v2410 = vadd.f32 0.0, %v2409
        %v2411 = vpop.f32.mrf.mxu0
        %v2412 = vadd.f32 0.0, %v2411
        %2413 = vmatmul.bf16.gmra.mxu0 %v2329
        %v2414 = vpop.f32.mrf.mxu0
        %v2415 = vadd.f32 0.0, %v2414
        %v2416 = vpop.f32.mrf.mxu0
        %v2417 = vadd.f32 0.0, %v2416
        %2418 = vmatmul.bf16.gmra.mxu0 %v2332
        %v2419 = vpop.f32.mrf.mxu0
        %v2420 = vadd.f32 0.0, %v2419
        %v2421 = vpop.f32.mrf.mxu0
        %v2422 = vadd.f32 0.0, %v2421
        %2423 = vmatmul.bf16.gmra.mxu0 %v2335
        %v2424 = vpop.f32.mrf.mxu0
        %v2425 = vadd.f32 0.0, %v2424
        %v2426 = vpop.f32.mrf.mxu0
        %v2427 = vadd.f32 0.0, %v2426
        %2428 = vdwg.mxu0
        %v2429 = vld [vmem:[#allocation3] sm:$0xff]
        %v2430 = vld [vmem:[#allocation3 + $0x8] sm:$0xff]
        %v2431 = vld [vmem:[#allocation3 + $0x10] sm:$0xff]
        %v2432 = vld [vmem:[#allocation3 + $0x18] sm:$0xff]
        %v2433 = vld [vmem:[#allocation3 + $0x20] sm:$0xff]
        %v2434 = vld [vmem:[#allocation3 + $0x28] sm:$0xff]
        %v2435 = vld [vmem:[#allocation3 + $0x30] sm:$0xff]
        %v2436 = vld [vmem:[#allocation3 + $0x38] sm:$0xff]
        %v2437 = vld [vmem:[#allocation3 + $0x40] sm:$0xff]
        %v2438 = vld [vmem:[#allocation3 + $0x48] sm:$0xff]
        %v2439 = vld [vmem:[#allocation3 + $0x50] sm:$0xff]
        %v2440 = vld [vmem:[#allocation3 + $0x58] sm:$0xff]
        %v2441 = vld [vmem:[#allocation3 + $0x60] sm:$0xff]
        %v2442 = vld [vmem:[#allocation3 + $0x68] sm:$0xff]
        %v2443 = vld [vmem:[#allocation3 + $0x70] sm:$0xff]
        %v2444 = vld [vmem:[#allocation3 + $0x78] sm:$0xff]
        %v2445 = vld [vmem:[#allocation3 + $0x80] sm:$0xff]
        %v2446 = vld [vmem:[#allocation3 + $0x88] sm:$0xff]
        %v2447 = vld [vmem:[#allocation3 + $0x90] sm:$0xff]
        %v2448 = vld [vmem:[#allocation3 + $0x98] sm:$0xff]
        %v2449 = vld [vmem:[#allocation3 + $0xa0] sm:$0xff]
        %v2450 = vld [vmem:[#allocation3 + $0xa8] sm:$0xff]
        %v2451 = vld [vmem:[#allocation3 + $0xb0] sm:$0xff]
        %v2452 = vld [vmem:[#allocation3 + $0xb8] sm:$0xff]
        %v2453 = vld [vmem:[#allocation3 + $0xc0] sm:$0xff]
        %v2454 = vld [vmem:[#allocation3 + $0xc8] sm:$0xff]
        %v2455 = vld [vmem:[#allocation3 + $0xd0] sm:$0xff]
        %v2456 = vld [vmem:[#allocation3 + $0xd8] sm:$0xff]
        %v2457 = vld [vmem:[#allocation3 + $0xe0] sm:$0xff]
        %v2458 = vld [vmem:[#allocation3 + $0xe8] sm:$0xff]
        %v2459 = vld [vmem:[#allocation3 + $0xf0] sm:$0xff]
        %v2460 = vld [vmem:[#allocation3 + $0xf8] sm:$0xff]
        %v2461 = vadd.f32 %v2429, %v2350
        %v2462 = vadd.f32 %v2430, %v2352
        %v2463 = vadd.f32 %v2431, %v2355
        %v2464 = vadd.f32 %v2432, %v2357
        %v2465 = vadd.f32 %v2433, %v2360
        %v2466 = vadd.f32 %v2434, %v2362
        %v2467 = vadd.f32 %v2435, %v2365
        %v2468 = vadd.f32 %v2436, %v2367
        %v2469 = vadd.f32 %v2437, %v2370
        %v2470 = vadd.f32 %v2438, %v2372
        %v2471 = vadd.f32 %v2439, %v2375
        %v2472 = vadd.f32 %v2440, %v2377
        %v2473 = vadd.f32 %v2441, %v2380
        %v2474 = vadd.f32 %v2442, %v2382
        %v2475 = vadd.f32 %v2443, %v2385
        %v2476 = vadd.f32 %v2444, %v2387
        %v2477 = vadd.f32 %v2445, %v2390
        %v2478 = vadd.f32 %v2446, %v2392
        %v2479 = vadd.f32 %v2447, %v2395
        %v2480 = vadd.f32 %v2448, %v2397
        %v2481 = vadd.f32 %v2449, %v2400
        %v2482 = vadd.f32 %v2450, %v2402
        %v2483 = vadd.f32 %v2451, %v2405
        %v2484 = vadd.f32 %v2452, %v2407
        %v2485 = vadd.f32 %v2453, %v2410
        %v2486 = vadd.f32 %v2454, %v2412
        %v2487 = vadd.f32 %v2455, %v2415
        %v2488 = vadd.f32 %v2456, %v2417
        %v2489 = vadd.f32 %v2457, %v2420
        %v2490 = vadd.f32 %v2458, %v2422
        %v2491 = vadd.f32 %v2459, %v2425
        %v2492 = vadd.f32 %v2460, %v2427
        %2493 = vst [vmem:[#allocation3] sm:$0xff] %v2461
        %2494 = vst [vmem:[#allocation3 + $0x8] sm:$0xff] %v2462
        %2495 = vst [vmem:[#allocation3 + $0x10] sm:$0xff] %v2463
        %2496 = vst [vmem:[#allocation3 + $0x18] sm:$0xff] %v2464
        %2497 = vst [vmem:[#allocation3 + $0x20] sm:$0xff] %v2465
        %2498 = vst [vmem:[#allocation3 + $0x28] sm:$0xff] %v2466
        %2499 = vst [vmem:[#allocation3 + $0x30] sm:$0xff] %v2467
        %2500 = vst [vmem:[#allocation3 + $0x38] sm:$0xff] %v2468
        %2501 = vst [vmem:[#allocation3 + $0x40] sm:$0xff] %v2469
        %2502 = vst [vmem:[#allocation3 + $0x48] sm:$0xff] %v2470
        %2503 = vst [vmem:[#allocation3 + $0x50] sm:$0xff] %v2471
        %2504 = vst [vmem:[#allocation3 + $0x58] sm:$0xff] %v2472
        %2505 = vst [vmem:[#allocation3 + $0x60] sm:$0xff] %v2473
        %2506 = vst [vmem:[#allocation3 + $0x68] sm:$0xff] %v2474
        %2507 = vst [vmem:[#allocation3 + $0x70] sm:$0xff] %v2475
        %2508 = vst [vmem:[#allocation3 + $0x78] sm:$0xff] %v2476
        %2509 = vst [vmem:[#allocation3 + $0x80] sm:$0xff] %v2477
        %2510 = vst [vmem:[#allocation3 + $0x88] sm:$0xff] %v2478
        %2511 = vst [vmem:[#allocation3 + $0x90] sm:$0xff] %v2479
        %2512 = vst [vmem:[#allocation3 + $0x98] sm:$0xff] %v2480
        %2513 = vst [vmem:[#allocation3 + $0xa0] sm:$0xff] %v2481
        %2514 = vst [vmem:[#allocation3 + $0xa8] sm:$0xff] %v2482
        %2515 = vst [vmem:[#allocation3 + $0xb0] sm:$0xff] %v2483
        %2516 = vst [vmem:[#allocation3 + $0xb8] sm:$0xff] %v2484
        %2517 = vst [vmem:[#allocation3 + $0xc0] sm:$0xff] %v2485
        %2518 = vst [vmem:[#allocation3 + $0xc8] sm:$0xff] %v2486
        %2519 = vst [vmem:[#allocation3 + $0xd0] sm:$0xff] %v2487
        %2520 = vst [vmem:[#allocation3 + $0xd8] sm:$0xff] %v2488
        %2521 = vst [vmem:[#allocation3 + $0xe0] sm:$0xff] %v2489
        %2522 = vst [vmem:[#allocation3 + $0xe8] sm:$0xff] %v2490
        %2523 = vst [vmem:[#allocation3 + $0xf0] sm:$0xff] %v2491
        %2524 = vst [vmem:[#allocation3 + $0xf8] sm:$0xff] %v2492
        %v2525 = vld [vmem:[%s2238 + $0x1] sm:$0xff]
        %v2526 = vld [vmem:[%s2238 + $0x9] sm:$0xff]
        %v2527 = vld [vmem:[%s2238 + $0x19] sm:$0xff]
        %v2528 = vld [vmem:[%s2238 + $0x21] sm:$0xff]
        %v2529 = vld [vmem:[%s2238 + $0x31] sm:$0xff]
        %v2530 = vld [vmem:[%s2238 + $0x39] sm:$0xff]
        %v2531 = vld [vmem:[%s2238 + $0x49] sm:$0xff]
        %v2532 = vld [vmem:[%s2238 + $0x51] sm:$0xff]
        %v2533 = vld [vmem:[%s2238 + $0x61] sm:$0xff]
        %v2534 = vld [vmem:[%s2238 + $0x69] sm:$0xff]
        %v2535 = vld [vmem:[%s2238 + $0x79] sm:$0xff]
        %v2536 = vld [vmem:[%s2238 + $0x81] sm:$0xff]
        %v2537 = vld [vmem:[%s2238 + $0x91] sm:$0xff]
        %v2538 = vld [vmem:[%s2238 + $0x99] sm:$0xff]
        %v2539 = vld [vmem:[%s2238 + $0xa9] sm:$0xff]
        %v2540 = vld [vmem:[%s2238 + $0xb1] sm:$0xff]
        %v2541 = vld [vmem:[%s2238 + $0xc1] sm:$0xff]
        %v2542 = vld [vmem:[%s2238 + $0xc9] sm:$0xff]
        %v2543 = vld [vmem:[%s2238 + $0xd9] sm:$0xff]
        %v2544 = vld [vmem:[%s2238 + $0xe1] sm:$0xff]
        %v2545 = vld [vmem:[%s2238 + $0xf1] sm:$0xff]
        %v2546 = vld [vmem:[%s2238 + $0xf9] sm:$0xff]
        %v2547 = vld [vmem:[%s2238 + $0x109] sm:$0xff]
        %v2548 = vld [vmem:[%s2238 + $0x111] sm:$0xff]
        %v2549 = vld [vmem:[%s2238 + $0x121] sm:$0xff]
        %v2550 = vld [vmem:[%s2238 + $0x129] sm:$0xff]
        %v2551 = vld [vmem:[%s2238 + $0x139] sm:$0xff]
        %v2552 = vld [vmem:[%s2238 + $0x141] sm:$0xff]
        %v2553 = vld [vmem:[%s2238 + $0x151] sm:$0xff]
        %v2554 = vld [vmem:[%s2238 + $0x159] sm:$0xff]
        %v2555 = vld [vmem:[%s2238 + $0x169] sm:$0xff]
        %v2556 = vld [vmem:[%s2238 + $0x171] sm:$0xff]
        %v2557 = vpack.c.bf16 %v2526, %v2525
        %v2558 = vpack.c.bf16 %v2528, %v2527
        %v2559 = vpack.c.bf16 %v2530, %v2529
        %v2560 = vpack.c.bf16 %v2532, %v2531
        %v2561 = vpack.c.bf16 %v2534, %v2533
        %v2562 = vpack.c.bf16 %v2536, %v2535
        %v2563 = vpack.c.bf16 %v2538, %v2537
        %v2564 = vpack.c.bf16 %v2540, %v2539
        %v2565 = vpack.c.bf16 %v2542, %v2541
        %v2566 = vpack.c.bf16 %v2544, %v2543
        %v2567 = vpack.c.bf16 %v2546, %v2545
        %v2568 = vpack.c.bf16 %v2548, %v2547
        %v2569 = vpack.c.bf16 %v2550, %v2549
        %v2570 = vpack.c.bf16 %v2552, %v2551
        %v2571 = vpack.c.bf16 %v2554, %v2553
        %v2572 = vpack.c.bf16 %v2556, %v2555
        %s2573 = scalar_lea.vmem %s3, 14
        %v2574 = vld [vmem:[%s2573] sm:$0x3]
        %v2576 = vsel %vm409, %v2557, 0
        %v2579 = vsel %vm409, %v2558, 0
        %v2582 = vsel %vm409, %v2559, 0
        %v2585 = vsel %vm409, %v2560, 0
        %v2588 = vsel %vm409, %v2561, 0
        %v2591 = vsel %vm409, %v2562, 0
        %v2594 = vsel %vm409, %v2563, 0
        %v2597 = vsel %vm409, %v2564, 0
        %v2600 = vsel %vm409, %v2565, 0
        %v2603 = vsel %vm409, %v2566, 0
        %v2606 = vsel %vm409, %v2567, 0
        %v2609 = vsel %vm409, %v2568, 0
        %v2612 = vsel %vm409, %v2569, 0
        %v2615 = vsel %vm409, %v2570, 0
        %v2618 = vsel %vm409, %v2571, 0
        %v2621 = vsel %vm409, %v2572, 0
        %v2624 = vand.u32 %v2574, %v683
        %2626 = vmatpush.bf16.msra.mxu0 0
        %2627 = vmatpush.bf16.msra.mxu0 0
        %2628 = vmatpush.bf16.msra.mxu0 0
        %2629 = vmatpush.bf16.msra.mxu0 0
        %2630 = vmatpush.bf16.msra.mxu0 0
        %2631 = vmatpush.bf16.msra.mxu0 0
        %2632 = vmatpush.bf16.msra.mxu0 0
        %2633 = vmatpush.bf16.msra.mxu0 %v2624
        %2634 = vmatmul.bf16.gmra.mxu0 %v2576
        %v2635 = vpop.f32.mrf.mxu0
        %v2636 = vadd.f32 0.0, %v2635
        %v2637 = vpop.f32.mrf.mxu0
        %v2638 = vadd.f32 0.0, %v2637
        %2639 = vmatmul.bf16.gmra.mxu0 %v2579
        %v2640 = vpop.f32.mrf.mxu0
        %v2641 = vadd.f32 0.0, %v2640
        %v2642 = vpop.f32.mrf.mxu0
        %v2643 = vadd.f32 0.0, %v2642
        %2644 = vmatmul.bf16.gmra.mxu0 %v2582
        %v2645 = vpop.f32.mrf.mxu0
        %v2646 = vadd.f32 0.0, %v2645
        %v2647 = vpop.f32.mrf.mxu0
        %v2648 = vadd.f32 0.0, %v2647
        %2649 = vmatmul.bf16.gmra.mxu0 %v2585
        %v2650 = vpop.f32.mrf.mxu0
        %v2651 = vadd.f32 0.0, %v2650
        %v2652 = vpop.f32.mrf.mxu0
        %v2653 = vadd.f32 0.0, %v2652
        %2654 = vmatmul.bf16.gmra.mxu0 %v2588
        %v2655 = vpop.f32.mrf.mxu0
        %v2656 = vadd.f32 0.0, %v2655
        %v2657 = vpop.f32.mrf.mxu0
        %v2658 = vadd.f32 0.0, %v2657
        %2659 = vmatmul.bf16.gmra.mxu0 %v2591
        %v2660 = vpop.f32.mrf.mxu0
        %v2661 = vadd.f32 0.0, %v2660
        %v2662 = vpop.f32.mrf.mxu0
        %v2663 = vadd.f32 0.0, %v2662
        %2664 = vmatmul.bf16.gmra.mxu0 %v2594
        %v2665 = vpop.f32.mrf.mxu0
        %v2666 = vadd.f32 0.0, %v2665
        %v2667 = vpop.f32.mrf.mxu0
        %v2668 = vadd.f32 0.0, %v2667
        %2669 = vmatmul.bf16.gmra.mxu0 %v2597
        %v2670 = vpop.f32.mrf.mxu0
        %v2671 = vadd.f32 0.0, %v2670
        %v2672 = vpop.f32.mrf.mxu0
        %v2673 = vadd.f32 0.0, %v2672
        %2674 = vmatmul.bf16.gmra.mxu0 %v2600
        %v2675 = vpop.f32.mrf.mxu0
        %v2676 = vadd.f32 0.0, %v2675
        %v2677 = vpop.f32.mrf.mxu0
        %v2678 = vadd.f32 0.0, %v2677
        %2679 = vmatmul.bf16.gmra.mxu0 %v2603
        %v2680 = vpop.f32.mrf.mxu0
        %v2681 = vadd.f32 0.0, %v2680
        %v2682 = vpop.f32.mrf.mxu0
        %v2683 = vadd.f32 0.0, %v2682
        %2684 = vmatmul.bf16.gmra.mxu0 %v2606
        %v2685 = vpop.f32.mrf.mxu0
        %v2686 = vadd.f32 0.0, %v2685
        %v2687 = vpop.f32.mrf.mxu0
        %v2688 = vadd.f32 0.0, %v2687
        %2689 = vmatmul.bf16.gmra.mxu0 %v2609
        %v2690 = vpop.f32.mrf.mxu0
        %v2691 = vadd.f32 0.0, %v2690
        %v2692 = vpop.f32.mrf.mxu0
        %v2693 = vadd.f32 0.0, %v2692
        %2694 = vmatmul.bf16.gmra.mxu0 %v2612
        %v2695 = vpop.f32.mrf.mxu0
        %v2696 = vadd.f32 0.0, %v2695
        %v2697 = vpop.f32.mrf.mxu0
        %v2698 = vadd.f32 0.0, %v2697
        %2699 = vmatmul.bf16.gmra.mxu0 %v2615
        %v2700 = vpop.f32.mrf.mxu0
        %v2701 = vadd.f32 0.0, %v2700
        %v2702 = vpop.f32.mrf.mxu0
        %v2703 = vadd.f32 0.0, %v2702
        %2704 = vmatmul.bf16.gmra.mxu0 %v2618
        %v2705 = vpop.f32.mrf.mxu0
        %v2706 = vadd.f32 0.0, %v2705
        %v2707 = vpop.f32.mrf.mxu0
        %v2708 = vadd.f32 0.0, %v2707
        %2709 = vmatmul.bf16.gmra.mxu0 %v2621
        %v2710 = vpop.f32.mrf.mxu0
        %v2711 = vadd.f32 0.0, %v2710
        %v2712 = vpop.f32.mrf.mxu0
        %v2713 = vadd.f32 0.0, %v2712
        %2714 = vdwg.mxu0
        %v2715 = vld [vmem:[#allocation3] sm:$0xff]
        %v2716 = vld [vmem:[#allocation3 + $0x8] sm:$0xff]
        %v2717 = vld [vmem:[#allocation3 + $0x10] sm:$0xff]
        %v2718 = vld [vmem:[#allocation3 + $0x18] sm:$0xff]
        %v2719 = vld [vmem:[#allocation3 + $0x20] sm:$0xff]
        %v2720 = vld [vmem:[#allocation3 + $0x28] sm:$0xff]
        %v2721 = vld [vmem:[#allocation3 + $0x30] sm:$0xff]
        %v2722 = vld [vmem:[#allocation3 + $0x38] sm:$0xff]
        %v2723 = vld [vmem:[#allocation3 + $0x40] sm:$0xff]
        %v2724 = vld [vmem:[#allocation3 + $0x48] sm:$0xff]
        %v2725 = vld [vmem:[#allocation3 + $0x50] sm:$0xff]
        %v2726 = vld [vmem:[#allocation3 + $0x58] sm:$0xff]
        %v2727 = vld [vmem:[#allocation3 + $0x60] sm:$0xff]
        %v2728 = vld [vmem:[#allocation3 + $0x68] sm:$0xff]
        %v2729 = vld [vmem:[#allocation3 + $0x70] sm:$0xff]
        %v2730 = vld [vmem:[#allocation3 + $0x78] sm:$0xff]
        %v2731 = vld [vmem:[#allocation3 + $0x80] sm:$0xff]
        %v2732 = vld [vmem:[#allocation3 + $0x88] sm:$0xff]
        %v2733 = vld [vmem:[#allocation3 + $0x90] sm:$0xff]
        %v2734 = vld [vmem:[#allocation3 + $0x98] sm:$0xff]
        %v2735 = vld [vmem:[#allocation3 + $0xa0] sm:$0xff]
        %v2736 = vld [vmem:[#allocation3 + $0xa8] sm:$0xff]
        %v2737 = vld [vmem:[#allocation3 + $0xb0] sm:$0xff]
        %v2738 = vld [vmem:[#allocation3 + $0xb8] sm:$0xff]
        %v2739 = vld [vmem:[#allocation3 + $0xc0] sm:$0xff]
        %v2740 = vld [vmem:[#allocation3 + $0xc8] sm:$0xff]
        %v2741 = vld [vmem:[#allocation3 + $0xd0] sm:$0xff]
        %v2742 = vld [vmem:[#allocation3 + $0xd8] sm:$0xff]
        %v2743 = vld [vmem:[#allocation3 + $0xe0] sm:$0xff]
        %v2744 = vld [vmem:[#allocation3 + $0xe8] sm:$0xff]
        %v2745 = vld [vmem:[#allocation3 + $0xf0] sm:$0xff]
        %v2746 = vld [vmem:[#allocation3 + $0xf8] sm:$0xff]
        %v2747 = vadd.f32 %v2715, %v2636
        %v2748 = vadd.f32 %v2716, %v2638
        %v2749 = vadd.f32 %v2717, %v2641
        %v2750 = vadd.f32 %v2718, %v2643
        %v2751 = vadd.f32 %v2719, %v2646
        %v2752 = vadd.f32 %v2720, %v2648
        %v2753 = vadd.f32 %v2721, %v2651
        %v2754 = vadd.f32 %v2722, %v2653
        %v2755 = vadd.f32 %v2723, %v2656
        %v2756 = vadd.f32 %v2724, %v2658
        %v2757 = vadd.f32 %v2725, %v2661
        %v2758 = vadd.f32 %v2726, %v2663
        %v2759 = vadd.f32 %v2727, %v2666
        %v2760 = vadd.f32 %v2728, %v2668
        %v2761 = vadd.f32 %v2729, %v2671
        %v2762 = vadd.f32 %v2730, %v2673
        %v2763 = vadd.f32 %v2731, %v2676
        %v2764 = vadd.f32 %v2732, %v2678
        %v2765 = vadd.f32 %v2733, %v2681
        %v2766 = vadd.f32 %v2734, %v2683
        %v2767 = vadd.f32 %v2735, %v2686
        %v2768 = vadd.f32 %v2736, %v2688
        %v2769 = vadd.f32 %v2737, %v2691
        %v2770 = vadd.f32 %v2738, %v2693
        %v2771 = vadd.f32 %v2739, %v2696
        %v2772 = vadd.f32 %v2740, %v2698
        %v2773 = vadd.f32 %v2741, %v2701
        %v2774 = vadd.f32 %v2742, %v2703
        %v2775 = vadd.f32 %v2743, %v2706
        %v2776 = vadd.f32 %v2744, %v2708
        %v2777 = vadd.f32 %v2745, %v2711
        %v2778 = vadd.f32 %v2746, %v2713
        %2779 = vst [vmem:[#allocation3] sm:$0xff] %v2747
        %2780 = vst [vmem:[#allocation3 + $0x8] sm:$0xff] %v2748
        %2781 = vst [vmem:[#allocation3 + $0x10] sm:$0xff] %v2749
        %2782 = vst [vmem:[#allocation3 + $0x18] sm:$0xff] %v2750
        %2783 = vst [vmem:[#allocation3 + $0x20] sm:$0xff] %v2751
        %2784 = vst [vmem:[#allocation3 + $0x28] sm:$0xff] %v2752
        %2785 = vst [vmem:[#allocation3 + $0x30] sm:$0xff] %v2753
        %2786 = vst [vmem:[#allocation3 + $0x38] sm:$0xff] %v2754
        %2787 = vst [vmem:[#allocation3 + $0x40] sm:$0xff] %v2755
        %2788 = vst [vmem:[#allocation3 + $0x48] sm:$0xff] %v2756
        %2789 = vst [vmem:[#allocation3 + $0x50] sm:$0xff] %v2757
        %2790 = vst [vmem:[#allocation3 + $0x58] sm:$0xff] %v2758
        %2791 = vst [vmem:[#allocation3 + $0x60] sm:$0xff] %v2759
        %2792 = vst [vmem:[#allocation3 + $0x68] sm:$0xff] %v2760
        %2793 = vst [vmem:[#allocation3 + $0x70] sm:$0xff] %v2761
        %2794 = vst [vmem:[#allocation3 + $0x78] sm:$0xff] %v2762
        %2795 = vst [vmem:[#allocation3 + $0x80] sm:$0xff] %v2763
        %2796 = vst [vmem:[#allocation3 + $0x88] sm:$0xff] %v2764
        %2797 = vst [vmem:[#allocation3 + $0x90] sm:$0xff] %v2765
        %2798 = vst [vmem:[#allocation3 + $0x98] sm:$0xff] %v2766
        %2799 = vst [vmem:[#allocation3 + $0xa0] sm:$0xff] %v2767
        %2800 = vst [vmem:[#allocation3 + $0xa8] sm:$0xff] %v2768
        %2801 = vst [vmem:[#allocation3 + $0xb0] sm:$0xff] %v2769
        %2802 = vst [vmem:[#allocation3 + $0xb8] sm:$0xff] %v2770
        %2803 = vst [vmem:[#allocation3 + $0xc0] sm:$0xff] %v2771
        %2804 = vst [vmem:[#allocation3 + $0xc8] sm:$0xff] %v2772
        %2805 = vst [vmem:[#allocation3 + $0xd0] sm:$0xff] %v2773
        %2806 = vst [vmem:[#allocation3 + $0xd8] sm:$0xff] %v2774
        %2807 = vst [vmem:[#allocation3 + $0xe0] sm:$0xff] %v2775
        %2808 = vst [vmem:[#allocation3 + $0xe8] sm:$0xff] %v2776
        %2809 = vst [vmem:[#allocation3 + $0xf0] sm:$0xff] %v2777
        %2810 = vst [vmem:[#allocation3 + $0xf8] sm:$0xff] %v2778
        %v2811 = vld [vmem:[%s2238 + $0x2] sm:$0xff]
        %v2812 = vld [vmem:[%s2238 + $0xa] sm:$0xff]
        %v2813 = vld [vmem:[%s2238 + $0x1a] sm:$0xff]
        %v2814 = vld [vmem:[%s2238 + $0x22] sm:$0xff]
        %v2815 = vld [vmem:[%s2238 + $0x32] sm:$0xff]
        %v2816 = vld [vmem:[%s2238 + $0x3a] sm:$0xff]
        %v2817 = vld [vmem:[%s2238 + $0x4a] sm:$0xff]
        %v2818 = vld [vmem:[%s2238 + $0x52] sm:$0xff]
        %v2819 = vld [vmem:[%s2238 + $0x62] sm:$0xff]
        %v2820 = vld [vmem:[%s2238 + $0x6a] sm:$0xff]
        %v2821 = vld [vmem:[%s2238 + $0x7a] sm:$0xff]
        %v2822 = vld [vmem:[%s2238 + $0x82] sm:$0xff]
        %v2823 = vld [vmem:[%s2238 + $0x92] sm:$0xff]
        %v2824 = vld [vmem:[%s2238 + $0x9a] sm:$0xff]
        %v2825 = vld [vmem:[%s2238 + $0xaa] sm:$0xff]
        %v2826 = vld [vmem:[%s2238 + $0xb2] sm:$0xff]
        %v2827 = vld [vmem:[%s2238 + $0xc2] sm:$0xff]
        %v2828 = vld [vmem:[%s2238 + $0xca] sm:$0xff]
        %v2829 = vld [vmem:[%s2238 + $0xda] sm:$0xff]
        %v2830 = vld [vmem:[%s2238 + $0xe2] sm:$0xff]
        %v2831 = vld [vmem:[%s2238 + $0xf2] sm:$0xff]
        %v2832 = vld [vmem:[%s2238 + $0xfa] sm:$0xff]
        %v2833 = vld [vmem:[%s2238 + $0x10a] sm:$0xff]
        %v2834 = vld [vmem:[%s2238 + $0x112] sm:$0xff]
        %v2835 = vld [vmem:[%s2238 + $0x122] sm:$0xff]
        %v2836 = vld [vmem:[%s2238 + $0x12a] sm:$0xff]
        %v2837 = vld [vmem:[%s2238 + $0x13a] sm:$0xff]
        %v2838 = vld [vmem:[%s2238 + $0x142] sm:$0xff]
        %v2839 = vld [vmem:[%s2238 + $0x152] sm:$0xff]
        %v2840 = vld [vmem:[%s2238 + $0x15a] sm:$0xff]
        %v2841 = vld [vmem:[%s2238 + $0x16a] sm:$0xff]
        %v2842 = vld [vmem:[%s2238 + $0x172] sm:$0xff]
        %v2843 = vpack.c.bf16 %v2812, %v2811
        %v2844 = vpack.c.bf16 %v2814, %v2813
        %v2845 = vpack.c.bf16 %v2816, %v2815
        %v2846 = vpack.c.bf16 %v2818, %v2817
        %v2847 = vpack.c.bf16 %v2820, %v2819
        %v2848 = vpack.c.bf16 %v2822, %v2821
        %v2849 = vpack.c.bf16 %v2824, %v2823
        %v2850 = vpack.c.bf16 %v2826, %v2825
        %v2851 = vpack.c.bf16 %v2828, %v2827
        %v2852 = vpack.c.bf16 %v2830, %v2829
        %v2853 = vpack.c.bf16 %v2832, %v2831
        %v2854 = vpack.c.bf16 %v2834, %v2833
        %v2855 = vpack.c.bf16 %v2836, %v2835
        %v2856 = vpack.c.bf16 %v2838, %v2837
        %v2857 = vpack.c.bf16 %v2840, %v2839
        %v2858 = vpack.c.bf16 %v2842, %v2841
        %s2859 = scalar_lea.vmem %s3, 16
        %v2860 = vld [vmem:[%s2859] sm:$0x3]
        %v2862 = vsel %vm409, %v2843, 0
        %v2865 = vsel %vm409, %v2844, 0
        %v2868 = vsel %vm409, %v2845, 0
        %v2871 = vsel %vm409, %v2846, 0
        %v2874 = vsel %vm409, %v2847, 0
        %v2877 = vsel %vm409, %v2848, 0
        %v2880 = vsel %vm409, %v2849, 0
        %v2883 = vsel %vm409, %v2850, 0
        %v2886 = vsel %vm409, %v2851, 0
        %v2889 = vsel %vm409, %v2852, 0
        %v2892 = vsel %vm409, %v2853, 0
        %v2895 = vsel %vm409, %v2854, 0
        %v2898 = vsel %vm409, %v2855, 0
        %v2901 = vsel %vm409, %v2856, 0
        %v2904 = vsel %vm409, %v2857, 0
        %v2907 = vsel %vm409, %v2858, 0
        %v2910 = vand.u32 %v2860, %v683
        %2912 = vmatpush.bf16.msra.mxu0 0
        %2913 = vmatpush.bf16.msra.mxu0 0
        %2914 = vmatpush.bf16.msra.mxu0 0
        %2915 = vmatpush.bf16.msra.mxu0 0
        %2916 = vmatpush.bf16.msra.mxu0 0
        %2917 = vmatpush.bf16.msra.mxu0 0
        %2918 = vmatpush.bf16.msra.mxu0 0
        %2919 = vmatpush.bf16.msra.mxu0 %v2910
        %2920 = vmatmul.bf16.gmra.mxu0 %v2862
        %v2921 = vpop.f32.mrf.mxu0
        %v2922 = vadd.f32 0.0, %v2921
        %v2923 = vpop.f32.mrf.mxu0
        %v2924 = vadd.f32 0.0, %v2923
        %2925 = vmatmul.bf16.gmra.mxu0 %v2865
        %v2926 = vpop.f32.mrf.mxu0
        %v2927 = vadd.f32 0.0, %v2926
        %v2928 = vpop.f32.mrf.mxu0
        %v2929 = vadd.f32 0.0, %v2928
        %2930 = vmatmul.bf16.gmra.mxu0 %v2868
        %v2931 = vpop.f32.mrf.mxu0
        %v2932 = vadd.f32 0.0, %v2931
        %v2933 = vpop.f32.mrf.mxu0
        %v2934 = vadd.f32 0.0, %v2933
        %2935 = vmatmul.bf16.gmra.mxu0 %v2871
        %v2936 = vpop.f32.mrf.mxu0
        %v2937 = vadd.f32 0.0, %v2936
        %v2938 = vpop.f32.mrf.mxu0
        %v2939 = vadd.f32 0.0, %v2938
        %2940 = vmatmul.bf16.gmra.mxu0 %v2874
        %v2941 = vpop.f32.mrf.mxu0
        %v2942 = vadd.f32 0.0, %v2941
        %v2943 = vpop.f32.mrf.mxu0
        %v2944 = vadd.f32 0.0, %v2943
        %2945 = vmatmul.bf16.gmra.mxu0 %v2877
        %v2946 = vpop.f32.mrf.mxu0
        %v2947 = vadd.f32 0.0, %v2946
        %v2948 = vpop.f32.mrf.mxu0
        %v2949 = vadd.f32 0.0, %v2948
        %2950 = vmatmul.bf16.gmra.mxu0 %v2880
        %v2951 = vpop.f32.mrf.mxu0
        %v2952 = vadd.f32 0.0, %v2951
        %v2953 = vpop.f32.mrf.mxu0
        %v2954 = vadd.f32 0.0, %v2953
        %2955 = vmatmul.bf16.gmra.mxu0 %v2883
        %v2956 = vpop.f32.mrf.mxu0
        %v2957 = vadd.f32 0.0, %v2956
        %v2958 = vpop.f32.mrf.mxu0
        %v2959 = vadd.f32 0.0, %v2958
        %2960 = vmatmul.bf16.gmra.mxu0 %v2886
        %v2961 = vpop.f32.mrf.mxu0
        %v2962 = vadd.f32 0.0, %v2961
        %v2963 = vpop.f32.mrf.mxu0
        %v2964 = vadd.f32 0.0, %v2963
        %2965 = vmatmul.bf16.gmra.mxu0 %v2889
        %v2966 = vpop.f32.mrf.mxu0
        %v2967 = vadd.f32 0.0, %v2966
        %v2968 = vpop.f32.mrf.mxu0
        %v2969 = vadd.f32 0.0, %v2968
        %2970 = vmatmul.bf16.gmra.mxu0 %v2892
        %v2971 = vpop.f32.mrf.mxu0
        %v2972 = vadd.f32 0.0, %v2971
        %v2973 = vpop.f32.mrf.mxu0
        %v2974 = vadd.f32 0.0, %v2973
        %2975 = vmatmul.bf16.gmra.mxu0 %v2895
        %v2976 = vpop.f32.mrf.mxu0
        %v2977 = vadd.f32 0.0, %v2976
        %v2978 = vpop.f32.mrf.mxu0
        %v2979 = vadd.f32 0.0, %v2978
        %2980 = vmatmul.bf16.gmra.mxu0 %v2898
        %v2981 = vpop.f32.mrf.mxu0
        %v2982 = vadd.f32 0.0, %v2981
        %v2983 = vpop.f32.mrf.mxu0
        %v2984 = vadd.f32 0.0, %v2983
        %2985 = vmatmul.bf16.gmra.mxu0 %v2901
        %v2986 = vpop.f32.mrf.mxu0
        %v2987 = vadd.f32 0.0, %v2986
        %v2988 = vpop.f32.mrf.mxu0
        %v2989 = vadd.f32 0.0, %v2988
        %2990 = vmatmul.bf16.gmra.mxu0 %v2904
        %v2991 = vpop.f32.mrf.mxu0
        %v2992 = vadd.f32 0.0, %v2991
        %v2993 = vpop.f32.mrf.mxu0
        %v2994 = vadd.f32 0.0, %v2993
        %2995 = vmatmul.bf16.gmra.mxu0 %v2907
        %v2996 = vpop.f32.mrf.mxu0
        %v2997 = vadd.f32 0.0, %v2996
        %v2998 = vpop.f32.mrf.mxu0
        %v2999 = vadd.f32 0.0, %v2998
        %3000 = vdwg.mxu0
        %v3001 = vld [vmem:[#allocation3] sm:$0xff]
        %v3002 = vld [vmem:[#allocation3 + $0x8] sm:$0xff]
        %v3003 = vld [vmem:[#allocation3 + $0x10] sm:$0xff]
        %v3004 = vld [vmem:[#allocation3 + $0x18] sm:$0xff]
        %v3005 = vld [vmem:[#allocation3 + $0x20] sm:$0xff]
        %v3006 = vld [vmem:[#allocation3 + $0x28] sm:$0xff]
        %v3007 = vld [vmem:[#allocation3 + $0x30] sm:$0xff]
        %v3008 = vld [vmem:[#allocation3 + $0x38] sm:$0xff]
        %v3009 = vld [vmem:[#allocation3 + $0x40] sm:$0xff]
        %v3010 = vld [vmem:[#allocation3 + $0x48] sm:$0xff]
        %v3011 = vld [vmem:[#allocation3 + $0x50] sm:$0xff]
        %v3012 = vld [vmem:[#allocation3 + $0x58] sm:$0xff]
        %v3013 = vld [vmem:[#allocation3 + $0x60] sm:$0xff]
        %v3014 = vld [vmem:[#allocation3 + $0x68] sm:$0xff]
        %v3015 = vld [vmem:[#allocation3 + $0x70] sm:$0xff]
        %v3016 = vld [vmem:[#allocation3 + $0x78] sm:$0xff]
        %v3017 = vld [vmem:[#allocation3 + $0x80] sm:$0xff]
        %v3018 = vld [vmem:[#allocation3 + $0x88] sm:$0xff]
        %v3019 = vld [vmem:[#allocation3 + $0x90] sm:$0xff]
        %v3020 = vld [vmem:[#allocation3 + $0x98] sm:$0xff]
        %v3021 = vld [vmem:[#allocation3 + $0xa0] sm:$0xff]
        %v3022 = vld [vmem:[#allocation3 + $0xa8] sm:$0xff]
        %v3023 = vld [vmem:[#allocation3 + $0xb0] sm:$0xff]
        %v3024 = vld [vmem:[#allocation3 + $0xb8] sm:$0xff]
        %v3025 = vld [vmem:[#allocation3 + $0xc0] sm:$0xff]
        %v3026 = vld [vmem:[#allocation3 + $0xc8] sm:$0xff]
        %v3027 = vld [vmem:[#allocation3 + $0xd0] sm:$0xff]
        %v3028 = vld [vmem:[#allocation3 + $0xd8] sm:$0xff]
        %v3029 = vld [vmem:[#allocation3 + $0xe0] sm:$0xff]
        %v3030 = vld [vmem:[#allocation3 + $0xe8] sm:$0xff]
        %v3031 = vld [vmem:[#allocation3 + $0xf0] sm:$0xff]
        %v3032 = vld [vmem:[#allocation3 + $0xf8] sm:$0xff]
        %v3033 = vadd.f32 %v3001, %v2922
        %v3034 = vadd.f32 %v3002, %v2924
        %v3035 = vadd.f32 %v3003, %v2927
        %v3036 = vadd.f32 %v3004, %v2929
        %v3037 = vadd.f32 %v3005, %v2932
        %v3038 = vadd.f32 %v3006, %v2934
        %v3039 = vadd.f32 %v3007, %v2937
        %v3040 = vadd.f32 %v3008, %v2939
        %v3041 = vadd.f32 %v3009, %v2942
        %v3042 = vadd.f32 %v3010, %v2944
        %v3043 = vadd.f32 %v3011, %v2947
        %v3044 = vadd.f32 %v3012, %v2949
        %v3045 = vadd.f32 %v3013, %v2952
        %v3046 = vadd.f32 %v3014, %v2954
        %v3047 = vadd.f32 %v3015, %v2957
        %v3048 = vadd.f32 %v3016, %v2959
        %v3049 = vadd.f32 %v3017, %v2962
        %v3050 = vadd.f32 %v3018, %v2964
        %v3051 = vadd.f32 %v3019, %v2967
        %v3052 = vadd.f32 %v3020, %v2969
        %v3053 = vadd.f32 %v3021, %v2972
        %v3054 = vadd.f32 %v3022, %v2974
        %v3055 = vadd.f32 %v3023, %v2977
        %v3056 = vadd.f32 %v3024, %v2979
        %v3057 = vadd.f32 %v3025, %v2982
        %v3058 = vadd.f32 %v3026, %v2984
        %v3059 = vadd.f32 %v3027, %v2987
        %v3060 = vadd.f32 %v3028, %v2989
        %v3061 = vadd.f32 %v3029, %v2992
        %v3062 = vadd.f32 %v3030, %v2994
        %v3063 = vadd.f32 %v3031, %v2997
        %v3064 = vadd.f32 %v3032, %v2999
        %3065 = vst [vmem:[#allocation3] sm:$0xff] %v3033
        %3066 = vst [vmem:[#allocation3 + $0x8] sm:$0xff] %v3034
        %3067 = vst [vmem:[#allocation3 + $0x10] sm:$0xff] %v3035
        %3068 = vst [vmem:[#allocation3 + $0x18] sm:$0xff] %v3036
        %3069 = vst [vmem:[#allocation3 + $0x20] sm:$0xff] %v3037
        %3070 = vst [vmem:[#allocation3 + $0x28] sm:$0xff] %v3038
        %3071 = vst [vmem:[#allocation3 + $0x30] sm:$0xff] %v3039
        %3072 = vst [vmem:[#allocation3 + $0x38] sm:$0xff] %v3040
        %3073 = vst [vmem:[#allocation3 + $0x40] sm:$0xff] %v3041
        %3074 = vst [vmem:[#allocation3 + $0x48] sm:$0xff] %v3042
        %3075 = vst [vmem:[#allocation3 + $0x50] sm:$0xff] %v3043
        %3076 = vst [vmem:[#allocation3 + $0x58] sm:$0xff] %v3044
        %3077 = vst [vmem:[#allocation3 + $0x60] sm:$0xff] %v3045
        %3078 = vst [vmem:[#allocation3 + $0x68] sm:$0xff] %v3046
        %3079 = vst [vmem:[#allocation3 + $0x70] sm:$0xff] %v3047
        %3080 = vst [vmem:[#allocation3 + $0x78] sm:$0xff] %v3048
        %3081 = vst [vmem:[#allocation3 + $0x80] sm:$0xff] %v3049
        %3082 = vst [vmem:[#allocation3 + $0x88] sm:$0xff] %v3050
        %3083 = vst [vmem:[#allocation3 + $0x90] sm:$0xff] %v3051
        %3084 = vst [vmem:[#allocation3 + $0x98] sm:$0xff] %v3052
        %3085 = vst [vmem:[#allocation3 + $0xa0] sm:$0xff] %v3053
        %3086 = vst [vmem:[#allocation3 + $0xa8] sm:$0xff] %v3054
        %3087 = vst [vmem:[#allocation3 + $0xb0] sm:$0xff] %v3055
        %3088 = vst [vmem:[#allocation3 + $0xb8] sm:$0xff] %v3056
        %3089 = vst [vmem:[#allocation3 + $0xc0] sm:$0xff] %v3057
        %3090 = vst [vmem:[#allocation3 + $0xc8] sm:$0xff] %v3058
        %3091 = vst [vmem:[#allocation3 + $0xd0] sm:$0xff] %v3059
        %3092 = vst [vmem:[#allocation3 + $0xd8] sm:$0xff] %v3060
        %3093 = vst [vmem:[#allocation3 + $0xe0] sm:$0xff] %v3061
        %3094 = vst [vmem:[#allocation3 + $0xe8] sm:$0xff] %v3062
        %3095 = vst [vmem:[#allocation3 + $0xf0] sm:$0xff] %v3063
        %3096 = vst [vmem:[#allocation3 + $0xf8] sm:$0xff] %v3064
        %v3097 = vld [vmem:[#allocation3] sm:$0xff]
        %v3098 = vld [vmem:[#allocation3 + $0x8] sm:$0xff]
        %v3099 = vld [vmem:[#allocation3 + $0x10] sm:$0xff]
        %v3100 = vld [vmem:[#allocation3 + $0x18] sm:$0xff]
        %v3101 = vld [vmem:[#allocation3 + $0x20] sm:$0xff]
        %v3102 = vld [vmem:[#allocation3 + $0x28] sm:$0xff]
        %v3103 = vld [vmem:[#allocation3 + $0x30] sm:$0xff]
        %v3104 = vld [vmem:[#allocation3 + $0x38] sm:$0xff]
        %v3105 = vld [vmem:[#allocation3 + $0x40] sm:$0xff]
        %v3106 = vld [vmem:[#allocation3 + $0x48] sm:$0xff]
        %v3107 = vld [vmem:[#allocation3 + $0x50] sm:$0xff]
        %v3108 = vld [vmem:[#allocation3 + $0x58] sm:$0xff]
        %v3109 = vld [vmem:[#allocation3 + $0x60] sm:$0xff]
        %v3110 = vld [vmem:[#allocation3 + $0x68] sm:$0xff]
        %v3111 = vld [vmem:[#allocation3 + $0x70] sm:$0xff]
        %v3112 = vld [vmem:[#allocation3 + $0x78] sm:$0xff]
        %v3113 = vld [vmem:[#allocation3 + $0x80] sm:$0xff]
        %v3114 = vld [vmem:[#allocation3 + $0x88] sm:$0xff]
        %v3115 = vld [vmem:[#allocation3 + $0x90] sm:$0xff]
        %v3116 = vld [vmem:[#allocation3 + $0x98] sm:$0xff]
        %v3117 = vld [vmem:[#allocation3 + $0xa0] sm:$0xff]
        %v3118 = vld [vmem:[#allocation3 + $0xa8] sm:$0xff]
        %v3119 = vld [vmem:[#allocation3 + $0xb0] sm:$0xff]
        %v3120 = vld [vmem:[#allocation3 + $0xb8] sm:$0xff]
        %v3121 = vld [vmem:[#allocation3 + $0xc0] sm:$0xff]
        %v3122 = vld [vmem:[#allocation3 + $0xc8] sm:$0xff]
        %v3123 = vld [vmem:[#allocation3 + $0xd0] sm:$0xff]
        %v3124 = vld [vmem:[#allocation3 + $0xd8] sm:$0xff]
        %v3125 = vld [vmem:[#allocation3 + $0xe0] sm:$0xff]
        %v3126 = vld [vmem:[#allocation3 + $0xe8] sm:$0xff]
        %v3127 = vld [vmem:[#allocation3 + $0xf0] sm:$0xff]
        %v3128 = vld [vmem:[#allocation3 + $0xf8] sm:$0xff]
        %v3129 = vld [vmem:[%s4] sm:$0x1]
        %v3131 = vperm.slane %v3129, 0
        %v3133 = vmul.f32 %v3097, %v3131
        %v3134 = vmul.f32 %v3098, %v3131
        %v3135 = vmul.f32 %v3099, %v3131
        %v3136 = vmul.f32 %v3100, %v3131
        %v3137 = vmul.f32 %v3101, %v3131
        %v3138 = vmul.f32 %v3102, %v3131
        %v3139 = vmul.f32 %v3103, %v3131
        %v3140 = vmul.f32 %v3104, %v3131
        %v3141 = vmul.f32 %v3105, %v3131
        %v3142 = vmul.f32 %v3106, %v3131
        %v3143 = vmul.f32 %v3107, %v3131
        %v3144 = vmul.f32 %v3108, %v3131
        %v3145 = vmul.f32 %v3109, %v3131
        %v3146 = vmul.f32 %v3110, %v3131
        %v3147 = vmul.f32 %v3111, %v3131
        %v3148 = vmul.f32 %v3112, %v3131
        %v3149 = vmul.f32 %v3113, %v3131
        %v3150 = vmul.f32 %v3114, %v3131
        %v3151 = vmul.f32 %v3115, %v3131
        %v3152 = vmul.f32 %v3116, %v3131
        %v3153 = vmul.f32 %v3117, %v3131
        %v3154 = vmul.f32 %v3118, %v3131
        %v3155 = vmul.f32 %v3119, %v3131
        %v3156 = vmul.f32 %v3120, %v3131
        %v3157 = vmul.f32 %v3121, %v3131
        %v3158 = vmul.f32 %v3122, %v3131
        %v3159 = vmul.f32 %v3123, %v3131
        %v3160 = vmul.f32 %v3124, %v3131
        %v3161 = vmul.f32 %v3125, %v3131
        %v3162 = vmul.f32 %v3126, %v3131
        %v3163 = vmul.f32 %v3127, %v3131
        %v3164 = vmul.f32 %v3128, %v3131
        %v3165 = vld [vmem:[%s5] sm:$0x1]
        %v3167 = vperm.slane %v3165, 0
        %v3169 = vadd.f32 %v3133, %v3167
        %v3170 = vadd.f32 %v3134, %v3167
        %v3171 = vadd.f32 %v3135, %v3167
        %v3172 = vadd.f32 %v3136, %v3167
        %v3173 = vadd.f32 %v3137, %v3167
        %v3174 = vadd.f32 %v3138, %v3167
        %v3175 = vadd.f32 %v3139, %v3167
        %v3176 = vadd.f32 %v3140, %v3167
        %v3177 = vadd.f32 %v3141, %v3167
        %v3178 = vadd.f32 %v3142, %v3167
        %v3179 = vadd.f32 %v3143, %v3167
        %v3180 = vadd.f32 %v3144, %v3167
        %v3181 = vadd.f32 %v3145, %v3167
        %v3182 = vadd.f32 %v3146, %v3167
        %v3183 = vadd.f32 %v3147, %v3167
        %v3184 = vadd.f32 %v3148, %v3167
        %v3185 = vadd.f32 %v3149, %v3167
        %v3186 = vadd.f32 %v3150, %v3167
        %v3187 = vadd.f32 %v3151, %v3167
        %v3188 = vadd.f32 %v3152, %v3167
        %v3189 = vadd.f32 %v3153, %v3167
        %v3190 = vadd.f32 %v3154, %v3167
        %v3191 = vadd.f32 %v3155, %v3167
        %v3192 = vadd.f32 %v3156, %v3167
        %v3193 = vadd.f32 %v3157, %v3167
        %v3194 = vadd.f32 %v3158, %v3167
        %v3195 = vadd.f32 %v3159, %v3167
        %v3196 = vadd.f32 %v3160, %v3167
        %v3197 = vadd.f32 %v3161, %v3167
        %v3198 = vadd.f32 %v3162, %v3167
        %v3199 = vadd.f32 %v3163, %v3167
        %v3200 = vadd.f32 %v3164, %v3167
        %v3201 = vmax.f32 %v3169, 0.0
        %v3202 = vmax.f32 %v3170, 0.0
        %v3203 = vmax.f32 %v3171, 0.0
        %v3204 = vmax.f32 %v3172, 0.0
        %v3205 = vmax.f32 %v3173, 0.0
        %v3206 = vmax.f32 %v3174, 0.0
        %v3207 = vmax.f32 %v3175, 0.0
        %v3208 = vmax.f32 %v3176, 0.0
        %v3209 = vmax.f32 %v3177, 0.0
        %v3210 = vmax.f32 %v3178, 0.0
        %v3211 = vmax.f32 %v3179, 0.0
        %v3212 = vmax.f32 %v3180, 0.0
        %v3213 = vmax.f32 %v3181, 0.0
        %v3214 = vmax.f32 %v3182, 0.0
        %v3215 = vmax.f32 %v3183, 0.0
        %v3216 = vmax.f32 %v3184, 0.0
        %v3217 = vmax.f32 %v3185, 0.0
        %v3218 = vmax.f32 %v3186, 0.0
        %v3219 = vmax.f32 %v3187, 0.0
        %v3220 = vmax.f32 %v3188, 0.0
        %v3221 = vmax.f32 %v3189, 0.0
        %v3222 = vmax.f32 %v3190, 0.0
        %v3223 = vmax.f32 %v3191, 0.0
        %v3224 = vmax.f32 %v3192, 0.0
        %v3225 = vmax.f32 %v3193, 0.0
        %v3226 = vmax.f32 %v3194, 0.0
        %v3227 = vmax.f32 %v3195, 0.0
        %v3228 = vmax.f32 %v3196, 0.0
        %v3229 = vmax.f32 %v3197, 0.0
        %v3230 = vmax.f32 %v3198, 0.0
        %v3231 = vmax.f32 %v3199, 0.0
        %v3232 = vmax.f32 %v3200, 0.0
        %v3265 = vrot.slane %v3201, 2
        %v3266 = vrot.slane %v3201, 4
        %v3267 = vrot.slane %v3201, 6
        %v3268 = vrot.slane %v3202, 2
        %v3269 = vrot.slane %v3202, 4
        %v3270 = vrot.slane %v3202, 6
        %v3271 = vrot.slane %v3203, 2
        %v3272 = vrot.slane %v3203, 4
        %v3273 = vrot.slane %v3203, 6
        %v3274 = vrot.slane %v3204, 2
        %v3275 = vrot.slane %v3204, 4
        %v3276 = vrot.slane %v3204, 6
        %v3277 = vrot.slane %v3205, 2
        %v3278 = vrot.slane %v3205, 4
        %v3279 = vrot.slane %v3205, 6
        %v3280 = vrot.slane %v3206, 2
        %v3281 = vrot.slane %v3206, 4
        %v3282 = vrot.slane %v3206, 6
        %v3283 = vrot.slane %v3207, 2
        %v3284 = vrot.slane %v3207, 4
        %v3285 = vrot.slane %v3207, 6
        %v3286 = vrot.slane %v3208, 2
        %v3287 = vrot.slane %v3208, 4
        %v3288 = vrot.slane %v3208, 6
        %v3289 = vrot.slane %v3209, 2
        %v3290 = vrot.slane %v3209, 4
        %v3291 = vrot.slane %v3209, 6
        %v3292 = vrot.slane %v3210, 2
        %v3293 = vrot.slane %v3210, 4
        %v3294 = vrot.slane %v3210, 6
        %v3295 = vrot.slane %v3211, 2
        %v3296 = vrot.slane %v3211, 4
        %v3297 = vrot.slane %v3211, 6
        %v3298 = vrot.slane %v3212, 2
        %v3299 = vrot.slane %v3212, 4
        %v3300 = vrot.slane %v3212, 6
        %v3301 = vrot.slane %v3213, 2
        %v3302 = vrot.slane %v3213, 4
        %v3303 = vrot.slane %v3213, 6
        %v3304 = vrot.slane %v3214, 2
        %v3305 = vrot.slane %v3214, 4
        %v3306 = vrot.slane %v3214, 6
        %v3307 = vrot.slane %v3215, 2
        %v3308 = vrot.slane %v3215, 4
        %v3309 = vrot.slane %v3215, 6
        %v3310 = vrot.slane %v3216, 2
        %v3311 = vrot.slane %v3216, 4
        %v3312 = vrot.slane %v3216, 6
        %v3313 = vrot.slane %v3217, 2
        %v3314 = vrot.slane %v3217, 4
        %v3315 = vrot.slane %v3217, 6
        %v3316 = vrot.slane %v3218, 2
        %v3317 = vrot.slane %v3218, 4
        %v3318 = vrot.slane %v3218, 6
        %v3319 = vrot.slane %v3219, 2
        %v3320 = vrot.slane %v3219, 4
        %v3321 = vrot.slane %v3219, 6
        %v3322 = vrot.slane %v3220, 2
        %v3323 = vrot.slane %v3220, 4
        %v3324 = vrot.slane %v3220, 6
        %v3325 = vrot.slane %v3221, 2
        %v3326 = vrot.slane %v3221, 4
        %v3327 = vrot.slane %v3221, 6
        %v3328 = vrot.slane %v3222, 2
        %v3329 = vrot.slane %v3222, 4
        %v3330 = vrot.slane %v3222, 6
        %v3331 = vrot.slane %v3223, 2
        %v3332 = vrot.slane %v3223, 4
        %v3333 = vrot.slane %v3223, 6
        %v3334 = vrot.slane %v3224, 2
        %v3335 = vrot.slane %v3224, 4
        %v3336 = vrot.slane %v3224, 6
        %v3337 = vrot.slane %v3225, 2
        %v3338 = vrot.slane %v3225, 4
        %v3339 = vrot.slane %v3225, 6
        %v3340 = vrot.slane %v3226, 2
        %v3341 = vrot.slane %v3226, 4
        %v3342 = vrot.slane %v3226, 6
        %v3343 = vrot.slane %v3227, 2
        %v3344 = vrot.slane %v3227, 4
        %v3345 = vrot.slane %v3227, 6
        %v3346 = vrot.slane %v3228, 2
        %v3347 = vrot.slane %v3228, 4
        %v3348 = vrot.slane %v3228, 6
        %v3349 = vrot.slane %v3229, 2
        %v3350 = vrot.slane %v3229, 4
        %v3351 = vrot.slane %v3229, 6
        %v3352 = vrot.slane %v3230, 2
        %v3353 = vrot.slane %v3230, 4
        %v3354 = vrot.slane %v3230, 6
        %v3355 = vrot.slane %v3231, 2
        %v3356 = vrot.slane %v3231, 4
        %v3357 = vrot.slane %v3231, 6
        %v3358 = vrot.slane %v3232, 2
        %v3359 = vrot.slane %v3232, 4
        %v3360 = vrot.slane %v3232, 6
        %v3457 = vsel %vm681, %v3201, -inf
        %v3458 = vrot.slane %v3457, 4
        %v3459 = vmax.f32 %v3457, %v3458
        %v3460 = vrot.slane %v3459, 2
        %v3461 = vmax.f32 %v3459, %v3460
        %v3462 = vrot.slane %v3461, 1
        %v3463 = vmax.f32 %v3461, %v3462
        %v3464 = vsel %vm681, %v3265, -inf
        %v3465 = vrot.slane %v3464, 4
        %v3466 = vmax.f32 %v3464, %v3465
        %v3467 = vrot.slane %v3466, 2
        %v3468 = vmax.f32 %v3466, %v3467
        %v3469 = vrot.slane %v3468, 1
        %v3470 = vmax.f32 %v3468, %v3469
        %v3471 = vsel %vm681, %v3266, -inf
        %v3472 = vrot.slane %v3471, 4
        %v3473 = vmax.f32 %v3471, %v3472
        %v3474 = vrot.slane %v3473, 2
        %v3475 = vmax.f32 %v3473, %v3474
        %v3476 = vrot.slane %v3475, 1
        %v3477 = vmax.f32 %v3475, %v3476
        %v3478 = vsel %vm681, %v3267, -inf
        %v3479 = vrot.slane %v3478, 4
        %v3480 = vmax.f32 %v3478, %v3479
        %v3481 = vrot.slane %v3480, 2
        %v3482 = vmax.f32 %v3480, %v3481
        %v3483 = vrot.slane %v3482, 1
        %v3484 = vmax.f32 %v3482, %v3483
        %v3485 = vsel %vm681, %v3202, -inf
        %v3486 = vrot.slane %v3485, 4
        %v3487 = vmax.f32 %v3485, %v3486
        %v3488 = vrot.slane %v3487, 2
        %v3489 = vmax.f32 %v3487, %v3488
        %v3490 = vrot.slane %v3489, 1
        %v3491 = vmax.f32 %v3489, %v3490
        %v3492 = vsel %vm681, %v3268, -inf
        %v3493 = vrot.slane %v3492, 4
        %v3494 = vmax.f32 %v3492, %v3493
        %v3495 = vrot.slane %v3494, 2
        %v3496 = vmax.f32 %v3494, %v3495
        %v3497 = vrot.slane %v3496, 1
        %v3498 = vmax.f32 %v3496, %v3497
        %v3499 = vsel %vm681, %v3269, -inf
        %v3500 = vrot.slane %v3499, 4
        %v3501 = vmax.f32 %v3499, %v3500
        %v3502 = vrot.slane %v3501, 2
        %v3503 = vmax.f32 %v3501, %v3502
        %v3504 = vrot.slane %v3503, 1
        %v3505 = vmax.f32 %v3503, %v3504
        %v3506 = vsel %vm681, %v3270, -inf
        %v3507 = vrot.slane %v3506, 4
        %v3508 = vmax.f32 %v3506, %v3507
        %v3509 = vrot.slane %v3508, 2
        %v3510 = vmax.f32 %v3508, %v3509
        %v3511 = vrot.slane %v3510, 1
        %v3512 = vmax.f32 %v3510, %v3511
        %v3513 = vsel %vm681, %v3203, -inf
        %v3514 = vrot.slane %v3513, 4
        %v3515 = vmax.f32 %v3513, %v3514
        %v3516 = vrot.slane %v3515, 2
        %v3517 = vmax.f32 %v3515, %v3516
        %v3518 = vrot.slane %v3517, 1
        %v3519 = vmax.f32 %v3517, %v3518
        %v3520 = vsel %vm681, %v3271, -inf
        %v3521 = vrot.slane %v3520, 4
        %v3522 = vmax.f32 %v3520, %v3521
        %v3523 = vrot.slane %v3522, 2
        %v3524 = vmax.f32 %v3522, %v3523
        %v3525 = vrot.slane %v3524, 1
        %v3526 = vmax.f32 %v3524, %v3525
        %v3527 = vsel %vm681, %v3272, -inf
        %v3528 = vrot.slane %v3527, 4
        %v3529 = vmax.f32 %v3527, %v3528
        %v3530 = vrot.slane %v3529, 2
        %v3531 = vmax.f32 %v3529, %v3530
        %v3532 = vrot.slane %v3531, 1
        %v3533 = vmax.f32 %v3531, %v3532
        %v3534 = vsel %vm681, %v3273, -inf
        %v3535 = vrot.slane %v3534, 4
        %v3536 = vmax.f32 %v3534, %v3535
        %v3537 = vrot.slane %v3536, 2
        %v3538 = vmax.f32 %v3536, %v3537
        %v3539 = vrot.slane %v3538, 1
        %v3540 = vmax.f32 %v3538, %v3539
        %v3541 = vsel %vm681, %v3204, -inf
        %v3542 = vrot.slane %v3541, 4
        %v3543 = vmax.f32 %v3541, %v3542
        %v3544 = vrot.slane %v3543, 2
        %v3545 = vmax.f32 %v3543, %v3544
        %v3546 = vrot.slane %v3545, 1
        %v3547 = vmax.f32 %v3545, %v3546
        %v3548 = vsel %vm681, %v3274, -inf
        %v3549 = vrot.slane %v3548, 4
        %v3550 = vmax.f32 %v3548, %v3549
        %v3551 = vrot.slane %v3550, 2
        %v3552 = vmax.f32 %v3550, %v3551
        %v3553 = vrot.slane %v3552, 1
        %v3554 = vmax.f32 %v3552, %v3553
        %v3555 = vsel %vm681, %v3275, -inf
        %v3556 = vrot.slane %v3555, 4
        %v3557 = vmax.f32 %v3555, %v3556
        %v3558 = vrot.slane %v3557, 2
        %v3559 = vmax.f32 %v3557, %v3558
        %v3560 = vrot.slane %v3559, 1
        %v3561 = vmax.f32 %v3559, %v3560
        %v3562 = vsel %vm681, %v3276, -inf
        %v3563 = vrot.slane %v3562, 4
        %v3564 = vmax.f32 %v3562, %v3563
        %v3565 = vrot.slane %v3564, 2
        %v3566 = vmax.f32 %v3564, %v3565
        %v3567 = vrot.slane %v3566, 1
        %v3568 = vmax.f32 %v3566, %v3567
        %v3569 = vsel %vm681, %v3205, -inf
        %v3570 = vrot.slane %v3569, 4
        %v3571 = vmax.f32 %v3569, %v3570
        %v3572 = vrot.slane %v3571, 2
        %v3573 = vmax.f32 %v3571, %v3572
        %v3574 = vrot.slane %v3573, 1
        %v3575 = vmax.f32 %v3573, %v3574
        %v3576 = vsel %vm681, %v3277, -inf
        %v3577 = vrot.slane %v3576, 4
        %v3578 = vmax.f32 %v3576, %v3577
        %v3579 = vrot.slane %v3578, 2
        %v3580 = vmax.f32 %v3578, %v3579
        %v3581 = vrot.slane %v3580, 1
        %v3582 = vmax.f32 %v3580, %v3581
        %v3583 = vsel %vm681, %v3278, -inf
        %v3584 = vrot.slane %v3583, 4
        %v3585 = vmax.f32 %v3583, %v3584
        %v3586 = vrot.slane %v3585, 2
        %v3587 = vmax.f32 %v3585, %v3586
        %v3588 = vrot.slane %v3587, 1
        %v3589 = vmax.f32 %v3587, %v3588
        %v3590 = vsel %vm681, %v3279, -inf
        %v3591 = vrot.slane %v3590, 4
        %v3592 = vmax.f32 %v3590, %v3591
        %v3593 = vrot.slane %v3592, 2
        %v3594 = vmax.f32 %v3592, %v3593
        %v3595 = vrot.slane %v3594, 1
        %v3596 = vmax.f32 %v3594, %v3595
        %v3597 = vsel %vm681, %v3206, -inf
        %v3598 = vrot.slane %v3597, 4
        %v3599 = vmax.f32 %v3597, %v3598
        %v3600 = vrot.slane %v3599, 2
        %v3601 = vmax.f32 %v3599, %v3600
        %v3602 = vrot.slane %v3601, 1
        %v3603 = vmax.f32 %v3601, %v3602
        %v3604 = vsel %vm681, %v3280, -inf
        %v3605 = vrot.slane %v3604, 4
        %v3606 = vmax.f32 %v3604, %v3605
        %v3607 = vrot.slane %v3606, 2
        %v3608 = vmax.f32 %v3606, %v3607
        %v3609 = vrot.slane %v3608, 1
        %v3610 = vmax.f32 %v3608, %v3609
        %v3611 = vsel %vm681, %v3281, -inf
        %v3612 = vrot.slane %v3611, 4
        %v3613 = vmax.f32 %v3611, %v3612
        %v3614 = vrot.slane %v3613, 2
        %v3615 = vmax.f32 %v3613, %v3614
        %v3616 = vrot.slane %v3615, 1
        %v3617 = vmax.f32 %v3615, %v3616
        %v3618 = vsel %vm681, %v3282, -inf
        %v3619 = vrot.slane %v3618, 4
        %v3620 = vmax.f32 %v3618, %v3619
        %v3621 = vrot.slane %v3620, 2
        %v3622 = vmax.f32 %v3620, %v3621
        %v3623 = vrot.slane %v3622, 1
        %v3624 = vmax.f32 %v3622, %v3623
        %v3625 = vsel %vm681, %v3207, -inf
        %v3626 = vrot.slane %v3625, 4
        %v3627 = vmax.f32 %v3625, %v3626
        %v3628 = vrot.slane %v3627, 2
        %v3629 = vmax.f32 %v3627, %v3628
        %v3630 = vrot.slane %v3629, 1
        %v3631 = vmax.f32 %v3629, %v3630
        %v3632 = vsel %vm681, %v3283, -inf
        %v3633 = vrot.slane %v3632, 4
        %v3634 = vmax.f32 %v3632, %v3633
        %v3635 = vrot.slane %v3634, 2
        %v3636 = vmax.f32 %v3634, %v3635
        %v3637 = vrot.slane %v3636, 1
        %v3638 = vmax.f32 %v3636, %v3637
        %v3639 = vsel %vm681, %v3284, -inf
        %v3640 = vrot.slane %v3639, 4
        %v3641 = vmax.f32 %v3639, %v3640
        %v3642 = vrot.slane %v3641, 2
        %v3643 = vmax.f32 %v3641, %v3642
        %v3644 = vrot.slane %v3643, 1
        %v3645 = vmax.f32 %v3643, %v3644
        %v3646 = vsel %vm681, %v3285, -inf
        %v3647 = vrot.slane %v3646, 4
        %v3648 = vmax.f32 %v3646, %v3647
        %v3649 = vrot.slane %v3648, 2
        %v3650 = vmax.f32 %v3648, %v3649
        %v3651 = vrot.slane %v3650, 1
        %v3652 = vmax.f32 %v3650, %v3651
        %v3653 = vsel %vm681, %v3208, -inf
        %v3654 = vrot.slane %v3653, 4
        %v3655 = vmax.f32 %v3653, %v3654
        %v3656 = vrot.slane %v3655, 2
        %v3657 = vmax.f32 %v3655, %v3656
        %v3658 = vrot.slane %v3657, 1
        %v3659 = vmax.f32 %v3657, %v3658
        %v3660 = vsel %vm681, %v3286, -inf
        %v3661 = vrot.slane %v3660, 4
        %v3662 = vmax.f32 %v3660, %v3661
        %v3663 = vrot.slane %v3662, 2
        %v3664 = vmax.f32 %v3662, %v3663
        %v3665 = vrot.slane %v3664, 1
        %v3666 = vmax.f32 %v3664, %v3665
        %v3667 = vsel %vm681, %v3287, -inf
        %v3668 = vrot.slane %v3667, 4
        %v3669 = vmax.f32 %v3667, %v3668
        %v3670 = vrot.slane %v3669, 2
        %v3671 = vmax.f32 %v3669, %v3670
        %v3672 = vrot.slane %v3671, 1
        %v3673 = vmax.f32 %v3671, %v3672
        %v3674 = vsel %vm681, %v3288, -inf
        %v3675 = vrot.slane %v3674, 4
        %v3676 = vmax.f32 %v3674, %v3675
        %v3677 = vrot.slane %v3676, 2
        %v3678 = vmax.f32 %v3676, %v3677
        %v3679 = vrot.slane %v3678, 1
        %v3680 = vmax.f32 %v3678, %v3679
        %v3681 = vsel %vm681, %v3209, -inf
        %v3682 = vrot.slane %v3681, 4
        %v3683 = vmax.f32 %v3681, %v3682
        %v3684 = vrot.slane %v3683, 2
        %v3685 = vmax.f32 %v3683, %v3684
        %v3686 = vrot.slane %v3685, 1
        %v3687 = vmax.f32 %v3685, %v3686
        %v3688 = vsel %vm681, %v3289, -inf
        %v3689 = vrot.slane %v3688, 4
        %v3690 = vmax.f32 %v3688, %v3689
        %v3691 = vrot.slane %v3690, 2
        %v3692 = vmax.f32 %v3690, %v3691
        %v3693 = vrot.slane %v3692, 1
        %v3694 = vmax.f32 %v3692, %v3693
        %v3695 = vsel %vm681, %v3290, -inf
        %v3696 = vrot.slane %v3695, 4
        %v3697 = vmax.f32 %v3695, %v3696
        %v3698 = vrot.slane %v3697, 2
        %v3699 = vmax.f32 %v3697, %v3698
        %v3700 = vrot.slane %v3699, 1
        %v3701 = vmax.f32 %v3699, %v3700
        %v3702 = vsel %vm681, %v3291, -inf
        %v3703 = vrot.slane %v3702, 4
        %v3704 = vmax.f32 %v3702, %v3703
        %v3705 = vrot.slane %v3704, 2
        %v3706 = vmax.f32 %v3704, %v3705
        %v3707 = vrot.slane %v3706, 1
        %v3708 = vmax.f32 %v3706, %v3707
        %v3709 = vsel %vm681, %v3210, -inf
        %v3710 = vrot.slane %v3709, 4
        %v3711 = vmax.f32 %v3709, %v3710
        %v3712 = vrot.slane %v3711, 2
        %v3713 = vmax.f32 %v3711, %v3712
        %v3714 = vrot.slane %v3713, 1
        %v3715 = vmax.f32 %v3713, %v3714
        %v3716 = vsel %vm681, %v3292, -inf
        %v3717 = vrot.slane %v3716, 4
        %v3718 = vmax.f32 %v3716, %v3717
        %v3719 = vrot.slane %v3718, 2
        %v3720 = vmax.f32 %v3718, %v3719
        %v3721 = vrot.slane %v3720, 1
        %v3722 = vmax.f32 %v3720, %v3721
        %v3723 = vsel %vm681, %v3293, -inf
        %v3724 = vrot.slane %v3723, 4
        %v3725 = vmax.f32 %v3723, %v3724
        %v3726 = vrot.slane %v3725, 2
        %v3727 = vmax.f32 %v3725, %v3726
        %v3728 = vrot.slane %v3727, 1
        %v3729 = vmax.f32 %v3727, %v3728
        %v3730 = vsel %vm681, %v3294, -inf
        %v3731 = vrot.slane %v3730, 4
        %v3732 = vmax.f32 %v3730, %v3731
        %v3733 = vrot.slane %v3732, 2
        %v3734 = vmax.f32 %v3732, %v3733
        %v3735 = vrot.slane %v3734, 1
        %v3736 = vmax.f32 %v3734, %v3735
        %v3737 = vsel %vm681, %v3211, -inf
        %v3738 = vrot.slane %v3737, 4
        %v3739 = vmax.f32 %v3737, %v3738
        %v3740 = vrot.slane %v3739, 2
        %v3741 = vmax.f32 %v3739, %v3740
        %v3742 = vrot.slane %v3741, 1
        %v3743 = vmax.f32 %v3741, %v3742
        %v3744 = vsel %vm681, %v3295, -inf
        %v3745 = vrot.slane %v3744, 4
        %v3746 = vmax.f32 %v3744, %v3745
        %v3747 = vrot.slane %v3746, 2
        %v3748 = vmax.f32 %v3746, %v3747
        %v3749 = vrot.slane %v3748, 1
        %v3750 = vmax.f32 %v3748, %v3749
        %v3751 = vsel %vm681, %v3296, -inf
        %v3752 = vrot.slane %v3751, 4
        %v3753 = vmax.f32 %v3751, %v3752
        %v3754 = vrot.slane %v3753, 2
        %v3755 = vmax.f32 %v3753, %v3754
        %v3756 = vrot.slane %v3755, 1
        %v3757 = vmax.f32 %v3755, %v3756
        %v3758 = vsel %vm681, %v3297, -inf
        %v3759 = vrot.slane %v3758, 4
        %v3760 = vmax.f32 %v3758, %v3759
        %v3761 = vrot.slane %v3760, 2
        %v3762 = vmax.f32 %v3760, %v3761
        %v3763 = vrot.slane %v3762, 1
        %v3764 = vmax.f32 %v3762, %v3763
        %v3765 = vsel %vm681, %v3212, -inf
        %v3766 = vrot.slane %v3765, 4
        %v3767 = vmax.f32 %v3765, %v3766
        %v3768 = vrot.slane %v3767, 2
        %v3769 = vmax.f32 %v3767, %v3768
        %v3770 = vrot.slane %v3769, 1
        %v3771 = vmax.f32 %v3769, %v3770
        %v3772 = vsel %vm681, %v3298, -inf
        %v3773 = vrot.slane %v3772, 4
        %v3774 = vmax.f32 %v3772, %v3773
        %v3775 = vrot.slane %v3774, 2
        %v3776 = vmax.f32 %v3774, %v3775
        %v3777 = vrot.slane %v3776, 1
        %v3778 = vmax.f32 %v3776, %v3777
        %v3779 = vsel %vm681, %v3299, -inf
        %v3780 = vrot.slane %v3779, 4
        %v3781 = vmax.f32 %v3779, %v3780
        %v3782 = vrot.slane %v3781, 2
        %v3783 = vmax.f32 %v3781, %v3782
        %v3784 = vrot.slane %v3783, 1
        %v3785 = vmax.f32 %v3783, %v3784
        %v3786 = vsel %vm681, %v3300, -inf
        %v3787 = vrot.slane %v3786, 4
        %v3788 = vmax.f32 %v3786, %v3787
        %v3789 = vrot.slane %v3788, 2
        %v3790 = vmax.f32 %v3788, %v3789
        %v3791 = vrot.slane %v3790, 1
        %v3792 = vmax.f32 %v3790, %v3791
        %v3793 = vsel %vm681, %v3213, -inf
        %v3794 = vrot.slane %v3793, 4
        %v3795 = vmax.f32 %v3793, %v3794
        %v3796 = vrot.slane %v3795, 2
        %v3797 = vmax.f32 %v3795, %v3796
        %v3798 = vrot.slane %v3797, 1
        %v3799 = vmax.f32 %v3797, %v3798
        %v3800 = vsel %vm681, %v3301, -inf
        %v3801 = vrot.slane %v3800, 4
        %v3802 = vmax.f32 %v3800, %v3801
        %v3803 = vrot.slane %v3802, 2
        %v3804 = vmax.f32 %v3802, %v3803
        %v3805 = vrot.slane %v3804, 1
        %v3806 = vmax.f32 %v3804, %v3805
        %v3807 = vsel %vm681, %v3302, -inf
        %v3808 = vrot.slane %v3807, 4
        %v3809 = vmax.f32 %v3807, %v3808
        %v3810 = vrot.slane %v3809, 2
        %v3811 = vmax.f32 %v3809, %v3810
        %v3812 = vrot.slane %v3811, 1
        %v3813 = vmax.f32 %v3811, %v3812
        %v3814 = vsel %vm681, %v3303, -inf
        %v3815 = vrot.slane %v3814, 4
        %v3816 = vmax.f32 %v3814, %v3815
        %v3817 = vrot.slane %v3816, 2
        %v3818 = vmax.f32 %v3816, %v3817
        %v3819 = vrot.slane %v3818, 1
        %v3820 = vmax.f32 %v3818, %v3819
        %v3821 = vsel %vm681, %v3214, -inf
        %v3822 = vrot.slane %v3821, 4
        %v3823 = vmax.f32 %v3821, %v3822
        %v3824 = vrot.slane %v3823, 2
        %v3825 = vmax.f32 %v3823, %v3824
        %v3826 = vrot.slane %v3825, 1
        %v3827 = vmax.f32 %v3825, %v3826
        %v3828 = vsel %vm681, %v3304, -inf
        %v3829 = vrot.slane %v3828, 4
        %v3830 = vmax.f32 %v3828, %v3829
        %v3831 = vrot.slane %v3830, 2
        %v3832 = vmax.f32 %v3830, %v3831
        %v3833 = vrot.slane %v3832, 1
        %v3834 = vmax.f32 %v3832, %v3833
        %v3835 = vsel %vm681, %v3305, -inf
        %v3836 = vrot.slane %v3835, 4
        %v3837 = vmax.f32 %v3835, %v3836
        %v3838 = vrot.slane %v3837, 2
        %v3839 = vmax.f32 %v3837, %v3838
        %v3840 = vrot.slane %v3839, 1
        %v3841 = vmax.f32 %v3839, %v3840
        %v3842 = vsel %vm681, %v3306, -inf
        %v3843 = vrot.slane %v3842, 4
        %v3844 = vmax.f32 %v3842, %v3843
        %v3845 = vrot.slane %v3844, 2
        %v3846 = vmax.f32 %v3844, %v3845
        %v3847 = vrot.slane %v3846, 1
        %v3848 = vmax.f32 %v3846, %v3847
        %v3849 = vsel %vm681, %v3215, -inf
        %v3850 = vrot.slane %v3849, 4
        %v3851 = vmax.f32 %v3849, %v3850
        %v3852 = vrot.slane %v3851, 2
        %v3853 = vmax.f32 %v3851, %v3852
        %v3854 = vrot.slane %v3853, 1
        %v3855 = vmax.f32 %v3853, %v3854
        %v3856 = vsel %vm681, %v3307, -inf
        %v3857 = vrot.slane %v3856, 4
        %v3858 = vmax.f32 %v3856, %v3857
        %v3859 = vrot.slane %v3858, 2
        %v3860 = vmax.f32 %v3858, %v3859
        %v3861 = vrot.slane %v3860, 1
        %v3862 = vmax.f32 %v3860, %v3861
        %v3863 = vsel %vm681, %v3308, -inf
        %v3864 = vrot.slane %v3863, 4
        %v3865 = vmax.f32 %v3863, %v3864
        %v3866 = vrot.slane %v3865, 2
        %v3867 = vmax.f32 %v3865, %v3866
        %v3868 = vrot.slane %v3867, 1
        %v3869 = vmax.f32 %v3867, %v3868
        %v3870 = vsel %vm681, %v3309, -inf
        %v3871 = vrot.slane %v3870, 4
        %v3872 = vmax.f32 %v3870, %v3871
        %v3873 = vrot.slane %v3872, 2
        %v3874 = vmax.f32 %v3872, %v3873
        %v3875 = vrot.slane %v3874, 1
        %v3876 = vmax.f32 %v3874, %v3875
        %v3877 = vsel %vm681, %v3216, -inf
        %v3878 = vrot.slane %v3877, 4
        %v3879 = vmax.f32 %v3877, %v3878
        %v3880 = vrot.slane %v3879, 2
        %v3881 = vmax.f32 %v3879, %v3880
        %v3882 = vrot.slane %v3881, 1
        %v3883 = vmax.f32 %v3881, %v3882
        %v3884 = vsel %vm681, %v3310, -inf
        %v3885 = vrot.slane %v3884, 4
        %v3886 = vmax.f32 %v3884, %v3885
        %v3887 = vrot.slane %v3886, 2
        %v3888 = vmax.f32 %v3886, %v3887
        %v3889 = vrot.slane %v3888, 1
        %v3890 = vmax.f32 %v3888, %v3889
        %v3891 = vsel %vm681, %v3311, -inf
        %v3892 = vrot.slane %v3891, 4
        %v3893 = vmax.f32 %v3891, %v3892
        %v3894 = vrot.slane %v3893, 2
        %v3895 = vmax.f32 %v3893, %v3894
        %v3896 = vrot.slane %v3895, 1
        %v3897 = vmax.f32 %v3895, %v3896
        %v3898 = vsel %vm681, %v3312, -inf
        %v3899 = vrot.slane %v3898, 4
        %v3900 = vmax.f32 %v3898, %v3899
        %v3901 = vrot.slane %v3900, 2
        %v3902 = vmax.f32 %v3900, %v3901
        %v3903 = vrot.slane %v3902, 1
        %v3904 = vmax.f32 %v3902, %v3903
        %v3905 = vsel %vm681, %v3217, -inf
        %v3906 = vrot.slane %v3905, 4
        %v3907 = vmax.f32 %v3905, %v3906
        %v3908 = vrot.slane %v3907, 2
        %v3909 = vmax.f32 %v3907, %v3908
        %v3910 = vrot.slane %v3909, 1
        %v3911 = vmax.f32 %v3909, %v3910
        %v3912 = vsel %vm681, %v3313, -inf
        %v3913 = vrot.slane %v3912, 4
        %v3914 = vmax.f32 %v3912, %v3913
        %v3915 = vrot.slane %v3914, 2
        %v3916 = vmax.f32 %v3914, %v3915
        %v3917 = vrot.slane %v3916, 1
        %v3918 = vmax.f32 %v3916, %v3917
        %v3919 = vsel %vm681, %v3314, -inf
        %v3920 = vrot.slane %v3919, 4
        %v3921 = vmax.f32 %v3919, %v3920
        %v3922 = vrot.slane %v3921, 2
        %v3923 = vmax.f32 %v3921, %v3922
        %v3924 = vrot.slane %v3923, 1
        %v3925 = vmax.f32 %v3923, %v3924
        %v3926 = vsel %vm681, %v3315, -inf
        %v3927 = vrot.slane %v3926, 4
        %v3928 = vmax.f32 %v3926, %v3927
        %v3929 = vrot.slane %v3928, 2
        %v3930 = vmax.f32 %v3928, %v3929
        %v3931 = vrot.slane %v3930, 1
        %v3932 = vmax.f32 %v3930, %v3931
        %v3933 = vsel %vm681, %v3218, -inf
        %v3934 = vrot.slane %v3933, 4
        %v3935 = vmax.f32 %v3933, %v3934
        %v3936 = vrot.slane %v3935, 2
        %v3937 = vmax.f32 %v3935, %v3936
        %v3938 = vrot.slane %v3937, 1
        %v3939 = vmax.f32 %v3937, %v3938
        %v3940 = vsel %vm681, %v3316, -inf
        %v3941 = vrot.slane %v3940, 4
        %v3942 = vmax.f32 %v3940, %v3941
        %v3943 = vrot.slane %v3942, 2
        %v3944 = vmax.f32 %v3942, %v3943
        %v3945 = vrot.slane %v3944, 1
        %v3946 = vmax.f32 %v3944, %v3945
        %v3947 = vsel %vm681, %v3317, -inf
        %v3948 = vrot.slane %v3947, 4
        %v3949 = vmax.f32 %v3947, %v3948
        %v3950 = vrot.slane %v3949, 2
        %v3951 = vmax.f32 %v3949, %v3950
        %v3952 = vrot.slane %v3951, 1
        %v3953 = vmax.f32 %v3951, %v3952
        %v3954 = vsel %vm681, %v3318, -inf
        %v3955 = vrot.slane %v3954, 4
        %v3956 = vmax.f32 %v3954, %v3955
        %v3957 = vrot.slane %v3956, 2
        %v3958 = vmax.f32 %v3956, %v3957
        %v3959 = vrot.slane %v3958, 1
        %v3960 = vmax.f32 %v3958, %v3959
        %v3961 = vsel %vm681, %v3219, -inf
        %v3962 = vrot.slane %v3961, 4
        %v3963 = vmax.f32 %v3961, %v3962
        %v3964 = vrot.slane %v3963, 2
        %v3965 = vmax.f32 %v3963, %v3964
        %v3966 = vrot.slane %v3965, 1
        %v3967 = vmax.f32 %v3965, %v3966
        %v3968 = vsel %vm681, %v3319, -inf
        %v3969 = vrot.slane %v3968, 4
        %v3970 = vmax.f32 %v3968, %v3969
        %v3971 = vrot.slane %v3970, 2
        %v3972 = vmax.f32 %v3970, %v3971
        %v3973 = vrot.slane %v3972, 1
        %v3974 = vmax.f32 %v3972, %v3973
        %v3975 = vsel %vm681, %v3320, -inf
        %v3976 = vrot.slane %v3975, 4
        %v3977 = vmax.f32 %v3975, %v3976
        %v3978 = vrot.slane %v3977, 2
        %v3979 = vmax.f32 %v3977, %v3978
        %v3980 = vrot.slane %v3979, 1
        %v3981 = vmax.f32 %v3979, %v3980
        %v3982 = vsel %vm681, %v3321, -inf
        %v3983 = vrot.slane %v3982, 4
        %v3984 = vmax.f32 %v3982, %v3983
        %v3985 = vrot.slane %v3984, 2
        %v3986 = vmax.f32 %v3984, %v3985
        %v3987 = vrot.slane %v3986, 1
        %v3988 = vmax.f32 %v3986, %v3987
        %v3989 = vsel %vm681, %v3220, -inf
        %v3990 = vrot.slane %v3989, 4
        %v3991 = vmax.f32 %v3989, %v3990
        %v3992 = vrot.slane %v3991, 2
        %v3993 = vmax.f32 %v3991, %v3992
        %v3994 = vrot.slane %v3993, 1
        %v3995 = vmax.f32 %v3993, %v3994
        %v3996 = vsel %vm681, %v3322, -inf
        %v3997 = vrot.slane %v3996, 4
        %v3998 = vmax.f32 %v3996, %v3997
        %v3999 = vrot.slane %v3998, 2
        %v4000 = vmax.f32 %v3998, %v3999
        %v4001 = vrot.slane %v4000, 1
        %v4002 = vmax.f32 %v4000, %v4001
        %v4003 = vsel %vm681, %v3323, -inf
        %v4004 = vrot.slane %v4003, 4
        %v4005 = vmax.f32 %v4003, %v4004
        %v4006 = vrot.slane %v4005, 2
        %v4007 = vmax.f32 %v4005, %v4006
        %v4008 = vrot.slane %v4007, 1
        %v4009 = vmax.f32 %v4007, %v4008
        %v4010 = vsel %vm681, %v3324, -inf
        %v4011 = vrot.slane %v4010, 4
        %v4012 = vmax.f32 %v4010, %v4011
        %v4013 = vrot.slane %v4012, 2
        %v4014 = vmax.f32 %v4012, %v4013
        %v4015 = vrot.slane %v4014, 1
        %v4016 = vmax.f32 %v4014, %v4015
        %v4017 = vsel %vm681, %v3221, -inf
        %v4018 = vrot.slane %v4017, 4
        %v4019 = vmax.f32 %v4017, %v4018
        %v4020 = vrot.slane %v4019, 2
        %v4021 = vmax.f32 %v4019, %v4020
        %v4022 = vrot.slane %v4021, 1
        %v4023 = vmax.f32 %v4021, %v4022
        %v4024 = vsel %vm681, %v3325, -inf
        %v4025 = vrot.slane %v4024, 4
        %v4026 = vmax.f32 %v4024, %v4025
        %v4027 = vrot.slane %v4026, 2
        %v4028 = vmax.f32 %v4026, %v4027
        %v4029 = vrot.slane %v4028, 1
        %v4030 = vmax.f32 %v4028, %v4029
        %v4031 = vsel %vm681, %v3326, -inf
        %v4032 = vrot.slane %v4031, 4
        %v4033 = vmax.f32 %v4031, %v4032
        %v4034 = vrot.slane %v4033, 2
        %v4035 = vmax.f32 %v4033, %v4034
        %v4036 = vrot.slane %v4035, 1
        %v4037 = vmax.f32 %v4035, %v4036
        %v4038 = vsel %vm681, %v3327, -inf
        %v4039 = vrot.slane %v4038, 4
        %v4040 = vmax.f32 %v4038, %v4039
        %v4041 = vrot.slane %v4040, 2
        %v4042 = vmax.f32 %v4040, %v4041
        %v4043 = vrot.slane %v4042, 1
        %v4044 = vmax.f32 %v4042, %v4043
        %v4045 = vsel %vm681, %v3222, -inf
        %v4046 = vrot.slane %v4045, 4
        %v4047 = vmax.f32 %v4045, %v4046
        %v4048 = vrot.slane %v4047, 2
        %v4049 = vmax.f32 %v4047, %v4048
        %v4050 = vrot.slane %v4049, 1
        %v4051 = vmax.f32 %v4049, %v4050
        %v4052 = vsel %vm681, %v3328, -inf
        %v4053 = vrot.slane %v4052, 4
        %v4054 = vmax.f32 %v4052, %v4053
        %v4055 = vrot.slane %v4054, 2
        %v4056 = vmax.f32 %v4054, %v4055
        %v4057 = vrot.slane %v4056, 1
        %v4058 = vmax.f32 %v4056, %v4057
        %v4059 = vsel %vm681, %v3329, -inf
        %v4060 = vrot.slane %v4059, 4
        %v4061 = vmax.f32 %v4059, %v4060
        %v4062 = vrot.slane %v4061, 2
        %v4063 = vmax.f32 %v4061, %v4062
        %v4064 = vrot.slane %v4063, 1
        %v4065 = vmax.f32 %v4063, %v4064
        %v4066 = vsel %vm681, %v3330, -inf
        %v4067 = vrot.slane %v4066, 4
        %v4068 = vmax.f32 %v4066, %v4067
        %v4069 = vrot.slane %v4068, 2
        %v4070 = vmax.f32 %v4068, %v4069
        %v4071 = vrot.slane %v4070, 1
        %v4072 = vmax.f32 %v4070, %v4071
        %v4073 = vsel %vm681, %v3223, -inf
        %v4074 = vrot.slane %v4073, 4
        %v4075 = vmax.f32 %v4073, %v4074
        %v4076 = vrot.slane %v4075, 2
        %v4077 = vmax.f32 %v4075, %v4076
        %v4078 = vrot.slane %v4077, 1
        %v4079 = vmax.f32 %v4077, %v4078
        %v4080 = vsel %vm681, %v3331, -inf
        %v4081 = vrot.slane %v4080, 4
        %v4082 = vmax.f32 %v4080, %v4081
        %v4083 = vrot.slane %v4082, 2
        %v4084 = vmax.f32 %v4082, %v4083
        %v4085 = vrot.slane %v4084, 1
        %v4086 = vmax.f32 %v4084, %v4085
        %v4087 = vsel %vm681, %v3332, -inf
        %v4088 = vrot.slane %v4087, 4
        %v4089 = vmax.f32 %v4087, %v4088
        %v4090 = vrot.slane %v4089, 2
        %v4091 = vmax.f32 %v4089, %v4090
        %v4092 = vrot.slane %v4091, 1
        %v4093 = vmax.f32 %v4091, %v4092
        %v4094 = vsel %vm681, %v3333, -inf
        %v4095 = vrot.slane %v4094, 4
        %v4096 = vmax.f32 %v4094, %v4095
        %v4097 = vrot.slane %v4096, 2
        %v4098 = vmax.f32 %v4096, %v4097
        %v4099 = vrot.slane %v4098, 1
        %v4100 = vmax.f32 %v4098, %v4099
        %v4101 = vsel %vm681, %v3224, -inf
        %v4102 = vrot.slane %v4101, 4
        %v4103 = vmax.f32 %v4101, %v4102
        %v4104 = vrot.slane %v4103, 2
        %v4105 = vmax.f32 %v4103, %v4104
        %v4106 = vrot.slane %v4105, 1
        %v4107 = vmax.f32 %v4105, %v4106
        %v4108 = vsel %vm681, %v3334, -inf
        %v4109 = vrot.slane %v4108, 4
        %v4110 = vmax.f32 %v4108, %v4109
        %v4111 = vrot.slane %v4110, 2
        %v4112 = vmax.f32 %v4110, %v4111
        %v4113 = vrot.slane %v4112, 1
        %v4114 = vmax.f32 %v4112, %v4113
        %v4115 = vsel %vm681, %v3335, -inf
        %v4116 = vrot.slane %v4115, 4
        %v4117 = vmax.f32 %v4115, %v4116
        %v4118 = vrot.slane %v4117, 2
        %v4119 = vmax.f32 %v4117, %v4118
        %v4120 = vrot.slane %v4119, 1
        %v4121 = vmax.f32 %v4119, %v4120
        %v4122 = vsel %vm681, %v3336, -inf
        %v4123 = vrot.slane %v4122, 4
        %v4124 = vmax.f32 %v4122, %v4123
        %v4125 = vrot.slane %v4124, 2
        %v4126 = vmax.f32 %v4124, %v4125
        %v4127 = vrot.slane %v4126, 1
        %v4128 = vmax.f32 %v4126, %v4127
        %v4129 = vsel %vm681, %v3225, -inf
        %v4130 = vrot.slane %v4129, 4
        %v4131 = vmax.f32 %v4129, %v4130
        %v4132 = vrot.slane %v4131, 2
        %v4133 = vmax.f32 %v4131, %v4132
        %v4134 = vrot.slane %v4133, 1
        %v4135 = vmax.f32 %v4133, %v4134
        %v4136 = vsel %vm681, %v3337, -inf
        %v4137 = vrot.slane %v4136, 4
        %v4138 = vmax.f32 %v4136, %v4137
        %v4139 = vrot.slane %v4138, 2
        %v4140 = vmax.f32 %v4138, %v4139
        %v4141 = vrot.slane %v4140, 1
        %v4142 = vmax.f32 %v4140, %v4141
        %v4143 = vsel %vm681, %v3338, -inf
        %v4144 = vrot.slane %v4143, 4
        %v4145 = vmax.f32 %v4143, %v4144
        %v4146 = vrot.slane %v4145, 2
        %v4147 = vmax.f32 %v4145, %v4146
        %v4148 = vrot.slane %v4147, 1
        %v4149 = vmax.f32 %v4147, %v4148
        %v4150 = vsel %vm681, %v3339, -inf
        %v4151 = vrot.slane %v4150, 4
        %v4152 = vmax.f32 %v4150, %v4151
        %v4153 = vrot.slane %v4152, 2
        %v4154 = vmax.f32 %v4152, %v4153
        %v4155 = vrot.slane %v4154, 1
        %v4156 = vmax.f32 %v4154, %v4155
        %v4157 = vsel %vm681, %v3226, -inf
        %v4158 = vrot.slane %v4157, 4
        %v4159 = vmax.f32 %v4157, %v4158
        %v4160 = vrot.slane %v4159, 2
        %v4161 = vmax.f32 %v4159, %v4160
        %v4162 = vrot.slane %v4161, 1
        %v4163 = vmax.f32 %v4161, %v4162
        %v4164 = vsel %vm681, %v3340, -inf
        %v4165 = vrot.slane %v4164, 4
        %v4166 = vmax.f32 %v4164, %v4165
        %v4167 = vrot.slane %v4166, 2
        %v4168 = vmax.f32 %v4166, %v4167
        %v4169 = vrot.slane %v4168, 1
        %v4170 = vmax.f32 %v4168, %v4169
        %v4171 = vsel %vm681, %v3341, -inf
        %v4172 = vrot.slane %v4171, 4
        %v4173 = vmax.f32 %v4171, %v4172
        %v4174 = vrot.slane %v4173, 2
        %v4175 = vmax.f32 %v4173, %v4174
        %v4176 = vrot.slane %v4175, 1
        %v4177 = vmax.f32 %v4175, %v4176
        %v4178 = vsel %vm681, %v3342, -inf
        %v4179 = vrot.slane %v4178, 4
        %v4180 = vmax.f32 %v4178, %v4179
        %v4181 = vrot.slane %v4180, 2
        %v4182 = vmax.f32 %v4180, %v4181
        %v4183 = vrot.slane %v4182, 1
        %v4184 = vmax.f32 %v4182, %v4183
        %v4185 = vsel %vm681, %v3227, -inf
        %v4186 = vrot.slane %v4185, 4
        %v4187 = vmax.f32 %v4185, %v4186
        %v4188 = vrot.slane %v4187, 2
        %v4189 = vmax.f32 %v4187, %v4188
        %v4190 = vrot.slane %v4189, 1
        %v4191 = vmax.f32 %v4189, %v4190
        %v4192 = vsel %vm681, %v3343, -inf
        %v4193 = vrot.slane %v4192, 4
        %v4194 = vmax.f32 %v4192, %v4193
        %v4195 = vrot.slane %v4194, 2
        %v4196 = vmax.f32 %v4194, %v4195
        %v4197 = vrot.slane %v4196, 1
        %v4198 = vmax.f32 %v4196, %v4197
        %v4199 = vsel %vm681, %v3344, -inf
        %v4200 = vrot.slane %v4199, 4
        %v4201 = vmax.f32 %v4199, %v4200
        %v4202 = vrot.slane %v4201, 2
        %v4203 = vmax.f32 %v4201, %v4202
        %v4204 = vrot.slane %v4203, 1
        %v4205 = vmax.f32 %v4203, %v4204
        %v4206 = vsel %vm681, %v3345, -inf
        %v4207 = vrot.slane %v4206, 4
        %v4208 = vmax.f32 %v4206, %v4207
        %v4209 = vrot.slane %v4208, 2
        %v4210 = vmax.f32 %v4208, %v4209
        %v4211 = vrot.slane %v4210, 1
        %v4212 = vmax.f32 %v4210, %v4211
        %v4213 = vsel %vm681, %v3228, -inf
        %v4214 = vrot.slane %v4213, 4
        %v4215 = vmax.f32 %v4213, %v4214
        %v4216 = vrot.slane %v4215, 2
        %v4217 = vmax.f32 %v4215, %v4216
        %v4218 = vrot.slane %v4217, 1
        %v4219 = vmax.f32 %v4217, %v4218
        %v4220 = vsel %vm681, %v3346, -inf
        %v4221 = vrot.slane %v4220, 4
        %v4222 = vmax.f32 %v4220, %v4221
        %v4223 = vrot.slane %v4222, 2
        %v4224 = vmax.f32 %v4222, %v4223
        %v4225 = vrot.slane %v4224, 1
        %v4226 = vmax.f32 %v4224, %v4225
        %v4227 = vsel %vm681, %v3347, -inf
        %v4228 = vrot.slane %v4227, 4
        %v4229 = vmax.f32 %v4227, %v4228
        %v4230 = vrot.slane %v4229, 2
        %v4231 = vmax.f32 %v4229, %v4230
        %v4232 = vrot.slane %v4231, 1
        %v4233 = vmax.f32 %v4231, %v4232
        %v4234 = vsel %vm681, %v3348, -inf
        %v4235 = vrot.slane %v4234, 4
        %v4236 = vmax.f32 %v4234, %v4235
        %v4237 = vrot.slane %v4236, 2
        %v4238 = vmax.f32 %v4236, %v4237
        %v4239 = vrot.slane %v4238, 1
        %v4240 = vmax.f32 %v4238, %v4239
        %v4241 = vsel %vm681, %v3229, -inf
        %v4242 = vrot.slane %v4241, 4
        %v4243 = vmax.f32 %v4241, %v4242
        %v4244 = vrot.slane %v4243, 2
        %v4245 = vmax.f32 %v4243, %v4244
        %v4246 = vrot.slane %v4245, 1
        %v4247 = vmax.f32 %v4245, %v4246
        %v4248 = vsel %vm681, %v3349, -inf
        %v4249 = vrot.slane %v4248, 4
        %v4250 = vmax.f32 %v4248, %v4249
        %v4251 = vrot.slane %v4250, 2
        %v4252 = vmax.f32 %v4250, %v4251
        %v4253 = vrot.slane %v4252, 1
        %v4254 = vmax.f32 %v4252, %v4253
        %v4255 = vsel %vm681, %v3350, -inf
        %v4256 = vrot.slane %v4255, 4
        %v4257 = vmax.f32 %v4255, %v4256
        %v4258 = vrot.slane %v4257, 2
        %v4259 = vmax.f32 %v4257, %v4258
        %v4260 = vrot.slane %v4259, 1
        %v4261 = vmax.f32 %v4259, %v4260
        %v4262 = vsel %vm681, %v3351, -inf
        %v4263 = vrot.slane %v4262, 4
        %v4264 = vmax.f32 %v4262, %v4263
        %v4265 = vrot.slane %v4264, 2
        %v4266 = vmax.f32 %v4264, %v4265
        %v4267 = vrot.slane %v4266, 1
        %v4268 = vmax.f32 %v4266, %v4267
        %v4269 = vsel %vm681, %v3230, -inf
        %v4270 = vrot.slane %v4269, 4
        %v4271 = vmax.f32 %v4269, %v4270
        %v4272 = vrot.slane %v4271, 2
        %v4273 = vmax.f32 %v4271, %v4272
        %v4274 = vrot.slane %v4273, 1
        %v4275 = vmax.f32 %v4273, %v4274
        %v4276 = vsel %vm681, %v3352, -inf
        %v4277 = vrot.slane %v4276, 4
        %v4278 = vmax.f32 %v4276, %v4277
        %v4279 = vrot.slane %v4278, 2
        %v4280 = vmax.f32 %v4278, %v4279
        %v4281 = vrot.slane %v4280, 1
        %v4282 = vmax.f32 %v4280, %v4281
        %v4283 = vsel %vm681, %v3353, -inf
        %v4284 = vrot.slane %v4283, 4
        %v4285 = vmax.f32 %v4283, %v4284
        %v4286 = vrot.slane %v4285, 2
        %v4287 = vmax.f32 %v4285, %v4286
        %v4288 = vrot.slane %v4287, 1
        %v4289 = vmax.f32 %v4287, %v4288
        %v4290 = vsel %vm681, %v3354, -inf
        %v4291 = vrot.slane %v4290, 4
        %v4292 = vmax.f32 %v4290, %v4291
        %v4293 = vrot.slane %v4292, 2
        %v4294 = vmax.f32 %v4292, %v4293
        %v4295 = vrot.slane %v4294, 1
        %v4296 = vmax.f32 %v4294, %v4295
        %v4297 = vsel %vm681, %v3231, -inf
        %v4298 = vrot.slane %v4297, 4
        %v4299 = vmax.f32 %v4297, %v4298
        %v4300 = vrot.slane %v4299, 2
        %v4301 = vmax.f32 %v4299, %v4300
        %v4302 = vrot.slane %v4301, 1
        %v4303 = vmax.f32 %v4301, %v4302
        %v4304 = vsel %vm681, %v3355, -inf
        %v4305 = vrot.slane %v4304, 4
        %v4306 = vmax.f32 %v4304, %v4305
        %v4307 = vrot.slane %v4306, 2
        %v4308 = vmax.f32 %v4306, %v4307
        %v4309 = vrot.slane %v4308, 1
        %v4310 = vmax.f32 %v4308, %v4309
        %v4311 = vsel %vm681, %v3356, -inf
        %v4312 = vrot.slane %v4311, 4
        %v4313 = vmax.f32 %v4311, %v4312
        %v4314 = vrot.slane %v4313, 2
        %v4315 = vmax.f32 %v4313, %v4314
        %v4316 = vrot.slane %v4315, 1
        %v4317 = vmax.f32 %v4315, %v4316
        %v4318 = vsel %vm681, %v3357, -inf
        %v4319 = vrot.slane %v4318, 4
        %v4320 = vmax.f32 %v4318, %v4319
        %v4321 = vrot.slane %v4320, 2
        %v4322 = vmax.f32 %v4320, %v4321
        %v4323 = vrot.slane %v4322, 1
        %v4324 = vmax.f32 %v4322, %v4323
        %v4325 = vsel %vm681, %v3232, -inf
        %v4326 = vrot.slane %v4325, 4
        %v4327 = vmax.f32 %v4325, %v4326
        %v4328 = vrot.slane %v4327, 2
        %v4329 = vmax.f32 %v4327, %v4328
        %v4330 = vrot.slane %v4329, 1
        %v4331 = vmax.f32 %v4329, %v4330
        %v4332 = vsel %vm681, %v3358, -inf
        %v4333 = vrot.slane %v4332, 4
        %v4334 = vmax.f32 %v4332, %v4333
        %v4335 = vrot.slane %v4334, 2
        %v4336 = vmax.f32 %v4334, %v4335
        %v4337 = vrot.slane %v4336, 1
        %v4338 = vmax.f32 %v4336, %v4337
        %v4339 = vsel %vm681, %v3359, -inf
        %v4340 = vrot.slane %v4339, 4
        %v4341 = vmax.f32 %v4339, %v4340
        %v4342 = vrot.slane %v4341, 2
        %v4343 = vmax.f32 %v4341, %v4342
        %v4344 = vrot.slane %v4343, 1
        %v4345 = vmax.f32 %v4343, %v4344
        %v4346 = vsel %vm681, %v3360, -inf
        %v4347 = vrot.slane %v4346, 4
        %v4348 = vmax.f32 %v4346, %v4347
        %v4349 = vrot.slane %v4348, 2
        %v4350 = vmax.f32 %v4348, %v4349
        %v4351 = vrot.slane %v4350, 1
        %v4352 = vmax.f32 %v4350, %v4351
        %v4353 = vmax.f32 %v3463, %v3519
        %v4354 = vmax.f32 %v3470, %v3526
        %v4355 = vmax.f32 %v3477, %v3533
        %v4356 = vmax.f32 %v3484, %v3540
        %v4357 = vmax.f32 %v3491, %v3547
        %v4358 = vmax.f32 %v3498, %v3554
        %v4359 = vmax.f32 %v3505, %v3561
        %v4360 = vmax.f32 %v3512, %v3568
        %v4361 = vmax.f32 %v3575, %v3631
        %v4362 = vmax.f32 %v3582, %v3638
        %v4363 = vmax.f32 %v3589, %v3645
        %v4364 = vmax.f32 %v3596, %v3652
        %v4365 = vmax.f32 %v3603, %v3659
        %v4366 = vmax.f32 %v3610, %v3666
        %v4367 = vmax.f32 %v3617, %v3673
        %v4368 = vmax.f32 %v3624, %v3680
        %v4369 = vmax.f32 %v3687, %v3743
        %v4370 = vmax.f32 %v3694, %v3750
        %v4371 = vmax.f32 %v3701, %v3757
        %v4372 = vmax.f32 %v3708, %v3764
        %v4373 = vmax.f32 %v3715, %v3771
        %v4374 = vmax.f32 %v3722, %v3778
        %v4375 = vmax.f32 %v3729, %v3785
        %v4376 = vmax.f32 %v3736, %v3792
        %v4377 = vmax.f32 %v3799, %v3855
        %v4378 = vmax.f32 %v3806, %v3862
        %v4379 = vmax.f32 %v3813, %v3869
        %v4380 = vmax.f32 %v3820, %v3876
        %v4381 = vmax.f32 %v3827, %v3883
        %v4382 = vmax.f32 %v3834, %v3890
        %v4383 = vmax.f32 %v3841, %v3897
        %v4384 = vmax.f32 %v3848, %v3904
        %v4385 = vmax.f32 %v3911, %v3967
        %v4386 = vmax.f32 %v3918, %v3974
        %v4387 = vmax.f32 %v3925, %v3981
        %v4388 = vmax.f32 %v3932, %v3988
        %v4389 = vmax.f32 %v3939, %v3995
        %v4390 = vmax.f32 %v3946, %v4002
        %v4391 = vmax.f32 %v3953, %v4009
        %v4392 = vmax.f32 %v3960, %v4016
        %v4393 = vmax.f32 %v4023, %v4079
        %v4394 = vmax.f32 %v4030, %v4086
        %v4395 = vmax.f32 %v4037, %v4093
        %v4396 = vmax.f32 %v4044, %v4100
        %v4397 = vmax.f32 %v4051, %v4107
        %v4398 = vmax.f32 %v4058, %v4114
        %v4399 = vmax.f32 %v4065, %v4121
        %v4400 = vmax.f32 %v4072, %v4128
        %v4401 = vmax.f32 %v4135, %v4191
        %v4402 = vmax.f32 %v4142, %v4198
        %v4403 = vmax.f32 %v4149, %v4205
        %v4404 = vmax.f32 %v4156, %v4212
        %v4405 = vmax.f32 %v4163, %v4219
        %v4406 = vmax.f32 %v4170, %v4226
        %v4407 = vmax.f32 %v4177, %v4233
        %v4408 = vmax.f32 %v4184, %v4240
        %v4409 = vmax.f32 %v4247, %v4303
        %v4410 = vmax.f32 %v4254, %v4310
        %v4411 = vmax.f32 %v4261, %v4317
        %v4412 = vmax.f32 %v4268, %v4324
        %v4413 = vmax.f32 %v4275, %v4331
        %v4414 = vmax.f32 %v4282, %v4338
        %v4415 = vmax.f32 %v4289, %v4345
        %v4416 = vmax.f32 %v4296, %v4352
        %v4417 = vpack.c.bf16 %v4353, %v4353
        %v4418 = vpack.c.bf16 %v4354, %v4354
        %v4419 = vpack.c.bf16 %v4355, %v4355
        %v4420 = vpack.c.bf16 %v4356, %v4356
        %v4421 = vpack.c.bf16 %v4357, %v4357
        %v4422 = vpack.c.bf16 %v4358, %v4358
        %v4423 = vpack.c.bf16 %v4359, %v4359
        %v4424 = vpack.c.bf16 %v4360, %v4360
        %v4425 = vpack.c.bf16 %v4361, %v4361
        %v4426 = vpack.c.bf16 %v4362, %v4362
        %v4427 = vpack.c.bf16 %v4363, %v4363
        %v4428 = vpack.c.bf16 %v4364, %v4364
        %v4429 = vpack.c.bf16 %v4365, %v4365
        %v4430 = vpack.c.bf16 %v4366, %v4366
        %v4431 = vpack.c.bf16 %v4367, %v4367
        %v4432 = vpack.c.bf16 %v4368, %v4368
        %v4433 = vpack.c.bf16 %v4369, %v4369
        %v4434 = vpack.c.bf16 %v4370, %v4370
        %v4435 = vpack.c.bf16 %v4371, %v4371
        %v4436 = vpack.c.bf16 %v4372, %v4372
        %v4437 = vpack.c.bf16 %v4373, %v4373
        %v4438 = vpack.c.bf16 %v4374, %v4374
        %v4439 = vpack.c.bf16 %v4375, %v4375
        %v4440 = vpack.c.bf16 %v4376, %v4376
        %v4441 = vpack.c.bf16 %v4377, %v4377
        %v4442 = vpack.c.bf16 %v4378, %v4378
        %v4443 = vpack.c.bf16 %v4379, %v4379
        %v4444 = vpack.c.bf16 %v4380, %v4380
        %v4445 = vpack.c.bf16 %v4381, %v4381
        %v4446 = vpack.c.bf16 %v4382, %v4382
        %v4447 = vpack.c.bf16 %v4383, %v4383
        %v4448 = vpack.c.bf16 %v4384, %v4384
        %v4449 = vpack.c.bf16 %v4385, %v4385
        %v4450 = vpack.c.bf16 %v4386, %v4386
        %v4451 = vpack.c.bf16 %v4387, %v4387
        %v4452 = vpack.c.bf16 %v4388, %v4388
        %v4453 = vpack.c.bf16 %v4389, %v4389
        %v4454 = vpack.c.bf16 %v4390, %v4390
        %v4455 = vpack.c.bf16 %v4391, %v4391
        %v4456 = vpack.c.bf16 %v4392, %v4392
        %v4457 = vpack.c.bf16 %v4393, %v4393
        %v4458 = vpack.c.bf16 %v4394, %v4394
        %v4459 = vpack.c.bf16 %v4395, %v4395
        %v4460 = vpack.c.bf16 %v4396, %v4396
        %v4461 = vpack.c.bf16 %v4397, %v4397
        %v4462 = vpack.c.bf16 %v4398, %v4398
        %v4463 = vpack.c.bf16 %v4399, %v4399
        %v4464 = vpack.c.bf16 %v4400, %v4400
        %v4465 = vpack.c.bf16 %v4401, %v4401
        %v4466 = vpack.c.bf16 %v4402, %v4402
        %v4467 = vpack.c.bf16 %v4403, %v4403
        %v4468 = vpack.c.bf16 %v4404, %v4404
        %v4469 = vpack.c.bf16 %v4405, %v4405
        %v4470 = vpack.c.bf16 %v4406, %v4406
        %v4471 = vpack.c.bf16 %v4407, %v4407
        %v4472 = vpack.c.bf16 %v4408, %v4408
        %v4473 = vpack.c.bf16 %v4409, %v4409
        %v4474 = vpack.c.bf16 %v4410, %v4410
        %v4475 = vpack.c.bf16 %v4411, %v4411
        %v4476 = vpack.c.bf16 %v4412, %v4412
        %v4477 = vpack.c.bf16 %v4413, %v4413
        %v4478 = vpack.c.bf16 %v4414, %v4414
        %v4479 = vpack.c.bf16 %v4415, %v4415
        %v4480 = vpack.c.bf16 %v4416, %v4416
        %v4545 = vunpack.c.l.b16 %v4417
        %v4546 = vunpack.c.l.b16 %v4418
        %v4547 = vunpack.c.l.b16 %v4419
        %v4548 = vunpack.c.l.b16 %v4420
        %v4549 = vunpack.c.l.b16 %v4421
        %v4550 = vunpack.c.l.b16 %v4422
        %v4551 = vunpack.c.l.b16 %v4423
        %v4552 = vunpack.c.l.b16 %v4424
        %v4553 = vunpack.c.l.b16 %v4425
        %v4554 = vunpack.c.l.b16 %v4426
        %v4555 = vunpack.c.l.b16 %v4427
        %v4556 = vunpack.c.l.b16 %v4428
        %v4557 = vunpack.c.l.b16 %v4429
        %v4558 = vunpack.c.l.b16 %v4430
        %v4559 = vunpack.c.l.b16 %v4431
        %v4560 = vunpack.c.l.b16 %v4432
        %v4561 = vunpack.c.l.b16 %v4433
        %v4562 = vunpack.c.l.b16 %v4434
        %v4563 = vunpack.c.l.b16 %v4435
        %v4564 = vunpack.c.l.b16 %v4436
        %v4565 = vunpack.c.l.b16 %v4437
        %v4566 = vunpack.c.l.b16 %v4438
        %v4567 = vunpack.c.l.b16 %v4439
        %v4568 = vunpack.c.l.b16 %v4440
        %v4569 = vunpack.c.l.b16 %v4441
        %v4570 = vunpack.c.l.b16 %v4442
        %v4571 = vunpack.c.l.b16 %v4443
        %v4572 = vunpack.c.l.b16 %v4444
        %v4573 = vunpack.c.l.b16 %v4445
        %v4574 = vunpack.c.l.b16 %v4446
        %v4575 = vunpack.c.l.b16 %v4447
        %v4576 = vunpack.c.l.b16 %v4448
        %v4577 = vunpack.c.l.b16 %v4449
        %v4578 = vunpack.c.l.b16 %v4450
        %v4579 = vunpack.c.l.b16 %v4451
        %v4580 = vunpack.c.l.b16 %v4452
        %v4581 = vunpack.c.l.b16 %v4453
        %v4582 = vunpack.c.l.b16 %v4454
        %v4583 = vunpack.c.l.b16 %v4455
        %v4584 = vunpack.c.l.b16 %v4456
        %v4585 = vunpack.c.l.b16 %v4457
        %v4586 = vunpack.c.l.b16 %v4458
        %v4587 = vunpack.c.l.b16 %v4459
        %v4588 = vunpack.c.l.b16 %v4460
        %v4589 = vunpack.c.l.b16 %v4461
        %v4590 = vunpack.c.l.b16 %v4462
        %v4591 = vunpack.c.l.b16 %v4463
        %v4592 = vunpack.c.l.b16 %v4464
        %v4593 = vunpack.c.l.b16 %v4465
        %v4594 = vunpack.c.l.b16 %v4466
        %v4595 = vunpack.c.l.b16 %v4467
        %v4596 = vunpack.c.l.b16 %v4468
        %v4597 = vunpack.c.l.b16 %v4469
        %v4598 = vunpack.c.l.b16 %v4470
        %v4599 = vunpack.c.l.b16 %v4471
        %v4600 = vunpack.c.l.b16 %v4472
        %v4601 = vunpack.c.l.b16 %v4473
        %v4602 = vunpack.c.l.b16 %v4474
        %v4603 = vunpack.c.l.b16 %v4475
        %v4604 = vunpack.c.l.b16 %v4476
        %v4605 = vunpack.c.l.b16 %v4477
        %v4606 = vunpack.c.l.b16 %v4478
        %v4607 = vunpack.c.l.b16 %v4479
        %v4608 = vunpack.c.l.b16 %v4480
        %vm4609 = vcmask 1041409
        %v4610 = vsel %vm4609, %v4546, %v4545
        %vm4611 = vcmask 1042434
        %v4612 = vsel %vm4611, %v4547, %v4610
        %vm4613 = vcmask 1043459
        %v4614 = vsel %vm4613, %v4548, %v4612
        %vm4615 = vcmask 1044484
        %v4616 = vsel %vm4615, %v4549, %v4614
        %vm4617 = vcmask 1045509
        %v4618 = vsel %vm4617, %v4550, %v4616
        %vm4619 = vcmask 1046534
        %v4620 = vsel %vm4619, %v4551, %v4618
        %vm4621 = vcmask 1047559
        %v4622 = vsel %vm4621, %v4552, %v4620
        %v4623 = vsel %vm4609, %v4554, %v4553
        %v4624 = vsel %vm4611, %v4555, %v4623
        %v4625 = vsel %vm4613, %v4556, %v4624
        %v4626 = vsel %vm4615, %v4557, %v4625
        %v4627 = vsel %vm4617, %v4558, %v4626
        %v4628 = vsel %vm4619, %v4559, %v4627
        %v4629 = vsel %vm4621, %v4560, %v4628
        %v4630 = vsel %vm4609, %v4562, %v4561
        %v4631 = vsel %vm4611, %v4563, %v4630
        %v4632 = vsel %vm4613, %v4564, %v4631
        %v4633 = vsel %vm4615, %v4565, %v4632
        %v4634 = vsel %vm4617, %v4566, %v4633
        %v4635 = vsel %vm4619, %v4567, %v4634
        %v4636 = vsel %vm4621, %v4568, %v4635
        %v4637 = vsel %vm4609, %v4570, %v4569
        %v4638 = vsel %vm4611, %v4571, %v4637
        %v4639 = vsel %vm4613, %v4572, %v4638
        %v4640 = vsel %vm4615, %v4573, %v4639
        %v4641 = vsel %vm4617, %v4574, %v4640
        %v4642 = vsel %vm4619, %v4575, %v4641
        %v4643 = vsel %vm4621, %v4576, %v4642
        %v4644 = vsel %vm4609, %v4578, %v4577
        %v4645 = vsel %vm4611, %v4579, %v4644
        %v4646 = vsel %vm4613, %v4580, %v4645
        %v4647 = vsel %vm4615, %v4581, %v4646
        %v4648 = vsel %vm4617, %v4582, %v4647
        %v4649 = vsel %vm4619, %v4583, %v4648
        %v4650 = vsel %vm4621, %v4584, %v4649
        %v4651 = vsel %vm4609, %v4586, %v4585
        %v4652 = vsel %vm4611, %v4587, %v4651
        %v4653 = vsel %vm4613, %v4588, %v4652
        %v4654 = vsel %vm4615, %v4589, %v4653
        %v4655 = vsel %vm4617, %v4590, %v4654
        %v4656 = vsel %vm4619, %v4591, %v4655
        %v4657 = vsel %vm4621, %v4592, %v4656
        %v4658 = vsel %vm4609, %v4594, %v4593
        %v4659 = vsel %vm4611, %v4595, %v4658
        %v4660 = vsel %vm4613, %v4596, %v4659
        %v4661 = vsel %vm4615, %v4597, %v4660
        %v4662 = vsel %vm4617, %v4598, %v4661
        %v4663 = vsel %vm4619, %v4599, %v4662
        %v4664 = vsel %vm4621, %v4600, %v4663
        %v4665 = vsel %vm4609, %v4602, %v4601
        %v4666 = vsel %vm4611, %v4603, %v4665
        %v4667 = vsel %vm4613, %v4604, %v4666
        %v4668 = vsel %vm4615, %v4605, %v4667
        %v4669 = vsel %vm4617, %v4606, %v4668
        %v4670 = vsel %vm4619, %v4607, %v4669
        %v4671 = vsel %vm4621, %v4608, %v4670
        %v4672 = vpack.c.b16 %v4622, %v4622
        %v4673 = vpack.c.b16 %v4629, %v4629
        %v4674 = vpack.c.b16 %v4636, %v4636
        %v4675 = vpack.c.b16 %v4643, %v4643
        %v4676 = vpack.c.b16 %v4650, %v4650
        %v4677 = vpack.c.b16 %v4657, %v4657
        %v4678 = vpack.c.b16 %v4664, %v4664
        %v4679 = vpack.c.b16 %v4671, %v4671
        %4688 = vst [vmem:[%s361] sm:$0xf] %v4672
        %4689 = vst [vmem:[%s361 + $0x4] sm:$0xf] %v4673
        %4690 = vst [vmem:[%s361 + $0x8] sm:$0xf] %v4674
        %4691 = vst [vmem:[%s361 + $0xc] sm:$0xf] %v4675
        %4692 = vst [vmem:[%s361 + $0x10] sm:$0xf] %v4676
        %4693 = vst [vmem:[%s361 + $0x14] sm:$0xf] %v4677
        %4694 = vst [vmem:[%s361 + $0x18] sm:$0xf] %v4678
        %4695 = vst [vmem:[%s361 + $0x1c] sm:$0xf] %v4679
        %s4696 = sand.u32 %s205, 1
        %s4697 = scalar_lea.sflag [#allocation5], %s4696
        %s4698 = sand.u32 %s205, 1
        %s4699 = smul.addr %s4698, 32
        %s4700 = scalar_lea.vmem [#allocation4], %s4699
        // Predicated region
        $region53: #{tpu_custom_call.1} parent=43 // pred_check
          %p4701 = pneg %p215
        $region54: #{tpu_custom_call.1} parent=43 // pred_check_branch
          %4703 = sbr.rel (%p4701) target = $region56
        $region55: #{tpu_custom_call.1} parent=43 // pred_region
          %s4704 = smul.u32 8, %s25
          %4706 = vsyncadd %s4697, 0
          %s4707 = smul.addr %s24, 8
          %s4708 = sadd.s32 %s4704, %s4707
          %s4709 = smul.addr %s4708, 4
          %s4710 = scalar_lea.hbm %s6, %s4709
          %s4711 = sshll.u32 %s4700, 4
          %s4712 = int_to_ptr.vmem [resolvable:$true] %s4711
          %s4713 = sshll.u32 %s4710, 4
          %s4714 = int_to_ptr.hbm [resolvable:$true] %s4713
          %4719 = dma.vmem_to_hbm [thread:$0]  %s4712, 512, %s4714, %s4697, 64, 64, 4
        $region56: #{tpu_custom_call.1} parent=43 // pred_fallthru
          _
      $region44: #{tpu_custom_call.1} parent=5 // pred_fallthru
        _
      %p4720 = scmp.le.s32.totalorder 2, %s15
      // Predicated region
      $region57: #{tpu_custom_call.1} parent=5 // pred_check
        %p4721 = pneg %p4720
      $region58: #{tpu_custom_call.1} parent=5 // pred_check_branch
        %4723 = sbr.rel (%p4721) target = $region60
      $region59: #{tpu_custom_call.1} parent=5 // pred_region
        %s4724 = ssub.s32 %s15, 2
        // Predicated region
        $region61: #{tpu_custom_call.1} parent=59 // pred_check
          %p4725 = pneg %p221
        $region62: #{tpu_custom_call.1} parent=59 // pred_check_branch
          %4727 = sbr.rel (%p4725) target = $region64
        $region63: #{tpu_custom_call.1} parent=59 // pred_region
          %s4728 = sand.u32 %s206, 1
          %s4729 = scalar_lea.sflag [#allocation5], %s4728
          %s4730 = sand.u32 %s206, 1
          %s4731 = smul.addr %s4730, 32
          %s4732 = scalar_lea.vmem [#allocation4], %s4731
          %4734 = dma.done %s4729, 512
        $region64: #{tpu_custom_call.1} parent=59 // pred_fallthru
          _
      $region60: #{tpu_custom_call.1} parent=5 // pred_fallthru
        _
    $region6: #{tpu_custom_call.1} parent=1 // loop_footer
      %s19 = sadd.s32 1, %s15
    $region7: #{tpu_custom_call.1} parent=1 // loop_footer_branch
      %14 = sbr.rel target = $region3
    $region8: #{tpu_custom_call.1} parent=1 // loop_exit
      _
    %4735 = vsyncpa [#allocation5], 1
    %s4736 = scalar_lea.sflag [#allocation5], 1
    %4737 = vsyncpa %s4736, 1

</llo_original>
